<compile_context>
chip_gen: v5e
topology: v5e:2x2
jax: 0.10.0
libtpu: 0.0.40
codegen_flags: <defaults>
</compile_context>

<pallas_src>
import functools
import math

import jax
import jax.numpy as jnp
from jax import lax
from jax.experimental import pallas as pl
from jax.experimental.pallas import tpu as pltpu


def _gelu(x):
    # pytorch_pretrained_bert.modeling_openai.gelu (tanh approximation)
    return 0.5 * x * (1.0 + jnp.tanh(
        math.sqrt(2.0 / math.pi) * (x + 0.044715 * x * x * x)))


def _layer_norm(x, g, b, eps):
    # matches modeling_openai.LayerNorm: biased variance, eps inside sqrt.
    # rsqrt: single EUP op instead of sqrt + divide.
    u = jnp.mean(x, axis=-1, keepdims=True)
    d = x - u
    s = jnp.mean(d * d, axis=-1, keepdims=True)
    return g * (d * lax.rsqrt(s + eps)) + b


# --------------------- stage 1: fused QKV projection kernel ---------------------
def _qkv_proj_kernel(x_ref, w_ref, b_ref, o_ref):
    # x_ref: (1, ts, D) bf16 ; w_ref: (D, 3D) bf16 (q-cols pre-scaled) ; b_ref: (1, 3D) f32
    o_ref[0] = (jnp.dot(x_ref[0], w_ref[...], preferred_element_type=jnp.float32)
                + b_ref[...]).astype(o_ref.dtype)


# ----------- stage 2: attention + residual + LN + MLP per query tile ------------
def _block_kernel(x_ref, q_ref, k_ref, v_ref,
                  wo_ref, bo_ref, g1_ref, b1_ref,
                  wfc_ref, bfc_ref, wmo_ref, bmo_ref, g2_ref, b2_ref,
                  o_ref, *, eps):
    f32, bf16 = jnp.float32, jnp.bfloat16

    q = q_ref[0]              # (H, tq, dh) bf16, pre-scaled by 1/sqrt(dh)
    k = k_ref[0]              # (H, T,  dh) bf16
    v = v_ref[0]              # (H, T,  dh) bf16
    x_q = x_ref[0]            # (tq, D)     bf16 (residual for this query tile)

    H, tq, dh = q.shape
    T = k.shape[1]
    q0 = pl.program_id(1) * tq     # first absolute query row of this tile

    # ---- scaled causal attention (softmax math in f32)
    scores = jnp.einsum("hqd,hkd->hqk", q, k,
                        preferred_element_type=f32)                 # (H, tq, T)

    row = lax.broadcasted_iota(jnp.int32, (H, tq, T), 1) + q0
    col = lax.broadcasted_iota(jnp.int32, (H, tq, T), 2)
    scores = jnp.where(col <= row, scores, -1e9)                    # single vselect

    scores = scores - jnp.max(scores, axis=-1, keepdims=True)
    e = jnp.exp(scores)
    p = (e * pl.reciprocal(jnp.sum(e, axis=-1, keepdims=True),
                           approx=True)).astype(bf16)               # bf16 immediately

    ctx = jnp.einsum("hqk,hkd->hqd", p, v,
                     preferred_element_type=f32)                    # (H, tq, dh) f32

    # ---- attention output projection: one relayout + one full-D contraction
    # (tq, H*dh) x (D, D) against the original c_proj weight; no per-head loop.
    ctx_m = jnp.transpose(ctx, (1, 0, 2)).reshape(tq, H * dh)       # (tq, D) f32
    a = jnp.dot(ctx_m.astype(bf16), wo_ref[...],
                preferred_element_type=f32) + bo_ref[...]

    n1 = _layer_norm(x_q.astype(f32) + a, g1_ref[...], b1_ref[...], eps)

    # ---- MLP (bf16 matmul inputs, f32 accumulation, f32 gelu)
    h_fc = jnp.dot(n1.astype(bf16), wfc_ref[...],
                   preferred_element_type=f32) + bfc_ref[...]
    m = jnp.dot(_gelu(h_fc).astype(bf16), wmo_ref[...],
                preferred_element_type=f32) + bmo_ref[...]

    out = _layer_norm(n1 + m, g2_ref[...], b2_ref[...], eps)
    o_ref[0] = out.astype(o_ref.dtype)


def _const_spec(arr):
    # Invariant weight input: constant block index, single pipeline buffer
    # (second buffer would be pure VMEM waste).
    zeros = (0,) * arr.ndim
    return pl.BlockSpec(arr.shape, lambda b, t: zeros,
                        pipeline_mode=pl.Buffered(1))


def gpt_block_pallas(x, params, *, n_head, eps, q_tile=None,
                     vmem_limit_bytes=48 * 1024 * 1024):
    """Run one transformer Block over hidden states x of shape (B, T, D)."""
    B, T, D = x.shape
    H = n_head
    assert D % H == 0
    dh = D // H
    if q_tile is None:
        q_tile = T if T <= 128 else 128   # 128 on v5e/v7x; 256 worth trying on v6e
    assert T % q_tile == 0
    nq = T // q_tile

    bf16, f32 = jnp.bfloat16, jnp.float32
    x = x.astype(bf16)
    w = params

    # ---- host-side weight prep -------------------------------------------------
    # Fold the 1/sqrt(dh) attention scale into the Q columns of w_qkv / b_qkv.
    scale = 1.0 / math.sqrt(dh)
    col_scale = jnp.concatenate(
        [jnp.full((1, D), scale, f32), jnp.ones((1, 2 * D), f32)], axis=1)
    wqkv = (w["w_qkv"].astype(f32) * col_scale).astype(bf16)          # (D, 3D)
    bqkv = w["b_qkv"].astype(f32).reshape(1, 3 * D) * col_scale       # (1, 3D) f32

    wo = w["w_aproj"].astype(bf16)                                    # (D, D)
    bo = w["b_aproj"].astype(f32).reshape(1, D)
    g1 = w["ln1_g"].astype(f32).reshape(1, D)
    b1 = w["ln1_b"].astype(f32).reshape(1, D)
    wfc = w["w_fc"].astype(bf16)                                      # (D, 4D)
    bfc = w["b_fc"].astype(f32).reshape(1, 4 * D)
    wmo = w["w_mproj"].astype(bf16)                                   # (4D, D)
    bmo = w["b_mproj"].astype(f32).reshape(1, D)
    g2 = w["ln2_g"].astype(f32).reshape(1, D)
    b2 = w["ln2_b"].astype(f32).reshape(1, D)

    compiler_params = pltpu.CompilerParams(
        dimension_semantics=("parallel", "parallel"),
        vmem_limit_bytes=vmem_limit_bytes,
    )

    # ---- stage 1: QKV projection (once per (batch, seq tile), full-width matmul)
    qkv = pl.pallas_call(
        _qkv_proj_kernel,
        out_shape=jax.ShapeDtypeStruct((B, T, 3 * D), bf16),
        grid_spec=pltpu.PrefetchScalarGridSpec(
            num_scalar_prefetch=0,
            grid=(B, nq),
            in_specs=[pl.BlockSpec((1, q_tile, D), lambda b, t: (b, t, 0)),
                      _const_spec(wqkv),
                      _const_spec(bqkv)],
            out_specs=pl.BlockSpec((1, q_tile, 3 * D), lambda b, t: (b, t, 0)),
        ),
        compiler_params=compiler_params,
    )(x, wqkv, bqkv)

    # ---- split heads in plain XLA (cheap relayout, once per layer) -------------
    qkv_h = qkv.reshape(B, T, 3, H, dh)
    qh = qkv_h[:, :, 0].transpose(0, 2, 1, 3)     # (B, H, T, dh), pre-scaled
    kh = qkv_h[:, :, 1].transpose(0, 2, 1, 3)
    vh = qkv_h[:, :, 2].transpose(0, 2, 1, 3)

    weights = (wo, bo, g1, b1, wfc, bfc, wmo, bmo, g2, b2)

    in_specs = (
        [pl.BlockSpec((1, q_tile, D), lambda b, t: (b, t, 0)),          # x query tile
         pl.BlockSpec((1, H, q_tile, dh), lambda b, t: (b, 0, t, 0)),   # Q tile
         pl.BlockSpec((1, H, T, dh), lambda b, t: (b, 0, 0, 0)),        # K full seq
         pl.BlockSpec((1, H, T, dh), lambda b, t: (b, 0, 0, 0))]        # V full seq
        + [_const_spec(a) for a in weights])

    # ---- stage 2: attention + LN + MLP over query tiles -------------------------
    return pl.pallas_call(
        functools.partial(_block_kernel, eps=eps),
        out_shape=jax.ShapeDtypeStruct((B, T, D), bf16),
        grid_spec=pltpu.PrefetchScalarGridSpec(
            num_scalar_prefetch=0,
            grid=(B, nq),
            in_specs=in_specs,
            out_specs=pl.BlockSpec((1, q_tile, D), lambda b, t: (b, t, 0)),
        ),
        compiler_params=compiler_params,
    )(x, qh, kh, vh, *weights)


def openai_gpt_encoder(x, layer_params, *, n_head, eps, q_tile=None):
    """Stack of n_layer Blocks, matching OpenAIGPTEncoder.forward (eval mode)."""
    h = x.astype(jnp.bfloat16)   # hidden states stay bf16 between layers
    # TODO(synk): cross-pallas_call prefetch of next layer's weights (P10) for small B*T.
    for params in layer_params:
        h = gpt_block_pallas(h, params, n_head=n_head, eps=eps, q_tile=q_tile)
    return h


# ----------------------- pure-JAX f32 reference (for checking) -----------------------
def _block_ref(x, w, n_head, eps):
    B, T, D = x.shape
    dh = D // n_head
    qkv = x @ w["w_qkv"] + w["b_qkv"][0]
    q, k, v = qkv[..., :D], qkv[..., D:2 * D], qkv[..., 2 * D:]

    def split(t):  # (B,T,D) -> (B,H,T,dh)
        return t.reshape(B, T, n_head, dh).transpose(0, 2, 1, 3)

    qh, kh, vh = split(q), split(k), split(v)
    wts = jnp.einsum("bhtd,bhsd->bhts", qh, kh) / math.sqrt(dh)
    bias = jnp.tril(jnp.ones((T, T), jnp.float32))
    wts = wts * bias + (-1e9) * (1.0 - bias)
    p = jax.nn.softmax(wts, axis=-1)
    a = jnp.einsum("bhts,bhsd->bhtd", p, vh).transpose(0, 2, 1, 3).reshape(B, T, D)
    a = a @ w["w_aproj"] + w["b_aproj"][0]
    n = _layer_norm(x + a, w["ln1_g"][0], w["ln1_b"][0], eps)
    m = _gelu(n @ w["w_fc"] + w["b_fc"][0]) @ w["w_mproj"] + w["b_mproj"][0]
    return _layer_norm(n + m, w["ln2_g"][0], w["ln2_b"][0], eps)


def _init_layer(key, D, init_range=0.02):
    ks = jax.random.split(key, 4)
    f32 = jnp.float32
    return {
        "w_qkv":   (init_range * jax.random.normal(ks[0], (D, 3 * D))).astype(f32),
        "b_qkv":   jnp.zeros((1, 3 * D), f32),
        "w_aproj": (init_range * jax.random.normal(ks[1], (D, D))).astype(f32),
        "b_aproj": jnp.zeros((1, D), f32),
        "ln1_g":   jnp.ones((1, D), f32),
        "ln1_b":   jnp.zeros((1, D), f32),
        "w_fc":    (init_range * jax.random.normal(ks[2], (D, 4 * D))).astype(f32),
        "b_fc":    jnp.zeros((1, 4 * D), f32),
        "w_mproj": (init_range * jax.random.normal(ks[3], (4 * D, D))).astype(f32),
        "b_mproj": jnp.zeros((1, D), f32),
        "ln2_g":   jnp.ones((1, D), f32),
        "ln2_b":   jnp.zeros((1, D), f32),
    }


if __name__ == "__main__":
    B, T, D, H, L = 2, 16, 64, 4, 2
    eps = 1e-5
    q_tile = 8   # T // q_tile == 2 -> exercises the tiled causal-mask path

    key = jax.random.PRNGKey(0)
    k_x, *k_layers = jax.random.split(key, L + 1)
    x = jax.random.normal(k_x, (B, T, D), dtype=jnp.float32)
    layer_params = [_init_layer(k, D) for k in k_layers]

    encoder = jax.jit(functools.partial(openai_gpt_encoder,
                                        n_head=H, eps=eps, q_tile=q_tile))
    out = jax.block_until_ready(encoder(x, layer_params))

    # sanity check against pure-JAX f32 reference (kernel path is bf16 -> loose tol)
    ref = x
    for w in layer_params:
        ref = _block_ref(ref, w, H, eps)
    assert out.shape == (B, T, D)
    assert jnp.allclose(out.astype(jnp.float32), ref, rtol=5e-2, atol=5e-2), \
        "mismatch vs reference"

    print("KERNEL_OK")
</pallas_src>

<mosaic_0001>
module attributes {stable_mosaic.version = 11 : i64} {
  func.func @_qkv_proj_kernel(%arg0: i32, %arg1: i32, %arg2: memref<1x8x64xbf16, #tpu.memory_space<vmem>>, %arg3: memref<64x192xbf16, #tpu.memory_space<vmem>>, %arg4: memref<1x192xf32, #tpu.memory_space<vmem>>, %arg5: memref<1x8x192xbf16, #tpu.memory_space<vmem>>) attributes {dimension_semantics = [#tpu.dimension_semantics<parallel>, #tpu.dimension_semantics<parallel>], iteration_bounds = array<i64: 2, 2>, scalar_prefetch = 0 : i64, scratch_operands = 0 : i64, tpu.core_type = #tpu.core_type<tc>, window_params = [{transform_indices = @transform_0, window_bounds = array<i64: 1, 8, 64>}, {pipeline_mode = #tpu.pipeline_mode<synchronous>, transform_indices = @transform_1, window_bounds = array<i64: 64, 192>}, {pipeline_mode = #tpu.pipeline_mode<synchronous>, transform_indices = @transform_2, window_bounds = array<i64: 1, 192>}, {transform_indices = @transform_3, window_bounds = array<i64: 1, 8, 192>}]} {
    %c0 = arith.constant 0 : index
    %c0_0 = arith.constant 0 : index
    %c0_1 = arith.constant 0 : index
    %0 = vector.load %arg2[%c0, %c0_0, %c0_1] : memref<1x8x64xbf16, #tpu.memory_space<vmem>>, vector<1x8x64xbf16>
    %1 = vector.shape_cast %0 : vector<1x8x64xbf16> to vector<8x64xbf16>
    %c0_2 = arith.constant 0 : index
    %c0_3 = arith.constant 0 : index
    %2 = vector.load %arg3[%c0_2, %c0_3] : memref<64x192xbf16, #tpu.memory_space<vmem>>, vector<64x192xbf16>
    %cst = arith.constant dense<0.000000e+00> : vector<8x192xf32>
    %3 = tpu.matmul %1, %2, %cst {dimension_numbers = #tpu.dot_dimension_numbers<[1], [0], [0], [1], [0, 0, 1, 1], [], []>} : vector<8x64xbf16>, vector<64x192xbf16>, vector<8x192xf32> -> vector<8x192xf32>
    %c0_4 = arith.constant 0 : index
    %c0_5 = arith.constant 0 : index
    %4 = vector.load %arg4[%c0_4, %c0_5] : memref<1x192xf32, #tpu.memory_space<vmem>>, vector<1x192xf32>
    %5 = vector.broadcast %4 : vector<1x192xf32> to vector<8x192xf32>
    %6 = arith.addf %3, %5 : vector<8x192xf32>
    %7 = arith.truncf %6 : vector<8x192xf32> to vector<8x192xbf16>
    %c0_6 = arith.constant 0 : index
    %c0_7 = arith.constant 0 : index
    %c0_8 = arith.constant 0 : index
    %8 = vector.load %arg5[%c0_6, %c0_7, %c0_8] : memref<1x8x192xbf16, #tpu.memory_space<vmem>>, vector<1x8x192xbf16>
    %9 = vector.shape_cast %8 : vector<1x8x192xbf16> to vector<8x192xbf16>
    %10 = vector.shape_cast %7 : vector<8x192xbf16> to vector<1x8x192xbf16>
    tpu.vector_store %arg5[%c0_6, %c0_7, %c0_8], %10 {strides = array<i32>} : memref<1x8x192xbf16, #tpu.memory_space<vmem>>, vector<1x8x192xbf16>,
    return
  }
  func.func @transform_0(%arg0: i32, %arg1: i32) -> (i32, i32, i32) {
    %c0_i32 = arith.constant 0 : i32
    %c0_i32_0 = arith.constant 0 : i32
    return %arg0, %arg1, %c0_i32 : i32, i32, i32
  }
  func.func @transform_1(%arg0: i32, %arg1: i32) -> (i32, i32) {
    %c0_i32 = arith.constant 0 : i32
    %c0_i32_0 = arith.constant 0 : i32
    %c0_i32_1 = arith.constant 0 : i32
    return %c0_i32, %c0_i32_0 : i32, i32
  }
  func.func @transform_2(%arg0: i32, %arg1: i32) -> (i32, i32) {
    %c0_i32 = arith.constant 0 : i32
    %c0_i32_0 = arith.constant 0 : i32
    %c0_i32_1 = arith.constant 0 : i32
    return %c0_i32, %c0_i32_0 : i32, i32
  }
  func.func @transform_3(%arg0: i32, %arg1: i32) -> (i32, i32, i32) {
    %c0_i32 = arith.constant 0 : i32
    %c0_i32_0 = arith.constant 0 : i32
    return %arg0, %arg1, %c0_i32 : i32, i32, i32
  }
}

module attributes {stable_mosaic.version = 11 : i64} {
  func.func @_block_kernel(%arg0: i32, %arg1: i32, %arg2: memref<1x8x64xbf16, #tpu.memory_space<vmem>>, %arg3: memref<1x4x8x16xbf16, #tpu.memory_space<vmem>>, %arg4: memref<1x4x16x16xbf16, #tpu.memory_space<vmem>>, %arg5: memref<1x4x16x16xbf16, #tpu.memory_space<vmem>>, %arg6: memref<64x64xbf16, #tpu.memory_space<vmem>>, %arg7: memref<1x64xf32, #tpu.memory_space<vmem>>, %arg8: memref<1x64xf32, #tpu.memory_space<vmem>>, %arg9: memref<1x64xf32, #tpu.memory_space<vmem>>, %arg10: memref<64x256xbf16, #tpu.memory_space<vmem>>, %arg11: memref<1x256xf32, #tpu.memory_space<vmem>>, %arg12: memref<256x64xbf16, #tpu.memory_space<vmem>>, %arg13: memref<1x64xf32, #tpu.memory_space<vmem>>, %arg14: memref<1x64xf32, #tpu.memory_space<vmem>>, %arg15: memref<1x64xf32, #tpu.memory_space<vmem>>, %arg16: memref<1x8x64xbf16, #tpu.memory_space<vmem>>) attributes {dimension_semantics = [#tpu.dimension_semantics<parallel>, #tpu.dimension_semantics<parallel>], iteration_bounds = array<i64: 2, 2>, scalar_prefetch = 0 : i64, scratch_operands = 0 : i64, tpu.core_type = #tpu.core_type<tc>, window_params = [{transform_indices = @transform_0, window_bounds = array<i64: 1, 8, 64>}, {transform_indices = @transform_1, window_bounds = array<i64: 1, 4, 8, 16>}, {transform_indices = @transform_2, window_bounds = array<i64: 1, 4, 16, 16>}, {transform_indices = @transform_3, window_bounds = array<i64: 1, 4, 16, 16>}, {pipeline_mode = #tpu.pipeline_mode<synchronous>, transform_indices = @transform_4, window_bounds = array<i64: 64, 64>}, {pipeline_mode = #tpu.pipeline_mode<synchronous>, transform_indices = @transform_5, window_bounds = array<i64: 1, 64>}, {pipeline_mode = #tpu.pipeline_mode<synchronous>, transform_indices = @transform_6, window_bounds = array<i64: 1, 64>}, {pipeline_mode = #tpu.pipeline_mode<synchronous>, transform_indices = @transform_7, window_bounds = array<i64: 1, 64>}, {pipeline_mode = #tpu.pipeline_mode<synchronous>, transform_indices = @transform_8, window_bounds = array<i64: 64, 256>}, {pipeline_mode = #tpu.pipeline_mode<synchronous>, transform_indices = @transform_9, window_bounds = array<i64: 1, 256>}, {pipeline_mode = #tpu.pipeline_mode<synchronous>, transform_indices = @transform_10, window_bounds = array<i64: 256, 64>}, {pipeline_mode = #tpu.pipeline_mode<synchronous>, transform_indices = @transform_11, window_bounds = array<i64: 1, 64>}, {pipeline_mode = #tpu.pipeline_mode<synchronous>, transform_indices = @transform_12, window_bounds = array<i64: 1, 64>}, {pipeline_mode = #tpu.pipeline_mode<synchronous>, transform_indices = @transform_13, window_bounds = array<i64: 1, 64>}, {transform_indices = @transform_14, window_bounds = array<i64: 1, 8, 64>}]} {
    %c0 = arith.constant 0 : index
    %c0_0 = arith.constant 0 : index
    %c0_1 = arith.constant 0 : index
    %c0_2 = arith.constant 0 : index
    %0 = vector.load %arg3[%c0, %c0_0, %c0_1, %c0_2] : memref<1x4x8x16xbf16, #tpu.memory_space<vmem>>, vector<1x4x8x16xbf16>
    %1 = vector.shape_cast %0 : vector<1x4x8x16xbf16> to vector<4x8x16xbf16>
    %c0_3 = arith.constant 0 : index
    %c0_4 = arith.constant 0 : index
    %c0_5 = arith.constant 0 : index
    %c0_6 = arith.constant 0 : index
    %2 = vector.load %arg4[%c0_3, %c0_4, %c0_5, %c0_6] : memref<1x4x16x16xbf16, #tpu.memory_space<vmem>>, vector<1x4x16x16xbf16>
    %3 = vector.shape_cast %2 : vector<1x4x16x16xbf16> to vector<4x16x16xbf16>
    %c0_7 = arith.constant 0 : index
    %c0_8 = arith.constant 0 : index
    %c0_9 = arith.constant 0 : index
    %c0_10 = arith.constant 0 : index
    %4 = vector.load %arg5[%c0_7, %c0_8, %c0_9, %c0_10] : memref<1x4x16x16xbf16, #tpu.memory_space<vmem>>, vector<1x4x16x16xbf16>
    %5 = vector.shape_cast %4 : vector<1x4x16x16xbf16> to vector<4x16x16xbf16>
    %c0_11 = arith.constant 0 : index
    %c0_12 = arith.constant 0 : index
    %c0_13 = arith.constant 0 : index
    %6 = vector.load %arg2[%c0_11, %c0_12, %c0_13] : memref<1x8x64xbf16, #tpu.memory_space<vmem>>, vector<1x8x64xbf16>
    %7 = vector.shape_cast %6 : vector<1x8x64xbf16> to vector<8x64xbf16>
    %c8_i32 = arith.constant 8 : i32
    %8 = arith.muli %arg1, %c8_i32 : i32
    "tpu.trace_start"() <{level = 10 : i32, message = "hqd,hkd->hqk"}> : () -> ()
    %cst = arith.constant dense<0.000000e+00> : vector<4x8x16xf32>
    %9 = tpu.matmul %1, %3, %cst {dimension_numbers = #tpu.dot_dimension_numbers<[2], [2], [1], [1], [0, 0, 0, 1, 1, 1], [0], [0]>} : vector<4x8x16xbf16>, vector<4x16x16xbf16>, vector<4x8x16xf32> -> vector<4x8x16xf32>
    "tpu.trace_stop"() : () -> ()
    %10 = tpu.iota {dimensions = array<i32: 1>} : vector<4x8x16xi32>
    %11 = vector.broadcast %8 : i32 to vector<4x8x16xi32>
    %12 = arith.addi %10, %11 : vector<4x8x16xi32>
    %13 = tpu.iota {dimensions = array<i32: 2>} : vector<4x8x16xi32>
    %14 = arith.cmpi sle, %13, %12 : vector<4x8x16xi32>
    %cst_14 = arith.constant -1.000000e+09 : f32
    %15 = vector.broadcast %cst_14 : f32 to vector<4x8x16xf32>
    %16 = arith.select %14, %9, %15 : vector<4x8x16xi1>, vector<4x8x16xf32>
    %cst_15 = arith.constant dense<0xFF800000> : vector<4x8xf32>
    %17 = vector.multi_reduction <maximumf>, %16, %cst_15 [2] : vector<4x8x16xf32> to vector<4x8xf32>
    %18 = vector.shape_cast %17 : vector<4x8xf32> to vector<4x8x1xf32>
    %19 = vector.broadcast %18 : vector<4x8x1xf32> to vector<4x8x16xf32>
    %20 = arith.subf %16, %19 : vector<4x8x16xf32>
    %21 = math.exp %20 : vector<4x8x16xf32>
    %cst_16 = arith.constant dense<0.000000e+00> : vector<4x8xf32>
    %22 = vector.multi_reduction <add>, %21, %cst_16 [2] : vector<4x8x16xf32> to vector<4x8xf32>
    %23 = vector.shape_cast %22 : vector<4x8xf32> to vector<4x8x1xf32>
    %24 = tpu.reciprocal %23 {approx = true} : vector<4x8x1xf32> -> vector<4x8x1xf32>
    %25 = vector.broadcast %24 : vector<4x8x1xf32> to vector<4x8x16xf32>
    %26 = arith.mulf %21, %25 : vector<4x8x16xf32>
    %27 = arith.truncf %26 : vector<4x8x16xf32> to vector<4x8x16xbf16>
    "tpu.trace_start"() <{level = 10 : i32, message = "hqk,hkd->hqd"}> : () -> ()
    %cst_17 = arith.constant dense<0.000000e+00> : vector<4x8x16xf32>
    %28 = tpu.matmul %27, %5, %cst_17 {dimension_numbers = #tpu.dot_dimension_numbers<[2], [1], [1], [2], [0, 0, 0, 1, 1, 2], [0], [0]>} : vector<4x8x16xbf16>, vector<4x16x16xbf16>, vector<4x8x16xf32> -> vector<4x8x16xf32>
    "tpu.trace_stop"() : () -> ()
    %29 = tpu.transpose %28, [1, 0, 2] : vector<4x8x16xf32> -> vector<8x4x16xf32>
    %30 = vector.shape_cast %29 : vector<8x4x16xf32> to vector<8x64xf32>
    %31 = arith.truncf %30 : vector<8x64xf32> to vector<8x64xbf16>
    %c0_18 = arith.constant 0 : index
    %c0_19 = arith.constant 0 : index
    %32 = vector.load %arg6[%c0_18, %c0_19] : memref<64x64xbf16, #tpu.memory_space<vmem>>, vector<64x64xbf16>
    %cst_20 = arith.constant dense<0.000000e+00> : vector<8x64xf32>
    %33 = tpu.matmul %31, %32, %cst_20 {dimension_numbers = #tpu.dot_dimension_numbers<[1], [0], [0], [1], [0, 0, 1, 1], [], []>} : vector<8x64xbf16>, vector<64x64xbf16>, vector<8x64xf32> -> vector<8x64xf32>
    %c0_21 = arith.constant 0 : index
    %c0_22 = arith.constant 0 : index
    %34 = vector.load %arg7[%c0_21, %c0_22] : memref<1x64xf32, #tpu.memory_space<vmem>>, vector<1x64xf32>
    %35 = vector.broadcast %34 : vector<1x64xf32> to vector<8x64xf32>
    %36 = arith.addf %33, %35 : vector<8x64xf32>
    %37 = arith.extf %7 : vector<8x64xbf16> to vector<8x64xf32>
    %38 = arith.addf %37, %36 : vector<8x64xf32>
    %c0_23 = arith.constant 0 : index
    %c0_24 = arith.constant 0 : index
    %39 = vector.load %arg8[%c0_23, %c0_24] : memref<1x64xf32, #tpu.memory_space<vmem>>, vector<1x64xf32>
    %c0_25 = arith.constant 0 : index
    %c0_26 = arith.constant 0 : index
    %40 = vector.load %arg9[%c0_25, %c0_26] : memref<1x64xf32, #tpu.memory_space<vmem>>, vector<1x64xf32>
    %cst_27 = arith.constant dense<0.000000e+00> : vector<8xf32>
    %41 = vector.multi_reduction <add>, %38, %cst_27 [1] : vector<8x64xf32> to vector<8xf32>
    %42 = vector.shape_cast %41 : vector<8xf32> to vector<8x1xf32>
    %cst_28 = arith.constant 6.400000e+01 : f32
    %43 = vector.broadcast %cst_28 : f32 to vector<8x1xf32>
    %44 = arith.divf %42, %43 : vector<8x1xf32>
    %45 = vector.broadcast %44 : vector<8x1xf32> to vector<8x64xf32>
    %46 = arith.subf %38, %45 : vector<8x64xf32>
    %47 = arith.mulf %46, %46 : vector<8x64xf32>
    %cst_29 = arith.constant dense<0.000000e+00> : vector<8xf32>
    %48 = vector.multi_reduction <add>, %47, %cst_29 [1] : vector<8x64xf32> to vector<8xf32>
    %49 = vector.shape_cast %48 : vector<8xf32> to vector<8x1xf32>
    %cst_30 = arith.constant 6.400000e+01 : f32
    %50 = vector.broadcast %cst_30 : f32 to vector<8x1xf32>
    %51 = arith.divf %49, %50 : vector<8x1xf32>
    %cst_31 = arith.constant 9.99999974E-6 : f32
    %52 = vector.broadcast %cst_31 : f32 to vector<8x1xf32>
    %53 = arith.addf %51, %52 : vector<8x1xf32>
    %54 = math.rsqrt %53 : vector<8x1xf32>
    %55 = vector.broadcast %54 : vector<8x1xf32> to vector<8x64xf32>
    %56 = arith.mulf %46, %55 : vector<8x64xf32>
    %57 = vector.broadcast %39 : vector<1x64xf32> to vector<8x64xf32>
    %58 = arith.mulf %57, %56 : vector<8x64xf32>
    %59 = vector.broadcast %40 : vector<1x64xf32> to vector<8x64xf32>
    %60 = arith.addf %58, %59 : vector<8x64xf32>
    %61 = arith.truncf %60 : vector<8x64xf32> to vector<8x64xbf16>
    %c0_32 = arith.constant 0 : index
    %c0_33 = arith.constant 0 : index
    %62 = vector.load %arg10[%c0_32, %c0_33] : memref<64x256xbf16, #tpu.memory_space<vmem>>, vector<64x256xbf16>
    %cst_34 = arith.constant dense<0.000000e+00> : vector<8x256xf32>
    %63 = tpu.matmul %61, %62, %cst_34 {dimension_numbers = #tpu.dot_dimension_numbers<[1], [0], [0], [1], [0, 0, 1, 1], [], []>} : vector<8x64xbf16>, vector<64x256xbf16>, vector<8x256xf32> -> vector<8x256xf32>
    %c0_35 = arith.constant 0 : index
    %c0_36 = arith.constant 0 : index
    %64 = vector.load %arg11[%c0_35, %c0_36] : memref<1x256xf32, #tpu.memory_space<vmem>>, vector<1x256xf32>
    %65 = vector.broadcast %64 : vector<1x256xf32> to vector<8x256xf32>
    %66 = arith.addf %63, %65 : vector<8x256xf32>
    %cst_37 = arith.constant 5.000000e-01 : f32
    %67 = vector.broadcast %cst_37 : f32 to vector<8x256xf32>
    %68 = arith.mulf %67, %66 : vector<8x256xf32>
    %cst_38 = arith.constant 4.471500e-02 : f32
    %69 = vector.broadcast %cst_38 : f32 to vector<8x256xf32>
    %70 = arith.mulf %69, %66 : vector<8x256xf32>
    %71 = arith.mulf %70, %66 : vector<8x256xf32>
    %72 = arith.mulf %71, %66 : vector<8x256xf32>
    %73 = arith.addf %66, %72 : vector<8x256xf32>
    %cst_39 = arith.constant 0.797884583 : f32
    %74 = vector.broadcast %cst_39 : f32 to vector<8x256xf32>
    %75 = arith.mulf %74, %73 : vector<8x256xf32>
    %76 = math.tanh %75 : vector<8x256xf32>
    %cst_40 = arith.constant 1.000000e+00 : f32
    %77 = vector.broadcast %cst_40 : f32 to vector<8x256xf32>
    %78 = arith.addf %77, %76 : vector<8x256xf32>
    %79 = arith.mulf %68, %78 : vector<8x256xf32>
    %80 = arith.truncf %79 : vector<8x256xf32> to vector<8x256xbf16>
    %c0_41 = arith.constant 0 : index
    %c0_42 = arith.constant 0 : index
    %81 = vector.load %arg12[%c0_41, %c0_42] : memref<256x64xbf16, #tpu.memory_space<vmem>>, vector<256x64xbf16>
    %cst_43 = arith.constant dense<0.000000e+00> : vector<8x64xf32>
    %82 = tpu.matmul %80, %81, %cst_43 {dimension_numbers = #tpu.dot_dimension_numbers<[1], [0], [0], [1], [0, 0, 1, 1], [], []>} : vector<8x256xbf16>, vector<256x64xbf16>, vector<8x64xf32> -> vector<8x64xf32>
    %c0_44 = arith.constant 0 : index
    %c0_45 = arith.constant 0 : index
    %83 = vector.load %arg13[%c0_44, %c0_45] : memref<1x64xf32, #tpu.memory_space<vmem>>, vector<1x64xf32>
    %84 = vector.broadcast %83 : vector<1x64xf32> to vector<8x64xf32>
    %85 = arith.addf %82, %84 : vector<8x64xf32>
    %86 = arith.addf %60, %85 : vector<8x64xf32>
    %c0_46 = arith.constant 0 : index
    %c0_47 = arith.constant 0 : index
    %87 = vector.load %arg14[%c0_46, %c0_47] : memref<1x64xf32, #tpu.memory_space<vmem>>, vector<1x64xf32>
    %c0_48 = arith.constant 0 : index
    %c0_49 = arith.constant 0 : index
    %88 = vector.load %arg15[%c0_48, %c0_49] : memref<1x64xf32, #tpu.memory_space<vmem>>, vector<1x64xf32>
    %cst_50 = arith.constant dense<0.000000e+00> : vector<8xf32>
    %89 = vector.multi_reduction <add>, %86, %cst_50 [1] : vector<8x64xf32> to vector<8xf32>
    %90 = vector.shape_cast %89 : vector<8xf32> to vector<8x1xf32>
    %cst_51 = arith.constant 6.400000e+01 : f32
    %91 = vector.broadcast %cst_51 : f32 to vector<8x1xf32>
    %92 = arith.divf %90, %91 : vector<8x1xf32>
    %93 = vector.broadcast %92 : vector<8x1xf32> to vector<8x64xf32>
    %94 = arith.subf %86, %93 : vector<8x64xf32>
    %95 = arith.mulf %94, %94 : vector<8x64xf32>
    %cst_52 = arith.constant dense<0.000000e+00> : vector<8xf32>
    %96 = vector.multi_reduction <add>, %95, %cst_52 [1] : vector<8x64xf32> to vector<8xf32>
    %97 = vector.shape_cast %96 : vector<8xf32> to vector<8x1xf32>
    %cst_53 = arith.constant 6.400000e+01 : f32
    %98 = vector.broadcast %cst_53 : f32 to vector<8x1xf32>
    %99 = arith.divf %97, %98 : vector<8x1xf32>
    %cst_54 = arith.constant 9.99999974E-6 : f32
    %100 = vector.broadcast %cst_54 : f32 to vector<8x1xf32>
    %101 = arith.addf %99, %100 : vector<8x1xf32>
    %102 = math.rsqrt %101 : vector<8x1xf32>
    %103 = vector.broadcast %102 : vector<8x1xf32> to vector<8x64xf32>
    %104 = arith.mulf %94, %103 : vector<8x64xf32>
    %105 = vector.broadcast %87 : vector<1x64xf32> to vector<8x64xf32>
    %106 = arith.mulf %105, %104 : vector<8x64xf32>
    %107 = vector.broadcast %88 : vector<1x64xf32> to vector<8x64xf32>
    %108 = arith.addf %106, %107 : vector<8x64xf32>
    %109 = arith.truncf %108 : vector<8x64xf32> to vector<8x64xbf16>
    %c0_55 = arith.constant 0 : index
    %c0_56 = arith.constant 0 : index
    %c0_57 = arith.constant 0 : index
    %110 = vector.load %arg16[%c0_55, %c0_56, %c0_57] : memref<1x8x64xbf16, #tpu.memory_space<vmem>>, vector<1x8x64xbf16>
    %111 = vector.shape_cast %110 : vector<1x8x64xbf16> to vector<8x64xbf16>
    %112 = vector.shape_cast %109 : vector<8x64xbf16> to vector<1x8x64xbf16>
    tpu.vector_store %arg16[%c0_55, %c0_56, %c0_57], %112 {strides = array<i32>} : memref<1x8x64xbf16, #tpu.memory_space<vmem>>, vector<1x8x64xbf16>,
    return
  }
  func.func @transform_0(%arg0: i32, %arg1: i32) -> (i32, i32, i32) {
    %c0_i32 = arith.constant 0 : i32
    %c0_i32_0 = arith.constant 0 : i32
    return %arg0, %arg1, %c0_i32 : i32, i32, i32
  }
  func.func @transform_1(%arg0: i32, %arg1: i32) -> (i32, i32, i32, i32) {
    %c0_i32 = arith.constant 0 : i32
    %c0_i32_0 = arith.constant 0 : i32
    %c0_i32_1 = arith.constant 0 : i32
    return %arg0, %c0_i32, %arg1, %c0_i32_0 : i32, i32, i32, i32
  }
  func.func @transform_2(%arg0: i32, %arg1: i32) -> (i32, i32, i32, i32) {
    %c0_i32 = arith.constant 0 : i32
    %c0_i32_0 = arith.constant 0 : i32
    %c0_i32_1 = arith.constant 0 : i32
    %c0_i32_2 = arith.constant 0 : i32
    return %arg0, %c0_i32, %c0_i32_0, %c0_i32_1 : i32, i32, i32, i32
  }
  func.func @transform_3(%arg0: i32, %arg1: i32) -> (i32, i32, i32, i32) {
    %c0_i32 = arith.constant 0 : i32
    %c0_i32_0 = arith.constant 0 : i32
    %c0_i32_1 = arith.constant 0 : i32
    %c0_i32_2 = arith.constant 0 : i32
    return %arg0, %c0_i32, %c0_i32_0, %c0_i32_1 : i32, i32, i32, i32
  }
  func.func @transform_4(%arg0: i32, %arg1: i32) -> (i32, i32) {
    %c0_i32 = arith.constant 0 : i32
    %c0_i32_0 = arith.constant 0 : i32
    %c0_i32_1 = arith.constant 0 : i32
    return %c0_i32, %c0_i32_0 : i32, i32
  }
  func.func @transform_5(%arg0: i32, %arg1: i32) -> (i32, i32) {
    %c0_i32 = arith.constant 0 : i32
    %c0_i32_0 = arith.constant 0 : i32
    %c0_i32_1 = arith.constant 0 : i32
    return %c0_i32, %c0_i32_0 : i32, i32
  }
  func.func @transform_6(%arg0: i32, %arg1: i32) -> (i32, i32) {
    %c0_i32 = arith.constant 0 : i32
    %c0_i32_0 = arith.constant 0 : i32
    %c0_i32_1 = arith.constant 0 : i32
    return %c0_i32, %c0_i32_0 : i32, i32
  }
  func.func @transform_7(%arg0: i32, %arg1: i32) -> (i32, i32) {
    %c0_i32 = arith.constant 0 : i32
    %c0_i32_0 = arith.constant 0 : i32
    %c0_i32_1 = arith.constant 0 : i32
    return %c0_i32, %c0_i32_0 : i32, i32
  }
  func.func @transform_8(%arg0: i32, %arg1: i32) -> (i32, i32) {
    %c0_i32 = arith.constant 0 : i32
    %c0_i32_0 = arith.constant 0 : i32
    %c0_i32_1 = arith.constant 0 : i32
    return %c0_i32, %c0_i32_0 : i32, i32
  }
  func.func @transform_9(%arg0: i32, %arg1: i32) -> (i32, i32) {
    %c0_i32 = arith.constant 0 : i32
    %c0_i32_0 = arith.constant 0 : i32
    %c0_i32_1 = arith.constant 0 : i32
    return %c0_i32, %c0_i32_0 : i32, i32
  }
  func.func @transform_10(%arg0: i32, %arg1: i32) -> (i32, i32) {
    %c0_i32 = arith.constant 0 : i32
    %c0_i32_0 = arith.constant 0 : i32
    %c0_i32_1 = arith.constant 0 : i32
    return %c0_i32, %c0_i32_0 : i32, i32
  }
  func.func @transform_11(%arg0: i32, %arg1: i32) -> (i32, i32) {
    %c0_i32 = arith.constant 0 : i32
    %c0_i32_0 = arith.constant 0 : i32
    %c0_i32_1 = arith.constant 0 : i32
    return %c0_i32, %c0_i32_0 : i32, i32
  }
  func.func @transform_12(%arg0: i32, %arg1: i32) -> (i32, i32) {
    %c0_i32 = arith.constant 0 : i32
    %c0_i32_0 = arith.constant 0 : i32
    %c0_i32_1 = arith.constant 0 : i32
    return %c0_i32, %c0_i32_0 : i32, i32
  }
  func.func @transform_13(%arg0: i32, %arg1: i32) -> (i32, i32) {
    %c0_i32 = arith.constant 0 : i32
    %c0_i32_0 = arith.constant 0 : i32
    %c0_i32_1 = arith.constant 0 : i32
    return %c0_i32, %c0_i32_0 : i32, i32
  }
  func.func @transform_14(%arg0: i32, %arg1: i32) -> (i32, i32, i32) {
    %c0_i32 = arith.constant 0 : i32
    %c0_i32_0 = arith.constant 0 : i32
    return %arg0, %arg1, %c0_i32 : i32, i32, i32
  }
}

module attributes {stable_mosaic.version = 11 : i64} {
  func.func @_block_kernel(%arg0: i32, %arg1: i32, %arg2: memref<1x8x64xbf16, #tpu.memory_space<vmem>>, %arg3: memref<1x4x8x16xbf16, #tpu.memory_space<vmem>>, %arg4: memref<1x4x16x16xbf16, #tpu.memory_space<vmem>>, %arg5: memref<1x4x16x16xbf16, #tpu.memory_space<vmem>>, %arg6: memref<64x64xbf16, #tpu.memory_space<vmem>>, %arg7: memref<1x64xf32, #tpu.memory_space<vmem>>, %arg8: memref<1x64xf32, #tpu.memory_space<vmem>>, %arg9: memref<1x64xf32, #tpu.memory_space<vmem>>, %arg10: memref<64x256xbf16, #tpu.memory_space<vmem>>, %arg11: memref<1x256xf32, #tpu.memory_space<vmem>>, %arg12: memref<256x64xbf16, #tpu.memory_space<vmem>>, %arg13: memref<1x64xf32, #tpu.memory_space<vmem>>, %arg14: memref<1x64xf32, #tpu.memory_space<vmem>>, %arg15: memref<1x64xf32, #tpu.memory_space<vmem>>, %arg16: memref<1x8x64xbf16, #tpu.memory_space<vmem>>) attributes {dimension_semantics = [#tpu.dimension_semantics<parallel>, #tpu.dimension_semantics<parallel>], iteration_bounds = array<i64: 2, 2>, scalar_prefetch = 0 : i64, scratch_operands = 0 : i64, tpu.core_type = #tpu.core_type<tc>, window_params = [{transform_indices = @transform_0, window_bounds = array<i64: 1, 8, 64>}, {transform_indices = @transform_1, window_bounds = array<i64: 1, 4, 8, 16>}, {transform_indices = @transform_2, window_bounds = array<i64: 1, 4, 16, 16>}, {transform_indices = @transform_3, window_bounds = array<i64: 1, 4, 16, 16>}, {pipeline_mode = #tpu.pipeline_mode<synchronous>, transform_indices = @transform_4, window_bounds = array<i64: 64, 64>}, {pipeline_mode = #tpu.pipeline_mode<synchronous>, transform_indices = @transform_5, window_bounds = array<i64: 1, 64>}, {pipeline_mode = #tpu.pipeline_mode<synchronous>, transform_indices = @transform_6, window_bounds = array<i64: 1, 64>}, {pipeline_mode = #tpu.pipeline_mode<synchronous>, transform_indices = @transform_7, window_bounds = array<i64: 1, 64>}, {pipeline_mode = #tpu.pipeline_mode<synchronous>, transform_indices = @transform_8, window_bounds = array<i64: 64, 256>}, {pipeline_mode = #tpu.pipeline_mode<synchronous>, transform_indices = @transform_9, window_bounds = array<i64: 1, 256>}, {pipeline_mode = #tpu.pipeline_mode<synchronous>, transform_indices = @transform_10, window_bounds = array<i64: 256, 64>}, {pipeline_mode = #tpu.pipeline_mode<synchronous>, transform_indices = @transform_11, window_bounds = array<i64: 1, 64>}, {pipeline_mode = #tpu.pipeline_mode<synchronous>, transform_indices = @transform_12, window_bounds = array<i64: 1, 64>}, {pipeline_mode = #tpu.pipeline_mode<synchronous>, transform_indices = @transform_13, window_bounds = array<i64: 1, 64>}, {transform_indices = @transform_14, window_bounds = array<i64: 1, 8, 64>}]} {
    %c0 = arith.constant 0 : index
    %c0_0 = arith.constant 0 : index
    %c0_1 = arith.constant 0 : index
    %c0_2 = arith.constant 0 : index
    %0 = vector.load %arg3[%c0, %c0_0, %c0_1, %c0_2] : memref<1x4x8x16xbf16, #tpu.memory_space<vmem>>, vector<1x4x8x16xbf16>
    %1 = vector.shape_cast %0 : vector<1x4x8x16xbf16> to vector<4x8x16xbf16>
    %c0_3 = arith.constant 0 : index
    %c0_4 = arith.constant 0 : index
    %c0_5 = arith.constant 0 : index
    %c0_6 = arith.constant 0 : index
    %2 = vector.load %arg4[%c0_3, %c0_4, %c0_5, %c0_6] : memref<1x4x16x16xbf16, #tpu.memory_space<vmem>>, vector<1x4x16x16xbf16>
    %3 = vector.shape_cast %2 : vector<1x4x16x16xbf16> to vector<4x16x16xbf16>
    %c0_7 = arith.constant 0 : index
    %c0_8 = arith.constant 0 : index
    %c0_9 = arith.constant 0 : index
    %c0_10 = arith.constant 0 : index
    %4 = vector.load %arg5[%c0_7, %c0_8, %c0_9, %c0_10] : memref<1x4x16x16xbf16, #tpu.memory_space<vmem>>, vector<1x4x16x16xbf16>
    %5 = vector.shape_cast %4 : vector<1x4x16x16xbf16> to vector<4x16x16xbf16>
    %c0_11 = arith.constant 0 : index
    %c0_12 = arith.constant 0 : index
    %c0_13 = arith.constant 0 : index
    %6 = vector.load %arg2[%c0_11, %c0_12, %c0_13] : memref<1x8x64xbf16, #tpu.memory_space<vmem>>, vector<1x8x64xbf16>
    %7 = vector.shape_cast %6 : vector<1x8x64xbf16> to vector<8x64xbf16>
    %c8_i32 = arith.constant 8 : i32
    %8 = arith.muli %arg1, %c8_i32 : i32
    "tpu.trace_start"() <{level = 10 : i32, message = "hqd,hkd->hqk"}> : () -> ()
    %cst = arith.constant dense<0.000000e+00> : vector<4x8x16xf32>
    %9 = tpu.matmul %1, %3, %cst {dimension_numbers = #tpu.dot_dimension_numbers<[2], [2], [1], [1], [0, 0, 0, 1, 1, 1], [0], [0]>} : vector<4x8x16xbf16>, vector<4x16x16xbf16>, vector<4x8x16xf32> -> vector<4x8x16xf32>
    "tpu.trace_stop"() : () -> ()
    %10 = tpu.iota {dimensions = array<i32: 1>} : vector<4x8x16xi32>
    %11 = vector.broadcast %8 : i32 to vector<4x8x16xi32>
    %12 = arith.addi %10, %11 : vector<4x8x16xi32>
    %13 = tpu.iota {dimensions = array<i32: 2>} : vector<4x8x16xi32>
    %14 = arith.cmpi sle, %13, %12 : vector<4x8x16xi32>
    %cst_14 = arith.constant -1.000000e+09 : f32
    %15 = vector.broadcast %cst_14 : f32 to vector<4x8x16xf32>
    %16 = arith.select %14, %9, %15 : vector<4x8x16xi1>, vector<4x8x16xf32>
    %cst_15 = arith.constant dense<0xFF800000> : vector<4x8xf32>
    %17 = vector.multi_reduction <maximumf>, %16, %cst_15 [2] : vector<4x8x16xf32> to vector<4x8xf32>
    %18 = vector.shape_cast %17 : vector<4x8xf32> to vector<4x8x1xf32>
    %19 = vector.broadcast %18 : vector<4x8x1xf32> to vector<4x8x16xf32>
    %20 = arith.subf %16, %19 : vector<4x8x16xf32>
    %21 = math.exp %20 : vector<4x8x16xf32>
    %cst_16 = arith.constant dense<0.000000e+00> : vector<4x8xf32>
    %22 = vector.multi_reduction <add>, %21, %cst_16 [2] : vector<4x8x16xf32> to vector<4x8xf32>
    %23 = vector.shape_cast %22 : vector<4x8xf32> to vector<4x8x1xf32>
    %24 = tpu.reciprocal %23 {approx = true} : vector<4x8x1xf32> -> vector<4x8x1xf32>
    %25 = vector.broadcast %24 : vector<4x8x1xf32> to vector<4x8x16xf32>
    %26 = arith.mulf %21, %25 : vector<4x8x16xf32>
    %27 = arith.truncf %26 : vector<4x8x16xf32> to vector<4x8x16xbf16>
    "tpu.trace_start"() <{level = 10 : i32, message = "hqk,hkd->hqd"}> : () -> ()
    %cst_17 = arith.constant dense<0.000000e+00> : vector<4x8x16xf32>
    %28 = tpu.matmul %27, %5, %cst_17 {dimension_numbers = #tpu.dot_dimension_numbers<[2], [1], [1], [2], [0, 0, 0, 1, 1, 2], [0], [0]>} : vector<4x8x16xbf16>, vector<4x16x16xbf16>, vector<4x8x16xf32> -> vector<4x8x16xf32>
    "tpu.trace_stop"() : () -> ()
    %29 = tpu.transpose %28, [1, 0, 2] : vector<4x8x16xf32> -> vector<8x4x16xf32>
    %30 = vector.shape_cast %29 : vector<8x4x16xf32> to vector<8x64xf32>
    %31 = arith.truncf %30 : vector<8x64xf32> to vector<8x64xbf16>
    %c0_18 = arith.constant 0 : index
    %c0_19 = arith.constant 0 : index
    %32 = vector.load %arg6[%c0_18, %c0_19] : memref<64x64xbf16, #tpu.memory_space<vmem>>, vector<64x64xbf16>
    %cst_20 = arith.constant dense<0.000000e+00> : vector<8x64xf32>
    %33 = tpu.matmul %31, %32, %cst_20 {dimension_numbers = #tpu.dot_dimension_numbers<[1], [0], [0], [1], [0, 0, 1, 1], [], []>} : vector<8x64xbf16>, vector<64x64xbf16>, vector<8x64xf32> -> vector<8x64xf32>
    %c0_21 = arith.constant 0 : index
    %c0_22 = arith.constant 0 : index
    %34 = vector.load %arg7[%c0_21, %c0_22] : memref<1x64xf32, #tpu.memory_space<vmem>>, vector<1x64xf32>
    %35 = vector.broadcast %34 : vector<1x64xf32> to vector<8x64xf32>
    %36 = arith.addf %33, %35 : vector<8x64xf32>
    %37 = arith.extf %7 : vector<8x64xbf16> to vector<8x64xf32>
    %38 = arith.addf %37, %36 : vector<8x64xf32>
    %c0_23 = arith.constant 0 : index
    %c0_24 = arith.constant 0 : index
    %39 = vector.load %arg8[%c0_23, %c0_24] : memref<1x64xf32, #tpu.memory_space<vmem>>, vector<1x64xf32>
    %c0_25 = arith.constant 0 : index
    %c0_26 = arith.constant 0 : index
    %40 = vector.load %arg9[%c0_25, %c0_26] : memref<1x64xf32, #tpu.memory_space<vmem>>, vector<1x64xf32>
    %cst_27 = arith.constant dense<0.000000e+00> : vector<8xf32>
    %41 = vector.multi_reduction <add>, %38, %cst_27 [1] : vector<8x64xf32> to vector<8xf32>
    %42 = vector.shape_cast %41 : vector<8xf32> to vector<8x1xf32>
    %cst_28 = arith.constant 6.400000e+01 : f32
    %43 = vector.broadcast %cst_28 : f32 to vector<8x1xf32>
    %44 = arith.divf %42, %43 : vector<8x1xf32>
    %45 = vector.broadcast %44 : vector<8x1xf32> to vector<8x64xf32>
    %46 = arith.subf %38, %45 : vector<8x64xf32>
    %47 = arith.mulf %46, %46 : vector<8x64xf32>
    %cst_29 = arith.constant dense<0.000000e+00> : vector<8xf32>
    %48 = vector.multi_reduction <add>, %47, %cst_29 [1] : vector<8x64xf32> to vector<8xf32>
    %49 = vector.shape_cast %48 : vector<8xf32> to vector<8x1xf32>
    %cst_30 = arith.constant 6.400000e+01 : f32
    %50 = vector.broadcast %cst_30 : f32 to vector<8x1xf32>
    %51 = arith.divf %49, %50 : vector<8x1xf32>
    %cst_31 = arith.constant 9.99999974E-6 : f32
    %52 = vector.broadcast %cst_31 : f32 to vector<8x1xf32>
    %53 = arith.addf %51, %52 : vector<8x1xf32>
    %54 = math.rsqrt %53 : vector<8x1xf32>
    %55 = vector.broadcast %54 : vector<8x1xf32> to vector<8x64xf32>
    %56 = arith.mulf %46, %55 : vector<8x64xf32>
    %57 = vector.broadcast %39 : vector<1x64xf32> to vector<8x64xf32>
    %58 = arith.mulf %57, %56 : vector<8x64xf32>
    %59 = vector.broadcast %40 : vector<1x64xf32> to vector<8x64xf32>
    %60 = arith.addf %58, %59 : vector<8x64xf32>
    %61 = arith.truncf %60 : vector<8x64xf32> to vector<8x64xbf16>
    %c0_32 = arith.constant 0 : index
    %c0_33 = arith.constant 0 : index
    %62 = vector.load %arg10[%c0_32, %c0_33] : memref<64x256xbf16, #tpu.memory_space<vmem>>, vector<64x256xbf16>
    %cst_34 = arith.constant dense<0.000000e+00> : vector<8x256xf32>
    %63 = tpu.matmul %61, %62, %cst_34 {dimension_numbers = #tpu.dot_dimension_numbers<[1], [0], [0], [1], [0, 0, 1, 1], [], []>} : vector<8x64xbf16>, vector<64x256xbf16>, vector<8x256xf32> -> vector<8x256xf32>
    %c0_35 = arith.constant 0 : index
    %c0_36 = arith.constant 0 : index
    %64 = vector.load %arg11[%c0_35, %c0_36] : memref<1x256xf32, #tpu.memory_space<vmem>>, vector<1x256xf32>
    %65 = vector.broadcast %64 : vector<1x256xf32> to vector<8x256xf32>
    %66 = arith.addf %63, %65 : vector<8x256xf32>
    %cst_37 = arith.constant 5.000000e-01 : f32
    %67 = vector.broadcast %cst_37 : f32 to vector<8x256xf32>
    %68 = arith.mulf %67, %66 : vector<8x256xf32>
    %cst_38 = arith.constant 4.471500e-02 : f32
    %69 = vector.broadcast %cst_38 : f32 to vector<8x256xf32>
    %70 = arith.mulf %69, %66 : vector<8x256xf32>
    %71 = arith.mulf %70, %66 : vector<8x256xf32>
    %72 = arith.mulf %71, %66 : vector<8x256xf32>
    %73 = arith.addf %66, %72 : vector<8x256xf32>
    %cst_39 = arith.constant 0.797884583 : f32
    %74 = vector.broadcast %cst_39 : f32 to vector<8x256xf32>
    %75 = arith.mulf %74, %73 : vector<8x256xf32>
    %76 = math.tanh %75 : vector<8x256xf32>
    %cst_40 = arith.constant 1.000000e+00 : f32
    %77 = vector.broadcast %cst_40 : f32 to vector<8x256xf32>
    %78 = arith.addf %77, %76 : vector<8x256xf32>
    %79 = arith.mulf %68, %78 : vector<8x256xf32>
    %80 = arith.truncf %79 : vector<8x256xf32> to vector<8x256xbf16>
    %c0_41 = arith.constant 0 : index
    %c0_42 = arith.constant 0 : index
    %81 = vector.load %arg12[%c0_41, %c0_42] : memref<256x64xbf16, #tpu.memory_space<vmem>>, vector<256x64xbf16>
    %cst_43 = arith.constant dense<0.000000e+00> : vector<8x64xf32>
    %82 = tpu.matmul %80, %81, %cst_43 {dimension_numbers = #tpu.dot_dimension_numbers<[1], [0], [0], [1], [0, 0, 1, 1], [], []>} : vector<8x256xbf16>, vector<256x64xbf16>, vector<8x64xf32> -> vector<8x64xf32>
    %c0_44 = arith.constant 0 : index
    %c0_45 = arith.constant 0 : index
    %83 = vector.load %arg13[%c0_44, %c0_45] : memref<1x64xf32, #tpu.memory_space<vmem>>, vector<1x64xf32>
    %84 = vector.broadcast %83 : vector<1x64xf32> to vector<8x64xf32>
    %85 = arith.addf %82, %84 : vector<8x64xf32>
    %86 = arith.addf %60, %85 : vector<8x64xf32>
    %c0_46 = arith.constant 0 : index
    %c0_47 = arith.constant 0 : index
    %87 = vector.load %arg14[%c0_46, %c0_47] : memref<1x64xf32, #tpu.memory_space<vmem>>, vector<1x64xf32>
    %c0_48 = arith.constant 0 : index
    %c0_49 = arith.constant 0 : index
    %88 = vector.load %arg15[%c0_48, %c0_49] : memref<1x64xf32, #tpu.memory_space<vmem>>, vector<1x64xf32>
    %cst_50 = arith.constant dense<0.000000e+00> : vector<8xf32>
    %89 = vector.multi_reduction <add>, %86, %cst_50 [1] : vector<8x64xf32> to vector<8xf32>
    %90 = vector.shape_cast %89 : vector<8xf32> to vector<8x1xf32>
    %cst_51 = arith.constant 6.400000e+01 : f32
    %91 = vector.broadcast %cst_51 : f32 to vector<8x1xf32>
    %92 = arith.divf %90, %91 : vector<8x1xf32>
    %93 = vector.broadcast %92 : vector<8x1xf32> to vector<8x64xf32>
    %94 = arith.subf %86, %93 : vector<8x64xf32>
    %95 = arith.mulf %94, %94 : vector<8x64xf32>
    %cst_52 = arith.constant dense<0.000000e+00> : vector<8xf32>
    %96 = vector.multi_reduction <add>, %95, %cst_52 [1] : vector<8x64xf32> to vector<8xf32>
    %97 = vector.shape_cast %96 : vector<8xf32> to vector<8x1xf32>
    %cst_53 = arith.constant 6.400000e+01 : f32
    %98 = vector.broadcast %cst_53 : f32 to vector<8x1xf32>
    %99 = arith.divf %97, %98 : vector<8x1xf32>
    %cst_54 = arith.constant 9.99999974E-6 : f32
    %100 = vector.broadcast %cst_54 : f32 to vector<8x1xf32>
    %101 = arith.addf %99, %100 : vector<8x1xf32>
    %102 = math.rsqrt %101 : vector<8x1xf32>
    %103 = vector.broadcast %102 : vector<8x1xf32> to vector<8x64xf32>
    %104 = arith.mulf %94, %103 : vector<8x64xf32>
    %105 = vector.broadcast %87 : vector<1x64xf32> to vector<8x64xf32>
    %106 = arith.mulf %105, %104 : vector<8x64xf32>
    %107 = vector.broadcast %88 : vector<1x64xf32> to vector<8x64xf32>
    %108 = arith.addf %106, %107 : vector<8x64xf32>
    %109 = arith.truncf %108 : vector<8x64xf32> to vector<8x64xbf16>
    %c0_55 = arith.constant 0 : index
    %c0_56 = arith.constant 0 : index
    %c0_57 = arith.constant 0 : index
    %110 = vector.load %arg16[%c0_55, %c0_56, %c0_57] : memref<1x8x64xbf16, #tpu.memory_space<vmem>>, vector<1x8x64xbf16>
    %111 = vector.shape_cast %110 : vector<1x8x64xbf16> to vector<8x64xbf16>
    %112 = vector.shape_cast %109 : vector<8x64xbf16> to vector<1x8x64xbf16>
    tpu.vector_store %arg16[%c0_55, %c0_56, %c0_57], %112 {strides = array<i32>} : memref<1x8x64xbf16, #tpu.memory_space<vmem>>, vector<1x8x64xbf16>,
    return
  }
  func.func @transform_0(%arg0: i32, %arg1: i32) -> (i32, i32, i32) {
    %c0_i32 = arith.constant 0 : i32
    %c0_i32_0 = arith.constant 0 : i32
    return %arg0, %arg1, %c0_i32 : i32, i32, i32
  }
  func.func @transform_1(%arg0: i32, %arg1: i32) -> (i32, i32, i32, i32) {
    %c0_i32 = arith.constant 0 : i32
    %c0_i32_0 = arith.constant 0 : i32
    %c0_i32_1 = arith.constant 0 : i32
    return %arg0, %c0_i32, %arg1, %c0_i32_0 : i32, i32, i32, i32
  }
  func.func @transform_2(%arg0: i32, %arg1: i32) -> (i32, i32, i32, i32) {
    %c0_i32 = arith.constant 0 : i32
    %c0_i32_0 = arith.constant 0 : i32
    %c0_i32_1 = arith.constant 0 : i32
    %c0_i32_2 = arith.constant 0 : i32
    return %arg0, %c0_i32, %c0_i32_0, %c0_i32_1 : i32, i32, i32, i32
  }
  func.func @transform_3(%arg0: i32, %arg1: i32) -> (i32, i32, i32, i32) {
    %c0_i32 = arith.constant 0 : i32
    %c0_i32_0 = arith.constant 0 : i32
    %c0_i32_1 = arith.constant 0 : i32
    %c0_i32_2 = arith.constant 0 : i32
    return %arg0, %c0_i32, %c0_i32_0, %c0_i32_1 : i32, i32, i32, i32
  }
  func.func @transform_4(%arg0: i32, %arg1: i32) -> (i32, i32) {
    %c0_i32 = arith.constant 0 : i32
    %c0_i32_0 = arith.constant 0 : i32
    %c0_i32_1 = arith.constant 0 : i32
    return %c0_i32, %c0_i32_0 : i32, i32
  }
  func.func @transform_5(%arg0: i32, %arg1: i32) -> (i32, i32) {
    %c0_i32 = arith.constant 0 : i32
    %c0_i32_0 = arith.constant 0 : i32
    %c0_i32_1 = arith.constant 0 : i32
    return %c0_i32, %c0_i32_0 : i32, i32
  }
  func.func @transform_6(%arg0: i32, %arg1: i32) -> (i32, i32) {
    %c0_i32 = arith.constant 0 : i32
    %c0_i32_0 = arith.constant 0 : i32
    %c0_i32_1 = arith.constant 0 : i32
    return %c0_i32, %c0_i32_0 : i32, i32
  }
  func.func @transform_7(%arg0: i32, %arg1: i32) -> (i32, i32) {
    %c0_i32 = arith.constant 0 : i32
    %c0_i32_0 = arith.constant 0 : i32
    %c0_i32_1 = arith.constant 0 : i32
    return %c0_i32, %c0_i32_0 : i32, i32
  }
  func.func @transform_8(%arg0: i32, %arg1: i32) -> (i32, i32) {
    %c0_i32 = arith.constant 0 : i32
    %c0_i32_0 = arith.constant 0 : i32
    %c0_i32_1 = arith.constant 0 : i32
    return %c0_i32, %c0_i32_0 : i32, i32
  }
  func.func @transform_9(%arg0: i32, %arg1: i32) -> (i32, i32) {
    %c0_i32 = arith.constant 0 : i32
    %c0_i32_0 = arith.constant 0 : i32
    %c0_i32_1 = arith.constant 0 : i32
    return %c0_i32, %c0_i32_0 : i32, i32
  }
  func.func @transform_10(%arg0: i32, %arg1: i32) -> (i32, i32) {
    %c0_i32 = arith.constant 0 : i32
    %c0_i32_0 = arith.constant 0 : i32
    %c0_i32_1 = arith.constant 0 : i32
    return %c0_i32, %c0_i32_0 : i32, i32
  }
  func.func @transform_11(%arg0: i32, %arg1: i32) -> (i32, i32) {
    %c0_i32 = arith.constant 0 : i32
    %c0_i32_0 = arith.constant 0 : i32
    %c0_i32_1 = arith.constant 0 : i32
    return %c0_i32, %c0_i32_0 : i32, i32
  }
  func.func @transform_12(%arg0: i32, %arg1: i32) -> (i32, i32) {
    %c0_i32 = arith.constant 0 : i32
    %c0_i32_0 = arith.constant 0 : i32
    %c0_i32_1 = arith.constant 0 : i32
    return %c0_i32, %c0_i32_0 : i32, i32
  }
  func.func @transform_13(%arg0: i32, %arg1: i32) -> (i32, i32) {
    %c0_i32 = arith.constant 0 : i32
    %c0_i32_0 = arith.constant 0 : i32
    %c0_i32_1 = arith.constant 0 : i32
    return %c0_i32, %c0_i32_0 : i32, i32
  }
  func.func @transform_14(%arg0: i32, %arg1: i32) -> (i32, i32, i32) {
    %c0_i32 = arith.constant 0 : i32
    %c0_i32_0 = arith.constant 0 : i32
    return %arg0, %arg1, %c0_i32 : i32, i32, i32
  }
}

</mosaic_0001>

<llo_original>
// kernel: openai_gpt_encoder.4
$region0: #{openai_gpt_encoder.4}
  #allocation0 [shape = 'u32[]', space=smem, size = 0x4, offset = 0x4, fixed_abs, tag = 'smem constant byte address 0x4 - core index']
  #allocation1 [shape = 'u32[72,128]{1,0:T(1,128)}', space=vmem, size = 0x9000, scoped, tag = 'internal scratch']
  %s0 = inlined_call_operand.vmem [shape: bf16[2,16,64], index: 0, kind: input, shape index: {}]
  %s1 = inlined_call_operand.vmem [shape: bf16[64,192], index: 1, kind: input, shape index: {}]
  %s2 = inlined_call_operand.vmem [shape: f32[1,192], index: 2, kind: input, shape index: {}]
  %s3 = inlined_call_operand.vmem [shape: bf16[2,16,192], index: 3, kind: output, shape index: {}]
  %s4 = sld [smem:[#allocation0]]
  $region45: #{openai_gpt_encoder.4} parent=0
    _
  %s6 = ssub.s32 1, %s4
  %s7 = scalar_select 0, %s6, %s4
  loop: start=0, step=1, limit=6
  $region2: #{openai_gpt_encoder.4} parent=0 // loop_pre_header
    _
  $region3: #{openai_gpt_encoder.4} parent=0 // loop_header
    %s9 = sphi 0, %s13
    %p10 = scmp.ge.s32.totalorder %s9, 6
    %s16 = sphi 0, %s28
    %s17 = sphi 0, %s24
    %s18 = sphi 0, %s16
    %s19 = sphi 0, %s17
    %s20 = sphi 0, %s18
    %s21 = sphi 0, %s19
    %s33 = sphi 0, %s35
    %s36 = sphi 0, %s33
    %s37 = sphi 0, %s36
    %s53 = sphi 0, %s37
    %s57 = sphi 0, %s57
    %s59 = sphi 0, %s57
    %s60 = sphi 0, %s59
    %s74 = sphi 0, %s60
    %s78 = sphi 0, %s78
    %s80 = sphi 0, %s78
    %s81 = sphi 0, %s80
    %s95 = sphi 0, %s81
    %s103 = sphi 0, %s105
    %s106 = sphi 0, %s103
    %s107 = sphi 0, %s106
    %s123 = sphi 0, %s107
  $region4: #{openai_gpt_encoder.4} parent=0 // loop_header_branch
    %12 = sbr.rel (%p10) target = $region8
  $region5: #{openai_gpt_encoder.4} parent=0 // loop_body
    %s14 = ssub.s32 %s9, 1
    %s15 = ssub.s32 %s9, 2
    %s22 = sadd.s32 1, %s17
    %p23 = scmp.ge.s32.totalorder %s22, 2
    %s24 = scalar_select %p23, 0, %s22
    %s25 = sadd.s32 1, %s16
    %s26 = scalar_select %p23, %s25, %s16
    %p27 = scmp.ge.s32.totalorder %s26, 2
    %s28 = scalar_select %p27, 0, %s26
    %s29 = ssub.s32 %s16, %s28
    %s30 = ssub.s32 %s17, %s24
    %s31 = sor.u32 %s29, %s30
    %p32 = scmp.eq.s32.totalorder %s31, 0
    %s34 = sadd.s32 %s33, 1
    %s35 = scalar_select %p32, %s33, %s34
    %p38 = pneg %p32
    %p39 = scmp.eq.s32.totalorder %s9, 3
    %p40 = por %p38, %p39
    %p41 = scmp.ne.s32.totalorder %s33, %s36
    %p42 = scmp.eq.s32.totalorder %s9, 0
    %p43 = por %p41, %p42
    %p44 = scmp.ne.s32.totalorder %s33, %s36
    %p45 = scmp.eq.s32.totalorder %s14, 3
    %p46 = por %p44, %p45
    %p47 = scmp.ne.s32.totalorder %s36, %s37
    %p48 = scmp.eq.s32.totalorder %s14, 0
    %p49 = por %p47, %p48
    %p50 = scmp.ne.s32.totalorder %s36, %s37
    %p51 = scmp.eq.s32.totalorder %s15, 3
    %p52 = por %p50, %p51
    %p54 = scmp.ne.s32.totalorder %s37, %s53
    %p55 = scmp.eq.s32.totalorder %s15, 0
    %p56 = por %p54, %p55
    %s58 = sadd.s32 %s57, 1
    %p61 = scmp.eq.s32.totalorder %s9, 3
    %p62 = scmp.ne.s32.totalorder %s57, %s59
    %p63 = scmp.eq.s32.totalorder %s9, 0
    %p64 = por %p62, %p63
    %p65 = scmp.ne.s32.totalorder %s57, %s59
    %p66 = scmp.eq.s32.totalorder %s14, 3
    %p67 = por %p65, %p66
    %p68 = scmp.ne.s32.totalorder %s59, %s60
    %p69 = scmp.eq.s32.totalorder %s14, 0
    %p70 = por %p68, %p69
    %p71 = scmp.ne.s32.totalorder %s59, %s60
    %p72 = scmp.eq.s32.totalorder %s15, 3
    %p73 = por %p71, %p72
    %p75 = scmp.ne.s32.totalorder %s60, %s74
    %p76 = scmp.eq.s32.totalorder %s15, 0
    %p77 = por %p75, %p76
    %s79 = sadd.s32 %s78, 1
    %p82 = scmp.eq.s32.totalorder %s9, 3
    %p83 = scmp.ne.s32.totalorder %s78, %s80
    %p84 = scmp.eq.s32.totalorder %s9, 0
    %p85 = por %p83, %p84
    %p86 = scmp.ne.s32.totalorder %s78, %s80
    %p87 = scmp.eq.s32.totalorder %s14, 3
    %p88 = por %p86, %p87
    %p89 = scmp.ne.s32.totalorder %s80, %s81
    %p90 = scmp.eq.s32.totalorder %s14, 0
    %p91 = por %p89, %p90
    %p92 = scmp.ne.s32.totalorder %s80, %s81
    %p93 = scmp.eq.s32.totalorder %s15, 3
    %p94 = por %p92, %p93
    %p96 = scmp.ne.s32.totalorder %s81, %s95
    %p97 = scmp.eq.s32.totalorder %s15, 0
    %p98 = por %p96, %p97
    %s99 = ssub.s32 %s16, %s28
    %s100 = ssub.s32 %s17, %s24
    %s101 = sor.u32 %s99, %s100
    %p102 = scmp.eq.s32.totalorder %s101, 0
    %s104 = sadd.s32 %s103, 1
    %s105 = scalar_select %p102, %s103, %s104
    %p108 = pneg %p102
    %p109 = scmp.eq.s32.totalorder %s9, 3
    %p110 = por %p108, %p109
    %p111 = scmp.ne.s32.totalorder %s103, %s106
    %p112 = scmp.eq.s32.totalorder %s9, 0
    %p113 = por %p111, %p112
    %p114 = scmp.ne.s32.totalorder %s103, %s106
    %p115 = scmp.eq.s32.totalorder %s14, 3
    %p116 = por %p114, %p115
    %p117 = scmp.ne.s32.totalorder %s106, %s107
    %p118 = scmp.eq.s32.totalorder %s14, 0
    %p119 = por %p117, %p118
    %p120 = scmp.ne.s32.totalorder %s106, %s107
    %p121 = scmp.eq.s32.totalorder %s15, 3
    %p122 = por %p120, %p121
    %p124 = scmp.ne.s32.totalorder %s107, %s123
    %p125 = scmp.eq.s32.totalorder %s15, 0
    %p126 = por %p124, %p125
    %p127 = scmp.le.s32.totalorder 1, %s9
    %p128 = scmp.lt.s32.totalorder %s9, 5
    %p129 = pnand %p127, %p128
    %p130 = pneg %p129
    // Predicated region
    $region9: #{openai_gpt_encoder.4} parent=5 // pred_check
      _
    $region10: #{openai_gpt_encoder.4} parent=5 // pred_check_branch
      %132 = sbr.rel (%p129) target = $region12
    $region11: #{openai_gpt_encoder.4} parent=5 // pred_region
      %s133 = ssub.s32 %s9, 1
      // Predicated region
      $region13: #{openai_gpt_encoder.4} parent=11 // pred_check
        %p134 = pneg %p70
      $region14: #{openai_gpt_encoder.4} parent=11 // pred_check_branch
        %136 = sbr.rel (%p134) target = $region16
      $region15: #{openai_gpt_encoder.4} parent=11 // pred_region
        _
      $region16: #{openai_gpt_encoder.4} parent=11 // pred_fallthru
        _
      // Predicated region
      $region17: #{openai_gpt_encoder.4} parent=11 // pred_check
        %p137 = pneg %p91
      $region18: #{openai_gpt_encoder.4} parent=11 // pred_check_branch
        %139 = sbr.rel (%p137) target = $region20
      $region19: #{openai_gpt_encoder.4} parent=11 // pred_region
        _
      $region20: #{openai_gpt_encoder.4} parent=11 // pred_fallthru
        _
    $region12: #{openai_gpt_encoder.4} parent=5 // pred_fallthru
      _
    %p140 = scmp.lt.s32.totalorder %s9, 4
    // Predicated region
    $region21: #{openai_gpt_encoder.4} parent=5 // pred_check
      %p141 = pneg %p140
    $region22: #{openai_gpt_encoder.4} parent=5 // pred_check_branch
      %143 = sbr.rel (%p141) target = $region24
    $region23: #{openai_gpt_encoder.4} parent=5 // pred_region
      // Predicated region
      $region25: #{openai_gpt_encoder.4} parent=23 // pred_check
        %p144 = pneg %p43
      $region26: #{openai_gpt_encoder.4} parent=23 // pred_check_branch
        %146 = sbr.rel (%p144) target = $region28
      $region27: #{openai_gpt_encoder.4} parent=23 // pred_region
        %p147 = scmp.lt.s32.totalorder %s16, 1
        %s148 = scalar_select %p147, %s16, 1
        %p149 = scmp.lt.s32.totalorder %s17, 1
        %s150 = scalar_select %p149, %s17, 1
        %s151 = smul.addr %s148, 2
        %s152 = sadd.s32 %s150, %s151
        %s153 = smul.addr %s152, 4
        %s154 = scalar_lea.vmem %s0, %s153
      $region28: #{openai_gpt_encoder.4} parent=23 // pred_fallthru
        _
    $region24: #{openai_gpt_encoder.4} parent=5 // pred_fallthru
      _
    %p155 = scmp.le.s32.totalorder 1, %s9
    %p156 = scmp.lt.s32.totalorder %s9, 5
    %p157 = pnand %p155, %p156
    %p158 = pneg %p157
    // Predicated region
    $region29: #{openai_gpt_encoder.4} parent=5 // pred_check
      _
    $region30: #{openai_gpt_encoder.4} parent=5 // pred_check_branch
      %160 = sbr.rel (%p157) target = $region32
    $region31: #{openai_gpt_encoder.4} parent=5 // pred_region
      %s161 = ssub.s32 %s9, 1
      %p162 = scmp.lt.s32.totalorder %s18, 1
      %s163 = scalar_select %p162, %s18, 1
      %p164 = scmp.lt.s32.totalorder %s19, 1
      %s165 = scalar_select %p164, %s19, 1
      %s166 = smul.addr %s163, 2
      %s167 = sadd.s32 %s165, %s166
      %s168 = smul.addr %s167, 4
      %s169 = scalar_lea.vmem %s0, %s168
      %p170 = pneg %p49
      %p171 = pneg %p46
      %p172 = pneg %p70
      %p173 = pneg %p67
      %p174 = pneg %p91
      %p175 = pneg %p88
      %p176 = pneg %p119
      %p177 = pneg %p116
      %p178 = scmp.lt.s32.totalorder %s18, 1
      %s179 = scalar_select %p178, %s18, 1
      %p180 = scmp.lt.s32.totalorder %s19, 1
      %s181 = scalar_select %p180, %s19, 1
      %s182 = smul.addr %s181, 2
      %s183 = smul.addr %s179, 4
      %s184 = sadd.s32 %s182, %s183
      %s185 = smul.addr %s184, 4
      %s186 = scalar_lea.vmem %s3, %s185
      %p187 = scmp.lt.s32.totalorder %s18, 1
      %s188 = scalar_select %p187, %s18, 1
      %p189 = scmp.lt.s32.totalorder %s19, 1
      %s190 = scalar_select %p189, %s19, 1
      %s191 = smul.addr %s188, 2
      %s192 = sadd.s32 %s190, %s191
      %s193 = smul.addr %s192, 4
      %s194 = scalar_lea.vmem %s0, %s193
      %p195 = scmp.lt.s32.totalorder %s18, 1
      %s196 = scalar_select %p195, %s18, 1
      %p197 = scmp.lt.s32.totalorder %s19, 1
      %s198 = scalar_select %p197, %s19, 1
      %s199 = smul.addr %s198, 2
      %s200 = smul.addr %s196, 4
      %s201 = sadd.s32 %s199, %s200
      %s202 = smul.addr %s201, 4
      %s203 = scalar_lea.vmem %s3, %s202
      %v205 = vld [vmem:[%s194] sm:$0xf]
      %v206 = vld [vmem:[%s1] sm:$0xff]
      %v207 = vld [vmem:[%s1 + $0x8] sm:$0xff]
      %v208 = vld [vmem:[%s1 + $0x10] sm:$0xff]
      %v209 = vld [vmem:[%s1 + $0x18] sm:$0xff]
      %v210 = vld [vmem:[%s1 + $0x20] sm:$0xff]
      %v211 = vld [vmem:[%s1 + $0x28] sm:$0xff]
      %v212 = vld [vmem:[%s1 + $0x30] sm:$0xff]
      %v213 = vld [vmem:[%s1 + $0x38] sm:$0xff]
      %v214 = vld [vmem:[%s2] sm:$0x3]
      %v216 = vperm.slane %v214, 0
      %v217 = vperm.slane %v214, 1
      %v228 = vunpack.c.l.b16 %v206
      %v229 = vunpack.c.h.b16 %v206
      %v230 = vunpack.c.l.b16 %v207
      %v231 = vunpack.c.h.b16 %v207
      %v232 = vunpack.c.l.b16 %v208
      %v233 = vunpack.c.h.b16 %v208
      %v234 = vunpack.c.l.b16 %v209
      %v235 = vunpack.c.h.b16 %v209
      %v236 = vunpack.c.l.b16 %v210
      %v237 = vunpack.c.h.b16 %v210
      %v238 = vunpack.c.l.b16 %v211
      %v239 = vunpack.c.h.b16 %v211
      %v240 = vunpack.c.l.b16 %v212
      %v241 = vunpack.c.h.b16 %v212
      %v242 = vunpack.c.l.b16 %v213
      %v243 = vunpack.c.h.b16 %v213
      %v244 = vpack.c.b16 %v230, %v228
      %v245 = vpack.c.b16 %v231, %v229
      %v246 = vpack.c.b16 %v234, %v232
      %v247 = vpack.c.b16 %v235, %v233
      %v248 = vpack.c.b16 %v238, %v236
      %v249 = vpack.c.b16 %v239, %v237
      %v250 = vpack.c.b16 %v242, %v240
      %v251 = vpack.c.b16 %v243, %v241
      %vm260 = vcmask 523264
      %v262 = vsel %vm260, %v205, 0
      %264 = vmatpush.bf16.msra.mxu0 0
      %265 = vmatpush.bf16.msra.mxu0 0
      %266 = vmatpush.bf16.msra.mxu0 0
      %267 = vmatpush.bf16.msra.mxu0 0
      %268 = vmatpush.bf16.msra.mxu0 %v250
      %269 = vmatpush.bf16.msra.mxu0 %v248
      %270 = vmatpush.bf16.msra.mxu0 %v246
      %271 = vmatpush.bf16.msra.mxu0 %v244
      %272 = vmatmul.bf16.gmra.mxu0 %v262
      %v273 = vpop.f32.mrf.mxu0
      %v274 = vadd.f32 %v216, %v273
      %v275 = vpop.f32.mrf.mxu0
      %276 = vdwg.mxu0
      %277 = vmatpush.bf16.msra.mxu0 0
      %278 = vmatpush.bf16.msra.mxu0 0
      %279 = vmatpush.bf16.msra.mxu0 0
      %280 = vmatpush.bf16.msra.mxu0 0
      %281 = vmatpush.bf16.msra.mxu0 %v251
      %282 = vmatpush.bf16.msra.mxu0 %v249
      %283 = vmatpush.bf16.msra.mxu0 %v247
      %284 = vmatpush.bf16.msra.mxu0 %v245
      %285 = vmatmul.bf16.gmra.mxu0 %v262
      %v286 = vpop.f32.mrf.mxu0
      %v287 = vadd.f32 %v217, %v286
      %v288 = vpop.f32.mrf.mxu0
      %289 = vdwg.mxu0
      %v290 = vpack.c.bf16 %v287, %v274
      %vm291 = vcmask 1043456
      %vm292 = vcmask 523268
      %vm293 = vmor %vm292, %vm291
      %294 = vst.msk [vmem:[%s203] sm:$0xff] %vm293, %v290
      %p295 = scmp.lt.s32.totalorder %s18, 1
      %s296 = scalar_select %p295, %s18, 1
      %p297 = scmp.lt.s32.totalorder %s19, 1
      %s298 = scalar_select %p297, %s19, 1
      %s299 = smul.addr %s298, 2
      %s300 = smul.addr %s296, 4
      %s301 = sadd.s32 %s299, %s300
      %s302 = smul.addr %s301, 4
      %s303 = scalar_lea.vmem %s3, %s302
      // Predicated region
      $region33: #{openai_gpt_encoder.4} parent=31 // pred_check
        %p304 = pneg %p116
      $region34: #{openai_gpt_encoder.4} parent=31 // pred_check_branch
        %306 = sbr.rel (%p304) target = $region36
      $region35: #{openai_gpt_encoder.4} parent=31 // pred_region
        _
      $region36: #{openai_gpt_encoder.4} parent=31 // pred_fallthru
        _
    $region32: #{openai_gpt_encoder.4} parent=5 // pred_fallthru
      _
    %p307 = scmp.le.s32.totalorder 2, %s9
    // Predicated region
    $region37: #{openai_gpt_encoder.4} parent=5 // pred_check
      %p308 = pneg %p307
    $region38: #{openai_gpt_encoder.4} parent=5 // pred_check_branch
      %310 = sbr.rel (%p308) target = $region40
    $region39: #{openai_gpt_encoder.4} parent=5 // pred_region
      %s311 = ssub.s32 %s9, 2
      // Predicated region
      $region41: #{openai_gpt_encoder.4} parent=39 // pred_check
        %p312 = pneg %p122
      $region42: #{openai_gpt_encoder.4} parent=39 // pred_check_branch
        %314 = sbr.rel (%p312) target = $region44
      $region43: #{openai_gpt_encoder.4} parent=39 // pred_region
        %p315 = scmp.lt.s32.totalorder %s20, 1
        %s316 = scalar_select %p315, %s20, 1
        %p317 = scmp.lt.s32.totalorder %s21, 1
        %s318 = scalar_select %p317, %s21, 1
        %s319 = smul.addr %s318, 2
        %s320 = smul.addr %s316, 4
        %s321 = sadd.s32 %s319, %s320
        %s322 = smul.addr %s321, 4
        %s323 = scalar_lea.vmem %s3, %s322
      $region44: #{openai_gpt_encoder.4} parent=39 // pred_fallthru
        _
    $region40: #{openai_gpt_encoder.4} parent=5 // pred_fallthru
      _
  $region6: #{openai_gpt_encoder.4} parent=0 // loop_footer
    %s13 = sadd.s32 1, %s9
  $region7: #{openai_gpt_encoder.4} parent=0 // loop_footer_branch
    %8 = sbr.rel target = $region3
  $region8: #{openai_gpt_encoder.4} parent=0 // loop_exit
    _

// kernel: openai_gpt_encoder.7
$region0: #{openai_gpt_encoder.7}
  #allocation0 [shape = 'u32[]', space=smem, size = 0x4, offset = 0x4, fixed_abs, tag = 'smem constant byte address 0x4 - core index']
  #allocation1 [shape = 'u32[72,128]{1,0:T(1,128)}', space=vmem, size = 0x9000, scoped, tag = 'internal scratch']
  %s0 = inlined_call_operand.vmem [shape: bf16[2,16,64], index: 0, kind: input, shape index: {}]
  %s1 = inlined_call_operand.vmem [shape: bf16[2,4,16,16], index: 1, kind: input, shape index: {}]
  %s2 = inlined_call_operand.vmem [shape: bf16[2,4,16,16], index: 2, kind: input, shape index: {}]
  %s3 = inlined_call_operand.vmem [shape: bf16[2,4,16,16], index: 3, kind: input, shape index: {}]
  %s4 = inlined_call_operand.vmem [shape: bf16[64,64], index: 4, kind: input, shape index: {}]
  %s5 = inlined_call_operand.vmem [shape: f32[1,64], index: 5, kind: input, shape index: {}]
  %s6 = inlined_call_operand.vmem [shape: f32[1,64], index: 6, kind: input, shape index: {}]
  %s7 = inlined_call_operand.vmem [shape: f32[1,64], index: 7, kind: input, shape index: {}]
  %s8 = inlined_call_operand.vmem [shape: bf16[64,256], index: 8, kind: input, shape index: {}]
  %s9 = inlined_call_operand.vmem [shape: f32[1,256], index: 9, kind: input, shape index: {}]
  %s10 = inlined_call_operand.vmem [shape: bf16[256,64], index: 10, kind: input, shape index: {}]
  %s11 = inlined_call_operand.vmem [shape: f32[1,64], index: 11, kind: input, shape index: {}]
  %s12 = inlined_call_operand.vmem [shape: f32[1,64], index: 12, kind: input, shape index: {}]
  %s13 = inlined_call_operand.vmem [shape: f32[1,64], index: 13, kind: input, shape index: {}]
  %s14 = inlined_call_operand.hbm [shape: bf16[2,16,64], index: 14, kind: output, shape index: {}]
  %s15 = sld [smem:[#allocation0]]
  $region130: #{openai_gpt_encoder.7} parent=0
    _
  %s17 = ssub.s32 1, %s15
  %s18 = scalar_select 0, %s17, %s15
  $region1: #{openai_gpt_encoder.7} parent=0
    #allocation2 [shape = 'u8[16384]{0}', space=vmem, size = 0x4000, scoped, tag = 'input window, operand 1']
    #allocation3 [shape = 'u8[4096]{0}', space=vmem, size = 0x1000, scoped, tag = 'output window, operand 0']
    #allocation4 [shape = 's32[2]{0}', space=sflag, size = 0x8, scoped, tag = 'scoped memory for openai_gpt_encoder.7']
    %19 = vsyncpa [#allocation4], 0
    %s20 = scalar_lea.sflag [#allocation4], 1
    %21 = vsyncpa %s20, 0
    loop: start=0, step=1, limit=6
    $region2: #{openai_gpt_encoder.7} parent=1 // loop_pre_header
      _
    $region3: #{openai_gpt_encoder.7} parent=1 // loop_header
      %s23 = sphi 0, %s27
      %p24 = scmp.ge.s32.totalorder %s23, 6
      %s30 = sphi 0, %s42
      %s31 = sphi 0, %s38
      %s32 = sphi 0, %s30
      %s33 = sphi 0, %s31
      %s34 = sphi 0, %s32
      %s35 = sphi 0, %s33
      %s47 = sphi 0, %s49
      %s50 = sphi 0, %s47
      %s51 = sphi 0, %s50
      %s67 = sphi 0, %s51
      %s75 = sphi 0, %s77
      %s78 = sphi 0, %s75
      %s79 = sphi 0, %s78
      %s95 = sphi 0, %s79
      %s101 = sphi 0, %s103
      %s104 = sphi 0, %s101
      %s105 = sphi 0, %s104
      %s121 = sphi 0, %s105
      %s127 = sphi 0, %s129
      %s130 = sphi 0, %s127
      %s131 = sphi 0, %s130
      %s147 = sphi 0, %s131
      %s151 = sphi 0, %s151
      %s153 = sphi 0, %s151
      %s154 = sphi 0, %s153
      %s168 = sphi 0, %s154
      %s172 = sphi 0, %s172
      %s174 = sphi 0, %s172
      %s175 = sphi 0, %s174
      %s189 = sphi 0, %s175
      %s193 = sphi 0, %s193
      %s195 = sphi 0, %s193
      %s196 = sphi 0, %s195
      %s210 = sphi 0, %s196
      %s214 = sphi 0, %s214
      %s216 = sphi 0, %s214
      %s217 = sphi 0, %s216
      %s231 = sphi 0, %s217
      %s235 = sphi 0, %s235
      %s237 = sphi 0, %s235
      %s238 = sphi 0, %s237
      %s252 = sphi 0, %s238
      %s256 = sphi 0, %s256
      %s258 = sphi 0, %s256
      %s259 = sphi 0, %s258
      %s273 = sphi 0, %s259
      %s277 = sphi 0, %s277
      %s279 = sphi 0, %s277
      %s280 = sphi 0, %s279
      %s294 = sphi 0, %s280
      %s298 = sphi 0, %s298
      %s300 = sphi 0, %s298
      %s301 = sphi 0, %s300
      %s315 = sphi 0, %s301
      %s319 = sphi 0, %s319
      %s321 = sphi 0, %s319
      %s322 = sphi 0, %s321
      %s336 = sphi 0, %s322
      %s340 = sphi 0, %s340
      %s342 = sphi 0, %s340
      %s343 = sphi 0, %s342
      %s357 = sphi 0, %s343
      %s365 = sphi 0, %s367
      %s368 = sphi 0, %s365
      %s369 = sphi 0, %s368
      %s385 = sphi 0, %s369
    $region4: #{openai_gpt_encoder.7} parent=1 // loop_header_branch
      %26 = sbr.rel (%p24) target = $region8
    $region5: #{openai_gpt_encoder.7} parent=1 // loop_body
      %s28 = ssub.s32 %s23, 1
      %s29 = ssub.s32 %s23, 2
      %s36 = sadd.s32 1, %s31
      %p37 = scmp.ge.s32.totalorder %s36, 2
      %s38 = scalar_select %p37, 0, %s36
      %s39 = sadd.s32 1, %s30
      %s40 = scalar_select %p37, %s39, %s30
      %p41 = scmp.ge.s32.totalorder %s40, 2
      %s42 = scalar_select %p41, 0, %s40
      %s43 = ssub.s32 %s30, %s42
      %s44 = ssub.s32 %s31, %s38
      %s45 = sor.u32 %s43, %s44
      %p46 = scmp.eq.s32.totalorder %s45, 0
      %s48 = sadd.s32 %s47, 1
      %s49 = scalar_select %p46, %s47, %s48
      %p52 = pneg %p46
      %p53 = scmp.eq.s32.totalorder %s23, 3
      %p54 = por %p52, %p53
      %p55 = scmp.ne.s32.totalorder %s47, %s50
      %p56 = scmp.eq.s32.totalorder %s23, 0
      %p57 = por %p55, %p56
      %p58 = scmp.ne.s32.totalorder %s47, %s50
      %p59 = scmp.eq.s32.totalorder %s28, 3
      %p60 = por %p58, %p59
      %p61 = scmp.ne.s32.totalorder %s50, %s51
      %p62 = scmp.eq.s32.totalorder %s28, 0
      %p63 = por %p61, %p62
      %p64 = scmp.ne.s32.totalorder %s50, %s51
      %p65 = scmp.eq.s32.totalorder %s29, 3
      %p66 = por %p64, %p65
      %p68 = scmp.ne.s32.totalorder %s51, %s67
      %p69 = scmp.eq.s32.totalorder %s29, 0
      %p70 = por %p68, %p69
      %s71 = ssub.s32 %s30, %s42
      %s72 = ssub.s32 %s31, %s38
      %s73 = sor.u32 %s71, %s72
      %p74 = scmp.eq.s32.totalorder %s73, 0
      %s76 = sadd.s32 %s75, 1
      %s77 = scalar_select %p74, %s75, %s76
      %p80 = pneg %p74
      %p81 = scmp.eq.s32.totalorder %s23, 3
      %p82 = por %p80, %p81
      %p83 = scmp.ne.s32.totalorder %s75, %s78
      %p84 = scmp.eq.s32.totalorder %s23, 0
      %p85 = por %p83, %p84
      %p86 = scmp.ne.s32.totalorder %s75, %s78
      %p87 = scmp.eq.s32.totalorder %s28, 3
      %p88 = por %p86, %p87
      %p89 = scmp.ne.s32.totalorder %s78, %s79
      %p90 = scmp.eq.s32.totalorder %s28, 0
      %p91 = por %p89, %p90
      %p92 = scmp.ne.s32.totalorder %s78, %s79
      %p93 = scmp.eq.s32.totalorder %s29, 3
      %p94 = por %p92, %p93
      %p96 = scmp.ne.s32.totalorder %s79, %s95
      %p97 = scmp.eq.s32.totalorder %s29, 0
      %p98 = por %p96, %p97
      %s99 = ssub.s32 %s30, %s42
      %p100 = scmp.eq.s32.totalorder %s99, 0
      %s102 = sadd.s32 %s101, 1
      %s103 = scalar_select %p100, %s101, %s102
      %p106 = pneg %p100
      %p107 = scmp.eq.s32.totalorder %s23, 3
      %p108 = por %p106, %p107
      %p109 = scmp.ne.s32.totalorder %s101, %s104
      %p110 = scmp.eq.s32.totalorder %s23, 0
      %p111 = por %p109, %p110
      %p112 = scmp.ne.s32.totalorder %s101, %s104
      %p113 = scmp.eq.s32.totalorder %s28, 3
      %p114 = por %p112, %p113
      %p115 = scmp.ne.s32.totalorder %s104, %s105
      %p116 = scmp.eq.s32.totalorder %s28, 0
      %p117 = por %p115, %p116
      %p118 = scmp.ne.s32.totalorder %s104, %s105
      %p119 = scmp.eq.s32.totalorder %s29, 3
      %p120 = por %p118, %p119
      %p122 = scmp.ne.s32.totalorder %s105, %s121
      %p123 = scmp.eq.s32.totalorder %s29, 0
      %p124 = por %p122, %p123
      %s125 = ssub.s32 %s30, %s42
      %p126 = scmp.eq.s32.totalorder %s125, 0
      %s128 = sadd.s32 %s127, 1
      %s129 = scalar_select %p126, %s127, %s128
      %p132 = pneg %p126
      %p133 = scmp.eq.s32.totalorder %s23, 3
      %p134 = por %p132, %p133
      %p135 = scmp.ne.s32.totalorder %s127, %s130
      %p136 = scmp.eq.s32.totalorder %s23, 0
      %p137 = por %p135, %p136
      %p138 = scmp.ne.s32.totalorder %s127, %s130
      %p139 = scmp.eq.s32.totalorder %s28, 3
      %p140 = por %p138, %p139
      %p141 = scmp.ne.s32.totalorder %s130, %s131
      %p142 = scmp.eq.s32.totalorder %s28, 0
      %p143 = por %p141, %p142
      %p144 = scmp.ne.s32.totalorder %s130, %s131
      %p145 = scmp.eq.s32.totalorder %s29, 3
      %p146 = por %p144, %p145
      %p148 = scmp.ne.s32.totalorder %s131, %s147
      %p149 = scmp.eq.s32.totalorder %s29, 0
      %p150 = por %p148, %p149
      %s152 = sadd.s32 %s151, 1
      %p155 = scmp.eq.s32.totalorder %s23, 3
      %p156 = scmp.ne.s32.totalorder %s151, %s153
      %p157 = scmp.eq.s32.totalorder %s23, 0
      %p158 = por %p156, %p157
      %p159 = scmp.ne.s32.totalorder %s151, %s153
      %p160 = scmp.eq.s32.totalorder %s28, 3
      %p161 = por %p159, %p160
      %p162 = scmp.ne.s32.totalorder %s153, %s154
      %p163 = scmp.eq.s32.totalorder %s28, 0
      %p164 = por %p162, %p163
      %p165 = scmp.ne.s32.totalorder %s153, %s154
      %p166 = scmp.eq.s32.totalorder %s29, 3
      %p167 = por %p165, %p166
      %p169 = scmp.ne.s32.totalorder %s154, %s168
      %p170 = scmp.eq.s32.totalorder %s29, 0
      %p171 = por %p169, %p170
      %s173 = sadd.s32 %s172, 1
      %p176 = scmp.eq.s32.totalorder %s23, 3
      %p177 = scmp.ne.s32.totalorder %s172, %s174
      %p178 = scmp.eq.s32.totalorder %s23, 0
      %p179 = por %p177, %p178
      %p180 = scmp.ne.s32.totalorder %s172, %s174
      %p181 = scmp.eq.s32.totalorder %s28, 3
      %p182 = por %p180, %p181
      %p183 = scmp.ne.s32.totalorder %s174, %s175
      %p184 = scmp.eq.s32.totalorder %s28, 0
      %p185 = por %p183, %p184
      %p186 = scmp.ne.s32.totalorder %s174, %s175
      %p187 = scmp.eq.s32.totalorder %s29, 3
      %p188 = por %p186, %p187
      %p190 = scmp.ne.s32.totalorder %s175, %s189
      %p191 = scmp.eq.s32.totalorder %s29, 0
      %p192 = por %p190, %p191
      %s194 = sadd.s32 %s193, 1
      %p197 = scmp.eq.s32.totalorder %s23, 3
      %p198 = scmp.ne.s32.totalorder %s193, %s195
      %p199 = scmp.eq.s32.totalorder %s23, 0
      %p200 = por %p198, %p199
      %p201 = scmp.ne.s32.totalorder %s193, %s195
      %p202 = scmp.eq.s32.totalorder %s28, 3
      %p203 = por %p201, %p202
      %p204 = scmp.ne.s32.totalorder %s195, %s196
      %p205 = scmp.eq.s32.totalorder %s28, 0
      %p206 = por %p204, %p205
      %p207 = scmp.ne.s32.totalorder %s195, %s196
      %p208 = scmp.eq.s32.totalorder %s29, 3
      %p209 = por %p207, %p208
      %p211 = scmp.ne.s32.totalorder %s196, %s210
      %p212 = scmp.eq.s32.totalorder %s29, 0
      %p213 = por %p211, %p212
      %s215 = sadd.s32 %s214, 1
      %p218 = scmp.eq.s32.totalorder %s23, 3
      %p219 = scmp.ne.s32.totalorder %s214, %s216
      %p220 = scmp.eq.s32.totalorder %s23, 0
      %p221 = por %p219, %p220
      %p222 = scmp.ne.s32.totalorder %s214, %s216
      %p223 = scmp.eq.s32.totalorder %s28, 3
      %p224 = por %p222, %p223
      %p225 = scmp.ne.s32.totalorder %s216, %s217
      %p226 = scmp.eq.s32.totalorder %s28, 0
      %p227 = por %p225, %p226
      %p228 = scmp.ne.s32.totalorder %s216, %s217
      %p229 = scmp.eq.s32.totalorder %s29, 3
      %p230 = por %p228, %p229
      %p232 = scmp.ne.s32.totalorder %s217, %s231
      %p233 = scmp.eq.s32.totalorder %s29, 0
      %p234 = por %p232, %p233
      %s236 = sadd.s32 %s235, 1
      %p239 = scmp.eq.s32.totalorder %s23, 3
      %p240 = scmp.ne.s32.totalorder %s235, %s237
      %p241 = scmp.eq.s32.totalorder %s23, 0
      %p242 = por %p240, %p241
      %p243 = scmp.ne.s32.totalorder %s235, %s237
      %p244 = scmp.eq.s32.totalorder %s28, 3
      %p245 = por %p243, %p244
      %p246 = scmp.ne.s32.totalorder %s237, %s238
      %p247 = scmp.eq.s32.totalorder %s28, 0
      %p248 = por %p246, %p247
      %p249 = scmp.ne.s32.totalorder %s237, %s238
      %p250 = scmp.eq.s32.totalorder %s29, 3
      %p251 = por %p249, %p250
      %p253 = scmp.ne.s32.totalorder %s238, %s252
      %p254 = scmp.eq.s32.totalorder %s29, 0
      %p255 = por %p253, %p254
      %s257 = sadd.s32 %s256, 1
      %p260 = scmp.eq.s32.totalorder %s23, 3
      %p261 = scmp.ne.s32.totalorder %s256, %s258
      %p262 = scmp.eq.s32.totalorder %s23, 0
      %p263 = por %p261, %p262
      %p264 = scmp.ne.s32.totalorder %s256, %s258
      %p265 = scmp.eq.s32.totalorder %s28, 3
      %p266 = por %p264, %p265
      %p267 = scmp.ne.s32.totalorder %s258, %s259
      %p268 = scmp.eq.s32.totalorder %s28, 0
      %p269 = por %p267, %p268
      %p270 = scmp.ne.s32.totalorder %s258, %s259
      %p271 = scmp.eq.s32.totalorder %s29, 3
      %p272 = por %p270, %p271
      %p274 = scmp.ne.s32.totalorder %s259, %s273
      %p275 = scmp.eq.s32.totalorder %s29, 0
      %p276 = por %p274, %p275
      %s278 = sadd.s32 %s277, 1
      %p281 = scmp.eq.s32.totalorder %s23, 3
      %p282 = scmp.ne.s32.totalorder %s277, %s279
      %p283 = scmp.eq.s32.totalorder %s23, 0
      %p284 = por %p282, %p283
      %p285 = scmp.ne.s32.totalorder %s277, %s279
      %p286 = scmp.eq.s32.totalorder %s28, 3
      %p287 = por %p285, %p286
      %p288 = scmp.ne.s32.totalorder %s279, %s280
      %p289 = scmp.eq.s32.totalorder %s28, 0
      %p290 = por %p288, %p289
      %p291 = scmp.ne.s32.totalorder %s279, %s280
      %p292 = scmp.eq.s32.totalorder %s29, 3
      %p293 = por %p291, %p292
      %p295 = scmp.ne.s32.totalorder %s280, %s294
      %p296 = scmp.eq.s32.totalorder %s29, 0
      %p297 = por %p295, %p296
      %s299 = sadd.s32 %s298, 1
      %p302 = scmp.eq.s32.totalorder %s23, 3
      %p303 = scmp.ne.s32.totalorder %s298, %s300
      %p304 = scmp.eq.s32.totalorder %s23, 0
      %p305 = por %p303, %p304
      %p306 = scmp.ne.s32.totalorder %s298, %s300
      %p307 = scmp.eq.s32.totalorder %s28, 3
      %p308 = por %p306, %p307
      %p309 = scmp.ne.s32.totalorder %s300, %s301
      %p310 = scmp.eq.s32.totalorder %s28, 0
      %p311 = por %p309, %p310
      %p312 = scmp.ne.s32.totalorder %s300, %s301
      %p313 = scmp.eq.s32.totalorder %s29, 3
      %p314 = por %p312, %p313
      %p316 = scmp.ne.s32.totalorder %s301, %s315
      %p317 = scmp.eq.s32.totalorder %s29, 0
      %p318 = por %p316, %p317
      %s320 = sadd.s32 %s319, 1
      %p323 = scmp.eq.s32.totalorder %s23, 3
      %p324 = scmp.ne.s32.totalorder %s319, %s321
      %p325 = scmp.eq.s32.totalorder %s23, 0
      %p326 = por %p324, %p325
      %p327 = scmp.ne.s32.totalorder %s319, %s321
      %p328 = scmp.eq.s32.totalorder %s28, 3
      %p329 = por %p327, %p328
      %p330 = scmp.ne.s32.totalorder %s321, %s322
      %p331 = scmp.eq.s32.totalorder %s28, 0
      %p332 = por %p330, %p331
      %p333 = scmp.ne.s32.totalorder %s321, %s322
      %p334 = scmp.eq.s32.totalorder %s29, 3
      %p335 = por %p333, %p334
      %p337 = scmp.ne.s32.totalorder %s322, %s336
      %p338 = scmp.eq.s32.totalorder %s29, 0
      %p339 = por %p337, %p338
      %s341 = sadd.s32 %s340, 1
      %p344 = scmp.eq.s32.totalorder %s23, 3
      %p345 = scmp.ne.s32.totalorder %s340, %s342
      %p346 = scmp.eq.s32.totalorder %s23, 0
      %p347 = por %p345, %p346
      %p348 = scmp.ne.s32.totalorder %s340, %s342
      %p349 = scmp.eq.s32.totalorder %s28, 3
      %p350 = por %p348, %p349
      %p351 = scmp.ne.s32.totalorder %s342, %s343
      %p352 = scmp.eq.s32.totalorder %s28, 0
      %p353 = por %p351, %p352
      %p354 = scmp.ne.s32.totalorder %s342, %s343
      %p355 = scmp.eq.s32.totalorder %s29, 3
      %p356 = por %p354, %p355
      %p358 = scmp.ne.s32.totalorder %s343, %s357
      %p359 = scmp.eq.s32.totalorder %s29, 0
      %p360 = por %p358, %p359
      %s361 = ssub.s32 %s30, %s42
      %s362 = ssub.s32 %s31, %s38
      %s363 = sor.u32 %s361, %s362
      %p364 = scmp.eq.s32.totalorder %s363, 0
      %s366 = sadd.s32 %s365, 1
      %s367 = scalar_select %p364, %s365, %s366
      %p370 = pneg %p364
      %p371 = scmp.eq.s32.totalorder %s23, 3
      %p372 = por %p370, %p371
      %p373 = scmp.ne.s32.totalorder %s365, %s368
      %p374 = scmp.eq.s32.totalorder %s23, 0
      %p375 = por %p373, %p374
      %p376 = scmp.ne.s32.totalorder %s365, %s368
      %p377 = scmp.eq.s32.totalorder %s28, 3
      %p378 = por %p376, %p377
      %p379 = scmp.ne.s32.totalorder %s368, %s369
      %p380 = scmp.eq.s32.totalorder %s28, 0
      %p381 = por %p379, %p380
      %p382 = scmp.ne.s32.totalorder %s368, %s369
      %p383 = scmp.eq.s32.totalorder %s29, 3
      %p384 = por %p382, %p383
      %p386 = scmp.ne.s32.totalorder %s369, %s385
      %p387 = scmp.eq.s32.totalorder %s29, 0
      %p388 = por %p386, %p387
      %p389 = scmp.le.s32.totalorder 1, %s23
      %p390 = scmp.lt.s32.totalorder %s23, 5
      %p391 = pnand %p389, %p390
      %p392 = pneg %p391
      // Predicated region
      $region9: #{openai_gpt_encoder.7} parent=5 // pred_check
        _
      $region10: #{openai_gpt_encoder.7} parent=5 // pred_check_branch
        %394 = sbr.rel (%p391) target = $region12
      $region11: #{openai_gpt_encoder.7} parent=5 // pred_region
        %s395 = ssub.s32 %s23, 1
        // Predicated region
        $region13: #{openai_gpt_encoder.7} parent=11 // pred_check
          %p396 = pneg %p164
        $region14: #{openai_gpt_encoder.7} parent=11 // pred_check_branch
          %398 = sbr.rel (%p396) target = $region16
        $region15: #{openai_gpt_encoder.7} parent=11 // pred_region
          _
        $region16: #{openai_gpt_encoder.7} parent=11 // pred_fallthru
          _
        // Predicated region
        $region17: #{openai_gpt_encoder.7} parent=11 // pred_check
          %p399 = pneg %p185
        $region18: #{openai_gpt_encoder.7} parent=11 // pred_check_branch
          %401 = sbr.rel (%p399) target = $region20
        $region19: #{openai_gpt_encoder.7} parent=11 // pred_region
          _
        $region20: #{openai_gpt_encoder.7} parent=11 // pred_fallthru
          _
        // Predicated region
        $region21: #{openai_gpt_encoder.7} parent=11 // pred_check
          %p402 = pneg %p206
        $region22: #{openai_gpt_encoder.7} parent=11 // pred_check_branch
          %404 = sbr.rel (%p402) target = $region24
        $region23: #{openai_gpt_encoder.7} parent=11 // pred_region
          _
        $region24: #{openai_gpt_encoder.7} parent=11 // pred_fallthru
          _
        // Predicated region
        $region25: #{openai_gpt_encoder.7} parent=11 // pred_check
          %p405 = pneg %p227
        $region26: #{openai_gpt_encoder.7} parent=11 // pred_check_branch
          %407 = sbr.rel (%p405) target = $region28
        $region27: #{openai_gpt_encoder.7} parent=11 // pred_region
          _
        $region28: #{openai_gpt_encoder.7} parent=11 // pred_fallthru
          _
        // Predicated region
        $region29: #{openai_gpt_encoder.7} parent=11 // pred_check
          %p408 = pneg %p248
        $region30: #{openai_gpt_encoder.7} parent=11 // pred_check_branch
          %410 = sbr.rel (%p408) target = $region32
        $region31: #{openai_gpt_encoder.7} parent=11 // pred_region
          _
        $region32: #{openai_gpt_encoder.7} parent=11 // pred_fallthru
          _
        // Predicated region
        $region33: #{openai_gpt_encoder.7} parent=11 // pred_check
          %p411 = pneg %p269
        $region34: #{openai_gpt_encoder.7} parent=11 // pred_check_branch
          %413 = sbr.rel (%p411) target = $region36
        $region35: #{openai_gpt_encoder.7} parent=11 // pred_region
          _
        $region36: #{openai_gpt_encoder.7} parent=11 // pred_fallthru
          _
        // Predicated region
        $region37: #{openai_gpt_encoder.7} parent=11 // pred_check
          %p414 = pneg %p290
        $region38: #{openai_gpt_encoder.7} parent=11 // pred_check_branch
          %416 = sbr.rel (%p414) target = $region40
        $region39: #{openai_gpt_encoder.7} parent=11 // pred_region
          _
        $region40: #{openai_gpt_encoder.7} parent=11 // pred_fallthru
          _
        // Predicated region
        $region41: #{openai_gpt_encoder.7} parent=11 // pred_check
          %p417 = pneg %p311
        $region42: #{openai_gpt_encoder.7} parent=11 // pred_check_branch
          %419 = sbr.rel (%p417) target = $region44
        $region43: #{openai_gpt_encoder.7} parent=11 // pred_region
          _
        $region44: #{openai_gpt_encoder.7} parent=11 // pred_fallthru
          _
        // Predicated region
        $region45: #{openai_gpt_encoder.7} parent=11 // pred_check
          %p420 = pneg %p332
        $region46: #{openai_gpt_encoder.7} parent=11 // pred_check_branch
          %422 = sbr.rel (%p420) target = $region48
        $region47: #{openai_gpt_encoder.7} parent=11 // pred_region
          _
        $region48: #{openai_gpt_encoder.7} parent=11 // pred_fallthru
          _
        // Predicated region
        $region49: #{openai_gpt_encoder.7} parent=11 // pred_check
          %p423 = pneg %p353
        $region50: #{openai_gpt_encoder.7} parent=11 // pred_check_branch
          %425 = sbr.rel (%p423) target = $region52
        $region51: #{openai_gpt_encoder.7} parent=11 // pred_region
          _
        $region52: #{openai_gpt_encoder.7} parent=11 // pred_fallthru
          _
      $region12: #{openai_gpt_encoder.7} parent=5 // pred_fallthru
        _
      %p426 = scmp.lt.s32.totalorder %s23, 4
      // Predicated region
      $region53: #{openai_gpt_encoder.7} parent=5 // pred_check
        %p427 = pneg %p426
      $region54: #{openai_gpt_encoder.7} parent=5 // pred_check_branch
        %429 = sbr.rel (%p427) target = $region56
      $region55: #{openai_gpt_encoder.7} parent=5 // pred_region
        // Predicated region
        $region57: #{openai_gpt_encoder.7} parent=55 // pred_check
          %p430 = pneg %p57
        $region58: #{openai_gpt_encoder.7} parent=55 // pred_check_branch
          %432 = sbr.rel (%p430) target = $region60
        $region59: #{openai_gpt_encoder.7} parent=55 // pred_region
          %p433 = scmp.lt.s32.totalorder %s30, 1
          %s434 = scalar_select %p433, %s30, 1
          %p435 = scmp.lt.s32.totalorder %s31, 1
          %s436 = scalar_select %p435, %s31, 1
          %s437 = smul.addr %s434, 2
          %s438 = sadd.s32 %s436, %s437
          %s439 = smul.addr %s438, 4
          %s440 = scalar_lea.vmem %s0, %s439
        $region60: #{openai_gpt_encoder.7} parent=55 // pred_fallthru
          _
        // Predicated region
        $region61: #{openai_gpt_encoder.7} parent=55 // pred_check
          %p441 = pneg %p85
        $region62: #{openai_gpt_encoder.7} parent=55 // pred_check_branch
          %443 = sbr.rel (%p441) target = $region64
        $region63: #{openai_gpt_encoder.7} parent=55 // pred_region
          %s444 = sand.u32 %s75, 1
          %s445 = sand.u32 %s75, 1
          %s446 = smul.addr %s445, 16
          %s447 = scalar_lea.vmem [#allocation2], %s446
          %s448 = smul.addr %s30, 8
          %s449 = sadd.s32 %s31, %s448
          %s450 = smul.addr %s449, 4
          %s451 = scalar_lea.vmem %s1, %s450
          // Predicated region
          $region65: #{openai_gpt_encoder.7} parent=63 // pred_check
            _
          $region66: #{openai_gpt_encoder.7} parent=63 // pred_check_branch
            %453 = sbr.rel (0) target = $region68
          $region67: #{openai_gpt_encoder.7} parent=63 // pred_region
            // Predicated region
            $region69: #{openai_gpt_encoder.7} parent=67 // pred_check
              _
            $region70: #{openai_gpt_encoder.7} parent=67 // pred_check_branch
              %455 = sbr.rel target = $region72
            $region71: #{openai_gpt_encoder.7} parent=67 // pred_region
              // Predicated region
              $region84: #{openai_gpt_encoder.7} parent=71 // pred_check
                _
              $region85: #{openai_gpt_encoder.7} parent=71 // pred_check_branch
                %477 = sbr.rel (0) target = $region87
              $region86: #{openai_gpt_encoder.7} parent=71 // pred_region
                loop: start=0, step=1, limit=1
                $region88: #{openai_gpt_encoder.7} parent=86 // loop_pre_header
                  _
                $region89: #{openai_gpt_encoder.7} parent=86 // loop_header
                  %s479 = sphi 0, %s483
                  %p480 = scmp.ge.s32.totalorder %s479, 1
                  %s484 = sphi %s451, %s451
                  %s485 = sphi %s447, %s447
                $region90: #{openai_gpt_encoder.7} parent=86 // loop_header_branch
                  %482 = sbr.rel (%p480) target = $region94
                $region91: #{openai_gpt_encoder.7} parent=86 // loop_body
                  _
                $region92: #{openai_gpt_encoder.7} parent=86 // loop_footer
                  %s483 = sadd.s32 1, %s479
                $region93: #{openai_gpt_encoder.7} parent=86 // loop_footer_branch
                  %478 = sbr.rel target = $region89
                $region94: #{openai_gpt_encoder.7} parent=86 // loop_exit
                  _
                %s487 = ssub.s32 16, 1
                loop: start=0, step=1, limit=1
                $region95: #{openai_gpt_encoder.7} parent=86 // loop_pre_header
                  _
                $region96: #{openai_gpt_encoder.7} parent=86 // loop_header
                  %s489 = sphi 0, %s493
                  %p490 = scmp.ge.s32.totalorder %s489, 1
                  %s494 = sphi %s451, %s451
                  %s495 = sphi %s447, %s447
                $region97: #{openai_gpt_encoder.7} parent=86 // loop_header_branch
                  %492 = sbr.rel (%p490) target = $region101
                $region98: #{openai_gpt_encoder.7} parent=86 // loop_body
                  %v496 = vld [vmem:[%s494] sm:%s487]
                  %497 = vst [vmem:[%s495] sm:%s487] %v496
                  %v498 = vld [vmem:[%s494 + $0x8] sm:%s487]
                  %499 = vst [vmem:[%s495 + $0x4] sm:%s487] %v498
                  %v500 = vld [vmem:[%s494 + $0x10] sm:%s487]
                  %501 = vst [vmem:[%s495 + $0x8] sm:%s487] %v500
                  %v502 = vld [vmem:[%s494 + $0x18] sm:%s487]
                  %503 = vst [vmem:[%s495 + $0xc] sm:%s487] %v502
                $region99: #{openai_gpt_encoder.7} parent=86 // loop_footer
                  %s493 = sadd.s32 1, %s489
                $region100: #{openai_gpt_encoder.7} parent=86 // loop_footer_branch
                  %488 = sbr.rel target = $region96
                $region101: #{openai_gpt_encoder.7} parent=86 // loop_exit
                  _
              $region87: #{openai_gpt_encoder.7} parent=71 // pred_fallthru
                _
            $region72: #{openai_gpt_encoder.7} parent=67 // pred_fallthru
              _
            // Predicated region
            $region73: #{openai_gpt_encoder.7} parent=67 // pred_check
              _
            $region74: #{openai_gpt_encoder.7} parent=67 // pred_check_branch
              %457 = sbr.rel (0) target = $region76
            $region75: #{openai_gpt_encoder.7} parent=67 // pred_region
              %s459 = ssub.s32 16, 1
              loop: start=0, step=1, limit=1
              $region77: #{openai_gpt_encoder.7} parent=75 // loop_pre_header
                _
              $region78: #{openai_gpt_encoder.7} parent=75 // loop_header
                %s461 = sphi 0, %s465
                %p462 = scmp.ge.s32.totalorder %s461, 1
                %s466 = sphi %s451, %s451
                %s467 = sphi %s447, %s447
              $region79: #{openai_gpt_encoder.7} parent=75 // loop_header_branch
                %464 = sbr.rel (%p462) target = $region83
              $region80: #{openai_gpt_encoder.7} parent=75 // loop_body
                %v468 = vld [vmem:[%s466] sm:%s459]
                %469 = vst [vmem:[%s467] sm:%s459] %v468
                %v470 = vld [vmem:[%s466 + $0x8] sm:%s459]
                %471 = vst [vmem:[%s467 + $0x4] sm:%s459] %v470
                %v472 = vld [vmem:[%s466 + $0x10] sm:%s459]
                %473 = vst [vmem:[%s467 + $0x8] sm:%s459] %v472
                %v474 = vld [vmem:[%s466 + $0x18] sm:%s459]
                %475 = vst [vmem:[%s467 + $0xc] sm:%s459] %v474
              $region81: #{openai_gpt_encoder.7} parent=75 // loop_footer
                %s465 = sadd.s32 1, %s461
              $region82: #{openai_gpt_encoder.7} parent=75 // loop_footer_branch
                %460 = sbr.rel target = $region78
              $region83: #{openai_gpt_encoder.7} parent=75 // loop_exit
                _
            $region76: #{openai_gpt_encoder.7} parent=67 // pred_fallthru
              _
          $region68: #{openai_gpt_encoder.7} parent=63 // pred_fallthru
            _
          %504 = vnop
        $region64: #{openai_gpt_encoder.7} parent=55 // pred_fallthru
          _
        // Predicated region
        $region102: #{openai_gpt_encoder.7} parent=55 // pred_check
          %p505 = pneg %p111
        $region103: #{openai_gpt_encoder.7} parent=55 // pred_check_branch
          %507 = sbr.rel (%p505) target = $region105
        $region104: #{openai_gpt_encoder.7} parent=55 // pred_region
          %p508 = scmp.lt.s32.totalorder %s30, 1
          %s509 = scalar_select %p508, %s30, 1
          %s510 = smul.addr %s509, 8
          %s511 = smul.addr %s510, 4
          %s512 = scalar_lea.vmem %s2, %s511
        $region105: #{openai_gpt_encoder.7} parent=55 // pred_fallthru
          _
        // Predicated region
        $region106: #{openai_gpt_encoder.7} parent=55 // pred_check
          %p513 = pneg %p137
        $region107: #{openai_gpt_encoder.7} parent=55 // pred_check_branch
          %515 = sbr.rel (%p513) target = $region109
        $region108: #{openai_gpt_encoder.7} parent=55 // pred_region
          %p516 = scmp.lt.s32.totalorder %s30, 1
          %s517 = scalar_select %p516, %s30, 1
          %s518 = smul.addr %s517, 8
          %s519 = smul.addr %s518, 4
          %s520 = scalar_lea.vmem %s3, %s519
        $region109: #{openai_gpt_encoder.7} parent=55 // pred_fallthru
          _
      $region56: #{openai_gpt_encoder.7} parent=5 // pred_fallthru
        _
      %p521 = scmp.le.s32.totalorder 1, %s23
      %p522 = scmp.lt.s32.totalorder %s23, 5
      %p523 = pnand %p521, %p522
      %p524 = pneg %p523
      // Predicated region
      $region110: #{openai_gpt_encoder.7} parent=5 // pred_check
        _
      $region111: #{openai_gpt_encoder.7} parent=5 // pred_check_branch
        %526 = sbr.rel (%p523) target = $region113
      $region112: #{openai_gpt_encoder.7} parent=5 // pred_region
        %s527 = ssub.s32 %s23, 1
        %s528 = sand.u32 %s78, 1
        %s529 = sand.u32 %s78, 1
        %s530 = smul.addr %s529, 16
        %s531 = scalar_lea.vmem [#allocation2], %s530
        // Predicated region
        $region114: #{openai_gpt_encoder.7} parent=112 // pred_check
          %p532 = pneg %p91
        $region115: #{openai_gpt_encoder.7} parent=112 // pred_check_branch
          %534 = sbr.rel (%p532) target = $region117
        $region116: #{openai_gpt_encoder.7} parent=112 // pred_region
          _
        $region117: #{openai_gpt_encoder.7} parent=112 // pred_fallthru
          _
        %p535 = scmp.lt.s32.totalorder %s32, 1
        %s536 = scalar_select %p535, %s32, 1
        %p537 = scmp.lt.s32.totalorder %s33, 1
        %s538 = scalar_select %p537, %s33, 1
        %s539 = smul.addr %s536, 2
        %s540 = sadd.s32 %s538, %s539
        %s541 = smul.addr %s540, 4
        %s542 = scalar_lea.vmem %s0, %s541
        %p543 = pneg %p63
        %p544 = pneg %p60
        %s545 = sand.u32 %s78, 1
        %s546 = sand.u32 %s78, 1
        %s547 = smul.addr %s546, 16
        %s548 = scalar_lea.vmem [#allocation2], %s547
        %p549 = pneg %p91
        %p550 = pneg %p88
        %p551 = scmp.lt.s32.totalorder %s32, 1
        %s552 = scalar_select %p551, %s32, 1
        %s553 = smul.addr %s552, 8
        %s554 = smul.addr %s553, 4
        %s555 = scalar_lea.vmem %s2, %s554
        %p556 = pneg %p117
        %p557 = pneg %p114
        %p558 = scmp.lt.s32.totalorder %s32, 1
        %s559 = scalar_select %p558, %s32, 1
        %s560 = smul.addr %s559, 8
        %s561 = smul.addr %s560, 4
        %s562 = scalar_lea.vmem %s3, %s561
        %p563 = pneg %p143
        %p564 = pneg %p140
        %p565 = pneg %p164
        %p566 = pneg %p161
        %p567 = pneg %p185
        %p568 = pneg %p182
        %p569 = pneg %p206
        %p570 = pneg %p203
        %p571 = pneg %p227
        %p572 = pneg %p224
        %p573 = pneg %p248
        %p574 = pneg %p245
        %p575 = pneg %p269
        %p576 = pneg %p266
        %p577 = pneg %p290
        %p578 = pneg %p287
        %p579 = pneg %p311
        %p580 = pneg %p308
        %p581 = pneg %p332
        %p582 = pneg %p329
        %p583 = pneg %p353
        %p584 = pneg %p350
        %p585 = pneg %p381
        %p586 = pneg %p378
        %s587 = sand.u32 %s368, 1
        %s588 = scalar_lea.sflag [#allocation4], %s587
        %s589 = sand.u32 %s368, 1
        %s590 = smul.addr %s589, 4
        %s591 = scalar_lea.vmem [#allocation3], %s590
        %p592 = scmp.lt.s32.totalorder %s32, 1
        %s593 = scalar_select %p592, %s32, 1
        %p594 = scmp.lt.s32.totalorder %s33, 1
        %s595 = scalar_select %p594, %s33, 1
        %s596 = smul.addr %s593, 2
        %s597 = sadd.s32 %s595, %s596
        %s598 = smul.addr %s597, 4
        %s599 = scalar_lea.vmem %s0, %s598
        %p600 = scmp.lt.s32.totalorder %s32, 1
        %s601 = scalar_select %p600, %s32, 1
        %s602 = smul.addr %s601, 8
        %s603 = smul.addr %s602, 4
        %s604 = scalar_lea.vmem %s2, %s603
        %p605 = scmp.lt.s32.totalorder %s32, 1
        %s606 = scalar_select %p605, %s32, 1
        %s607 = smul.addr %s606, 8
        %s608 = smul.addr %s607, 4
        %s609 = scalar_lea.vmem %s3, %s608
        %v611 = vld [vmem:[%s531] sm:$0xf]
        %v612 = vld [vmem:[%s531 + $0x4] sm:$0xf]
        %v613 = vld [vmem:[%s531 + $0x8] sm:$0xf]
        %v614 = vld [vmem:[%s531 + $0xc] sm:$0xf]
        %v615 = vld [vmem:[%s604] sm:$0xf]
        %v616 = vld [vmem:[%s604 + $0x4] sm:$0xf]
        %v617 = vld [vmem:[%s604 + $0x8] sm:$0xf]
        %v618 = vld [vmem:[%s604 + $0xc] sm:$0xf]
        %v619 = vld [vmem:[%s604 + $0x10] sm:$0xf]
        %v620 = vld [vmem:[%s604 + $0x14] sm:$0xf]
        %v621 = vld [vmem:[%s604 + $0x18] sm:$0xf]
        %v622 = vld [vmem:[%s604 + $0x1c] sm:$0xf]
        %v623 = vld [vmem:[%s609] sm:$0xf]
        %v624 = vld [vmem:[%s609 + $0x4] sm:$0xf]
        %v625 = vld [vmem:[%s609 + $0x8] sm:$0xf]
        %v626 = vld [vmem:[%s609 + $0xc] sm:$0xf]
        %v627 = vld [vmem:[%s609 + $0x10] sm:$0xf]
        %v628 = vld [vmem:[%s609 + $0x14] sm:$0xf]
        %v629 = vld [vmem:[%s609 + $0x18] sm:$0xf]
        %v630 = vld [vmem:[%s609 + $0x1c] sm:$0xf]
        %v631 = vld [vmem:[%s599] sm:$0xf]
        %s632 = smul.u32 %s33, 8
        %v635 = vunpack.c.l.b16 %v615
        %v636 = vunpack.c.l.b16 %v616
        %v637 = vpack.c.b16 %v636, %v635
        %vm638 = vcmask 130048
        %v640 = vsel %vm638, %v611, 0
        %v643 = vsel %vm638, %v637, 0
        %645 = vmatpush.bf16.xpose.msra.mxu0 0
        %646 = vmatpush.bf16.xpose.msra.mxu0 0
        %647 = vmatpush.bf16.xpose.msra.mxu0 0
        %648 = vmatpush.bf16.xpose.msra.mxu0 0
        %649 = vmatpush.bf16.xpose.msra.mxu0 0
        %650 = vmatpush.bf16.xpose.msra.mxu0 0
        %651 = vmatpush.bf16.xpose.msra.mxu0 0
        %652 = vmatpush.bf16.xpose.msra.mxu0 %v643
        %653 = vmatmul.bf16.gmra.mxu0 %v640
        %v654 = vpop.f32.mrf.mxu0
        %v655 = vadd.f32 0.0, %v654
        %v656 = vpop.f32.mrf.mxu0
        %657 = vdwg.mxu0
        %v660 = vunpack.c.l.b16 %v617
        %v661 = vunpack.c.l.b16 %v618
        %v662 = vpack.c.b16 %v661, %v660
        %v664 = vsel %vm638, %v612, 0
        %v667 = vsel %vm638, %v662, 0
        %669 = vmatpush.bf16.xpose.msra.mxu0 0
        %670 = vmatpush.bf16.xpose.msra.mxu0 0
        %671 = vmatpush.bf16.xpose.msra.mxu0 0
        %672 = vmatpush.bf16.xpose.msra.mxu0 0
        %673 = vmatpush.bf16.xpose.msra.mxu0 0
        %674 = vmatpush.bf16.xpose.msra.mxu0 0
        %675 = vmatpush.bf16.xpose.msra.mxu0 0
        %676 = vmatpush.bf16.xpose.msra.mxu0 %v667
        %677 = vmatmul.bf16.gmra.mxu0 %v664
        %v678 = vpop.f32.mrf.mxu0
        %v679 = vadd.f32 0.0, %v678
        %v680 = vpop.f32.mrf.mxu0
        %681 = vdwg.mxu0
        %v684 = vunpack.c.l.b16 %v619
        %v685 = vunpack.c.l.b16 %v620
        %v686 = vpack.c.b16 %v685, %v684
        %v688 = vsel %vm638, %v613, 0
        %v691 = vsel %vm638, %v686, 0
        %693 = vmatpush.bf16.xpose.msra.mxu0 0
        %694 = vmatpush.bf16.xpose.msra.mxu0 0
        %695 = vmatpush.bf16.xpose.msra.mxu0 0
        %696 = vmatpush.bf16.xpose.msra.mxu0 0
        %697 = vmatpush.bf16.xpose.msra.mxu0 0
        %698 = vmatpush.bf16.xpose.msra.mxu0 0
        %699 = vmatpush.bf16.xpose.msra.mxu0 0
        %700 = vmatpush.bf16.xpose.msra.mxu0 %v691
        %701 = vmatmul.bf16.gmra.mxu0 %v688
        %v702 = vpop.f32.mrf.mxu0
        %v703 = vadd.f32 0.0, %v702
        %v704 = vpop.f32.mrf.mxu0
        %705 = vdwg.mxu0
        %v708 = vunpack.c.l.b16 %v621
        %v709 = vunpack.c.l.b16 %v622
        %v710 = vpack.c.b16 %v709, %v708
        %v712 = vsel %vm638, %v614, 0
        %v715 = vsel %vm638, %v710, 0
        %717 = vmatpush.bf16.xpose.msra.mxu0 0
        %718 = vmatpush.bf16.xpose.msra.mxu0 0
        %719 = vmatpush.bf16.xpose.msra.mxu0 0
        %720 = vmatpush.bf16.xpose.msra.mxu0 0
        %721 = vmatpush.bf16.xpose.msra.mxu0 0
        %722 = vmatpush.bf16.xpose.msra.mxu0 0
        %723 = vmatpush.bf16.xpose.msra.mxu0 0
        %724 = vmatpush.bf16.xpose.msra.mxu0 %v715
        %725 = vmatmul.bf16.gmra.mxu0 %v712
        %v726 = vpop.f32.mrf.mxu0
        %v727 = vadd.f32 0.0, %v726
        %v728 = vpop.f32.mrf.mxu0
        %729 = vdwg.mxu0
        %v730 = vlaneseq
        %v731 = vshrl.u32 %v730, 7
        %v732 = vstv %s632
        %v733 = vadd.s32 %v731, %v732
        %v734 = vlaneseq
        %v735 = vand.u32 %v734, 127
        %vm736 = vcmp.le.s32.totalorder %v735, %v733
        %v737 = vsel %vm736, %v655, -1e+09
        %v738 = vsel %vm736, %v679, -1e+09
        %v739 = vsel %vm736, %v703, -1e+09
        %v740 = vsel %vm736, %v727, -1e+09
        %v741 = vsel %vm638, %v737, -inf
        %742 = vmax.xlane.f32.xlu0 %v741
        %v743 = vpop.xlane.xlu0 %742
        %v744 = vsel %vm638, %v738, -inf
        %745 = vmax.xlane.f32.xlu0 %v744
        %v746 = vpop.xlane.xlu0 %745
        %v747 = vsel %vm638, %v739, -inf
        %748 = vmax.xlane.f32.xlu0 %v747
        %v749 = vpop.xlane.xlu0 %748
        %v750 = vsel %vm638, %v740, -inf
        %751 = vmax.xlane.f32.xlu0 %v750
        %v752 = vpop.xlane.xlu0 %751
        %v753 = vsub.f32 %v737, %v743
        %v754 = vsub.f32 %v738, %v746
        %v755 = vsub.f32 %v739, %v749
        %v756 = vsub.f32 %v740, %v752
        %v757 = vmul.f32 %v753, 1.442695
        %v758 = vpow.pop %v757
        %v759 = vmul.f32 %v754, 1.442695
        %v760 = vpow.pop %v759
        %v761 = vmul.f32 %v755, 1.442695
        %v762 = vpow.pop %v761
        %v763 = vmul.f32 %v756, 1.442695
        %v764 = vpow.pop %v763
        %v765 = vsel %vm638, %v758, 0.0
        %766 = vadd.xlane.f32.xlu0 %v765
        %v767 = vpop.xlane.xlu0 %766
        %v768 = vsel %vm638, %v760, 0.0
        %769 = vadd.xlane.f32.xlu0 %v768
        %v770 = vpop.xlane.xlu0 %769
        %v771 = vsel %vm638, %v762, 0.0
        %772 = vadd.xlane.f32.xlu0 %v771
        %v773 = vpop.xlane.xlu0 %772
        %v774 = vsel %vm638, %v764, 0.0
        %775 = vadd.xlane.f32.xlu0 %v774
        %v776 = vpop.xlane.xlu0 %775
        %v777 = vrcp.pop %v767
        %v778 = vrcp.pop %v770
        %v779 = vrcp.pop %v773
        %v780 = vrcp.pop %v776
        %v781 = vmul.f32 %v758, %v777
        %v782 = vmul.f32 %v760, %v778
        %v783 = vmul.f32 %v762, %v779
        %v784 = vmul.f32 %v764, %v780
        %v785 = vpack.c.bf16 %v781, %v781
        %v786 = vpack.c.bf16 %v782, %v782
        %v787 = vpack.c.bf16 %v783, %v783
        %v788 = vpack.c.bf16 %v784, %v784
        %v791 = vunpack.c.l.b16 %v623
        %v792 = vunpack.c.l.b16 %v624
        %v793 = vpack.c.b16 %v792, %v791
        %v796 = vsel %vm638, %v785, 0
        %798 = vmatpush.bf16.msra.mxu0 0
        %799 = vmatpush.bf16.msra.mxu0 0
        %800 = vmatpush.bf16.msra.mxu0 0
        %801 = vmatpush.bf16.msra.mxu0 0
        %802 = vmatpush.bf16.msra.mxu0 0
        %803 = vmatpush.bf16.msra.mxu0 0
        %804 = vmatpush.bf16.msra.mxu0 0
        %805 = vmatpush.bf16.msra.mxu0 %v793
        %806 = vmatmul.bf16.gmra.mxu0 %v796
        %v807 = vpop.f32.mrf.mxu0
        %v808 = vadd.f32 0.0, %v807
        %v809 = vpop.f32.mrf.mxu0
        %810 = vdwg.mxu0
        %v813 = vunpack.c.l.b16 %v625
        %v814 = vunpack.c.l.b16 %v626
        %v815 = vpack.c.b16 %v814, %v813
        %v818 = vsel %vm638, %v786, 0
        %820 = vmatpush.bf16.msra.mxu0 0
        %821 = vmatpush.bf16.msra.mxu0 0
        %822 = vmatpush.bf16.msra.mxu0 0
        %823 = vmatpush.bf16.msra.mxu0 0
        %824 = vmatpush.bf16.msra.mxu0 0
        %825 = vmatpush.bf16.msra.mxu0 0
        %826 = vmatpush.bf16.msra.mxu0 0
        %827 = vmatpush.bf16.msra.mxu0 %v815
        %828 = vmatmul.bf16.gmra.mxu0 %v818
        %v829 = vpop.f32.mrf.mxu0
        %v830 = vadd.f32 0.0, %v829
        %v831 = vpop.f32.mrf.mxu0
        %832 = vdwg.mxu0
        %v835 = vunpack.c.l.b16 %v627
        %v836 = vunpack.c.l.b16 %v628
        %v837 = vpack.c.b16 %v836, %v835
        %v840 = vsel %vm638, %v787, 0
        %842 = vmatpush.bf16.msra.mxu0 0
        %843 = vmatpush.bf16.msra.mxu0 0
        %844 = vmatpush.bf16.msra.mxu0 0
        %845 = vmatpush.bf16.msra.mxu0 0
        %846 = vmatpush.bf16.msra.mxu0 0
        %847 = vmatpush.bf16.msra.mxu0 0
        %848 = vmatpush.bf16.msra.mxu0 0
        %849 = vmatpush.bf16.msra.mxu0 %v837
        %850 = vmatmul.bf16.gmra.mxu0 %v840
        %v851 = vpop.f32.mrf.mxu0
        %v852 = vadd.f32 0.0, %v851
        %v853 = vpop.f32.mrf.mxu0
        %854 = vdwg.mxu0
        %v857 = vunpack.c.l.b16 %v629
        %v858 = vunpack.c.l.b16 %v630
        %v859 = vpack.c.b16 %v858, %v857
        %v862 = vsel %vm638, %v788, 0
        %864 = vmatpush.bf16.msra.mxu0 0
        %865 = vmatpush.bf16.msra.mxu0 0
        %866 = vmatpush.bf16.msra.mxu0 0
        %867 = vmatpush.bf16.msra.mxu0 0
        %868 = vmatpush.bf16.msra.mxu0 0
        %869 = vmatpush.bf16.msra.mxu0 0
        %870 = vmatpush.bf16.msra.mxu0 0
        %871 = vmatpush.bf16.msra.mxu0 %v859
        %872 = vmatmul.bf16.gmra.mxu0 %v862
        %v873 = vpop.f32.mrf.mxu0
        %v874 = vadd.f32 0.0, %v873
        %v875 = vpop.f32.mrf.mxu0
        %876 = vdwg.mxu0
        %v877 = vrot.slane %v852, 4
        %vm878 = vcmask 1047556
        %v879 = vsel %vm878, %v877, %v808
        %v880 = vrot.slane %v808, 4
        %v881 = vsel %vm878, %v852, %v880
        %v883 = vunpack.c.l.s4 1983009808
        %v884 = vunpack.c.0.s8 %v883
        %v885 = vperm.slane %v879, %v884
        %v887 = vunpack.c.l.s4 1983009808
        %v888 = vunpack.c.0.s8 %v887
        %v889 = vperm.slane %v881, %v888
        %v890 = vrot.slane %v874, 4
        %v891 = vsel %vm878, %v890, %v830
        %v892 = vrot.slane %v830, 4
        %v893 = vsel %vm878, %v874, %v892
        %v895 = vunpack.c.l.s4 1983009808
        %v896 = vunpack.c.0.s8 %v895
        %v897 = vperm.slane %v891, %v896
        %v899 = vunpack.c.l.s4 1983009808
        %v900 = vunpack.c.0.s8 %v899
        %v901 = vperm.slane %v893, %v900
        %v902 = vrot.slane %v897, 4
        %v903 = vsel %vm878, %v902, %v885
        %v904 = vrot.slane %v885, 4
        %v905 = vsel %vm878, %v897, %v904
        %v907 = vunpack.c.l.s4 1934713408
        %v908 = vunpack.c.0.s8 %v907
        %v909 = vperm.slane %v903, %v908
        %v911 = vunpack.c.l.s4 1934713408
        %v912 = vunpack.c.0.s8 %v911
        %v913 = vperm.slane %v905, %v912
        %v914 = vrot.slane %v901, 4
        %v915 = vsel %vm878, %v914, %v889
        %v916 = vrot.slane %v889, 4
        %v917 = vsel %vm878, %v901, %v916
        %v919 = vunpack.c.l.s4 1934713408
        %v920 = vunpack.c.0.s8 %v919
        %v921 = vperm.slane %v915, %v920
        %v923 = vunpack.c.l.s4 1934713408
        %v924 = vunpack.c.0.s8 %v923
        %v925 = vperm.slane %v917, %v924
        %v926 = vrot.slane %v909, 4
        %v927 = vsel %vm878, 0.0, %v926
        %v928 = vrot.slane %v913, 4
        %v929 = vsel %vm878, 0.0, %v928
        %v930 = vrot.slane %v921, 4
        %v931 = vsel %vm878, 0.0, %v930
        %v932 = vrot.slane %v925, 4
        %v933 = vsel %vm878, 0.0, %v932
        %v934 = vsel %vm878, %v928, %v909
        %v936 = vunpack.c.l.s4 1983009808
        %v937 = vunpack.c.0.s8 %v936
        %v938 = vperm.slane %v934, %v937
        %v939 = vrot.slane %v929, 4
        %v940 = vsel %vm878, %v939, %v927
        %v942 = vunpack.c.l.s4 1983009808
        %v943 = vunpack.c.0.s8 %v942
        %v944 = vperm.slane %v940, %v943
        %v945 = vsel %vm878, %v932, %v921
        %v947 = vunpack.c.l.s4 1983009808
        %v948 = vunpack.c.0.s8 %v947
        %v949 = vperm.slane %v945, %v948
        %v950 = vrot.slane %v933, 4
        %v951 = vsel %vm878, %v950, %v931
        %v953 = vunpack.c.l.s4 1983009808
        %v954 = vunpack.c.0.s8 %v953
        %v955 = vperm.slane %v951, %v954
        %v956 = vrot.slane %v944, 4
        %v957 = vsel %vm878, %v956, %v938
        %v958 = vrot.slane %v938, 4
        %v959 = vsel %vm878, %v944, %v958
        %v961 = vunpack.c.l.s4 1934713408
        %v962 = vunpack.c.0.s8 %v961
        %v963 = vperm.slane %v957, %v962
        %v965 = vunpack.c.l.s4 1934713408
        %v966 = vunpack.c.0.s8 %v965
        %v967 = vperm.slane %v959, %v966
        %v968 = vrot.slane %v955, 4
        %v969 = vsel %vm878, %v968, %v949
        %v970 = vrot.slane %v949, 4
        %v971 = vsel %vm878, %v955, %v970
        %v973 = vunpack.c.l.s4 1934713408
        %v974 = vunpack.c.0.s8 %v973
        %v975 = vperm.slane %v969, %v974
        %v977 = vunpack.c.l.s4 1934713408
        %v978 = vunpack.c.0.s8 %v977
        %v979 = vperm.slane %v971, %v978
        %v980 = vrot.slane %v975, 4
        %v981 = vsel %vm878, %v980, %v963
        %v982 = vrot.slane %v963, 4
        %v983 = vsel %vm878, %v975, %v982
        %v984 = vrot.slane %v979, 4
        %v985 = vsel %vm878, %v984, %v967
        %v986 = vrot.slane %v967, 4
        %v987 = vsel %vm878, %v979, %v986
        %989 = vrot.lane.b32.xlu0 %v983, 16
        %v990 = vpop.permute.xlu0 %989
        %993 = vrot.lane.b32.xlu0 %v985, 32
        %v994 = vpop.permute.xlu0 %993
        %997 = vrot.lane.b32.xlu0 %v987, 48
        %v998 = vpop.permute.xlu0 %997
        %v1000 = vsel %vm638, %v981, %v990
        %vm1001 = vcmask 261120
        %v1002 = vsel %vm1001, %v1000, %v994
        %vm1003 = vcmask 392192
        %v1004 = vsel %vm1003, %v1002, %v998
        %v1005 = vpack.c.bf16 %v1004, %v1004
        %v1006 = vld [vmem:[%s4] sm:$0xf]
        %v1007 = vld [vmem:[%s4 + $0x4] sm:$0xf]
        %v1008 = vld [vmem:[%s4 + $0x8] sm:$0xf]
        %v1009 = vld [vmem:[%s4 + $0xc] sm:$0xf]
        %v1010 = vld [vmem:[%s4 + $0x10] sm:$0xf]
        %v1011 = vld [vmem:[%s4 + $0x14] sm:$0xf]
        %v1012 = vld [vmem:[%s4 + $0x18] sm:$0xf]
        %v1013 = vld [vmem:[%s4 + $0x1c] sm:$0xf]
        %v1014 = vld [vmem:[%s5] sm:$0x1]
        %v1016 = vperm.slane %v1014, 0
        %v1026 = vunpack.c.l.b16 %v1006
        %v1027 = vunpack.c.l.b16 %v1007
        %v1028 = vunpack.c.l.b16 %v1008
        %v1029 = vunpack.c.l.b16 %v1009
        %v1030 = vunpack.c.l.b16 %v1010
        %v1031 = vunpack.c.l.b16 %v1011
        %v1032 = vunpack.c.l.b16 %v1012
        %v1033 = vunpack.c.l.b16 %v1013
        %v1034 = vpack.c.b16 %v1027, %v1026
        %v1035 = vpack.c.b16 %v1029, %v1028
        %v1036 = vpack.c.b16 %v1031, %v1030
        %v1037 = vpack.c.b16 %v1033, %v1032
        %vm1042 = vcmask 523264
        %v1044 = vsel %vm1042, %v1005, 0
        %1046 = vmatpush.bf16.msra.mxu0 0
        %1047 = vmatpush.bf16.msra.mxu0 0
        %1048 = vmatpush.bf16.msra.mxu0 0
        %1049 = vmatpush.bf16.msra.mxu0 0
        %1050 = vmatpush.bf16.msra.mxu0 %v1037
        %1051 = vmatpush.bf16.msra.mxu0 %v1036
        %1052 = vmatpush.bf16.msra.mxu0 %v1035
        %1053 = vmatpush.bf16.msra.mxu0 %v1034
        %1054 = vmatmul.bf16.gmra.mxu0 %v1044
        %v1055 = vpop.f32.mrf.mxu0
        %v1056 = vadd.f32 %v1016, %v1055
        %v1057 = vpop.f32.mrf.mxu0
        %1058 = vdwg.mxu0
        %v1059 = vunpack.c.l.bf16 %v631
        %v1060 = vadd.f32 %v1059, %v1056
        %v1061 = vld [vmem:[%s6] sm:$0x1]
        %v1062 = vld [vmem:[%s7] sm:$0x1]
        %v1063 = vsel %vm1042, %v1060, 0.0
        %1064 = vadd.xlane.f32.xlu0 %v1063
        %v1065 = vpop.xlane.xlu0 %1064
        %v1066 = vrcp.pop 64.0
        %v1067 = vmul.f32 64.0, %v1066
        %v1068 = vsub.f32 1.0, %v1067
        %v1069 = vmul.f32 %v1066, %v1068
        %v1070 = vadd.f32 %v1066, %v1069
        %vm1071 = vweird.f32 %v1066
        %v1072 = vsel %vm1071, %v1066, %v1070
        %v1073 = vmul.f32 %v1065, %v1072
        %v1074 = vsub.f32 %v1060, %v1073
        %v1075 = vmul.f32 %v1074, %v1074
        %v1076 = vsel %vm1042, %v1075, 0.0
        %1077 = vadd.xlane.f32.xlu0 %v1076
        %v1078 = vpop.xlane.xlu0 %1077
        %v1079 = vmul.f32 %v1078, %v1072
        %v1080 = vadd.f32 %v1079, 1e-05
        %v1081 = vrsqrt.pop %v1080
        %v1082 = vmul.f32 %v1081, %v1080
        %v1083 = vmul.f32 %v1082, %v1081
        %v1084 = vmul.f32 0.5, %v1083
        %v1085 = vsub.f32 1.5, %v1084
        %v1086 = vmul.f32 %v1081, %v1085
        %vm1087 = vweird.f32 %v1080
        %vm1088 = vweird.f32 %v1081
        %vm1089 = vmor %vm1087, %vm1088
        %v1090 = vsel %vm1089, %v1081, %v1086
        %v1091 = vmul.f32 %v1074, %v1090
        %v1093 = vperm.slane %v1061, 0
        %v1095 = vmul.f32 %v1093, %v1091
        %v1097 = vperm.slane %v1062, 0
        %v1099 = vadd.f32 %v1095, %v1097
        %v1100 = vpack.c.bf16 %v1099, %v1099
        %v1101 = vld [vmem:[%s8] sm:$0xff]
        %v1102 = vld [vmem:[%s8 + $0x8] sm:$0xff]
        %v1103 = vld [vmem:[%s8 + $0x10] sm:$0xff]
        %v1104 = vld [vmem:[%s8 + $0x18] sm:$0xff]
        %v1105 = vld [vmem:[%s8 + $0x20] sm:$0xff]
        %v1106 = vld [vmem:[%s8 + $0x28] sm:$0xff]
        %v1107 = vld [vmem:[%s8 + $0x30] sm:$0xff]
        %v1108 = vld [vmem:[%s8 + $0x38] sm:$0xff]
        %v1109 = vld [vmem:[%s9] sm:$0x3]
        %v1111 = vperm.slane %v1109, 0
        %v1112 = vperm.slane %v1109, 1
        %v1123 = vunpack.c.l.b16 %v1101
        %v1124 = vunpack.c.h.b16 %v1101
        %v1125 = vunpack.c.l.b16 %v1102
        %v1126 = vunpack.c.h.b16 %v1102
        %v1127 = vunpack.c.l.b16 %v1103
        %v1128 = vunpack.c.h.b16 %v1103
        %v1129 = vunpack.c.l.b16 %v1104
        %v1130 = vunpack.c.h.b16 %v1104
        %v1131 = vunpack.c.l.b16 %v1105
        %v1132 = vunpack.c.h.b16 %v1105
        %v1133 = vunpack.c.l.b16 %v1106
        %v1134 = vunpack.c.h.b16 %v1106
        %v1135 = vunpack.c.l.b16 %v1107
        %v1136 = vunpack.c.h.b16 %v1107
        %v1137 = vunpack.c.l.b16 %v1108
        %v1138 = vunpack.c.h.b16 %v1108
        %v1139 = vpack.c.b16 %v1125, %v1123
        %v1140 = vpack.c.b16 %v1126, %v1124
        %v1141 = vpack.c.b16 %v1129, %v1127
        %v1142 = vpack.c.b16 %v1130, %v1128
        %v1143 = vpack.c.b16 %v1133, %v1131
        %v1144 = vpack.c.b16 %v1134, %v1132
        %v1145 = vpack.c.b16 %v1137, %v1135
        %v1146 = vpack.c.b16 %v1138, %v1136
        %v1156 = vsel %vm1042, %v1100, 0
        %1158 = vmatpush.bf16.msra.mxu0 0
        %1159 = vmatpush.bf16.msra.mxu0 0
        %1160 = vmatpush.bf16.msra.mxu0 0
        %1161 = vmatpush.bf16.msra.mxu0 0
        %1162 = vmatpush.bf16.msra.mxu0 %v1145
        %1163 = vmatpush.bf16.msra.mxu0 %v1143
        %1164 = vmatpush.bf16.msra.mxu0 %v1141
        %1165 = vmatpush.bf16.msra.mxu0 %v1139
        %1166 = vmatmul.bf16.gmra.mxu0 %v1156
        %v1167 = vpop.f32.mrf.mxu0
        %v1168 = vadd.f32 %v1111, %v1167
        %v1169 = vpop.f32.mrf.mxu0
        %1170 = vdwg.mxu0
        %1171 = vmatpush.bf16.msra.mxu0 0
        %1172 = vmatpush.bf16.msra.mxu0 0
        %1173 = vmatpush.bf16.msra.mxu0 0
        %1174 = vmatpush.bf16.msra.mxu0 0
        %1175 = vmatpush.bf16.msra.mxu0 %v1146
        %1176 = vmatpush.bf16.msra.mxu0 %v1144
        %1177 = vmatpush.bf16.msra.mxu0 %v1142
        %1178 = vmatpush.bf16.msra.mxu0 %v1140
        %1179 = vmatmul.bf16.gmra.mxu0 %v1156
        %v1180 = vpop.f32.mrf.mxu0
        %v1181 = vadd.f32 %v1112, %v1180
        %v1182 = vpop.f32.mrf.mxu0
        %1183 = vdwg.mxu0
        %v1184 = vmul.f32 %v1168, 0.5
        %v1185 = vmul.f32 %v1181, 0.5
        %v1186 = vmul.f32 %v1168, 0.044715
        %v1187 = vmul.f32 %v1181, 0.044715
        %v1188 = vmul.f32 %v1186, %v1168
        %v1189 = vmul.f32 %v1187, %v1181
        %v1190 = vmul.f32 %v1188, %v1168
        %v1191 = vmul.f32 %v1189, %v1181
        %v1192 = vadd.f32 %v1168, %v1190
        %v1193 = vadd.f32 %v1181, %v1191
        %v1194 = vmul.f32 %v1192, 0.7978846
        %v1195 = vmul.f32 %v1193, 0.7978846
        %v1196 = vtanh.pop %v1194
        %v1197 = vtanh.pop %v1195
        %v1198 = vadd.f32 %v1196, 1.0
        %v1199 = vadd.f32 %v1197, 1.0
        %v1200 = vmul.f32 %v1184, %v1198
        %v1201 = vmul.f32 %v1185, %v1199
        %v1202 = vpack.c.bf16 %v1200, %v1200
        %v1203 = vpack.c.bf16 %v1201, %v1201
        %v1204 = vld [vmem:[%s10] sm:$0xf]
        %v1205 = vld [vmem:[%s10 + $0x4] sm:$0xf]
        %v1206 = vld [vmem:[%s10 + $0x8] sm:$0xf]
        %v1207 = vld [vmem:[%s10 + $0xc] sm:$0xf]
        %v1208 = vld [vmem:[%s10 + $0x10] sm:$0xf]
        %v1209 = vld [vmem:[%s10 + $0x14] sm:$0xf]
        %v1210 = vld [vmem:[%s10 + $0x18] sm:$0xf]
        %v1211 = vld [vmem:[%s10 + $0x1c] sm:$0xf]
        %v1212 = vld [vmem:[%s10 + $0x20] sm:$0xf]
        %v1213 = vld [vmem:[%s10 + $0x24] sm:$0xf]
        %v1214 = vld [vmem:[%s10 + $0x28] sm:$0xf]
        %v1215 = vld [vmem:[%s10 + $0x2c] sm:$0xf]
        %v1216 = vld [vmem:[%s10 + $0x30] sm:$0xf]
        %v1217 = vld [vmem:[%s10 + $0x34] sm:$0xf]
        %v1218 = vld [vmem:[%s10 + $0x38] sm:$0xf]
        %v1219 = vld [vmem:[%s10 + $0x3c] sm:$0xf]
        %v1220 = vld [vmem:[%s10 + $0x40] sm:$0xf]
        %v1221 = vld [vmem:[%s10 + $0x44] sm:$0xf]
        %v1222 = vld [vmem:[%s10 + $0x48] sm:$0xf]
        %v1223 = vld [vmem:[%s10 + $0x4c] sm:$0xf]
        %v1224 = vld [vmem:[%s10 + $0x50] sm:$0xf]
        %v1225 = vld [vmem:[%s10 + $0x54] sm:$0xf]
        %v1226 = vld [vmem:[%s10 + $0x58] sm:$0xf]
        %v1227 = vld [vmem:[%s10 + $0x5c] sm:$0xf]
        %v1228 = vld [vmem:[%s10 + $0x60] sm:$0xf]
        %v1229 = vld [vmem:[%s10 + $0x64] sm:$0xf]
        %v1230 = vld [vmem:[%s10 + $0x68] sm:$0xf]
        %v1231 = vld [vmem:[%s10 + $0x6c] sm:$0xf]
        %v1232 = vld [vmem:[%s10 + $0x70] sm:$0xf]
        %v1233 = vld [vmem:[%s10 + $0x74] sm:$0xf]
        %v1234 = vld [vmem:[%s10 + $0x78] sm:$0xf]
        %v1235 = vld [vmem:[%s10 + $0x7c] sm:$0xf]
        %v1236 = vld [vmem:[%s11] sm:$0x1]
        %v1238 = vperm.slane %v1236, 0
        %v1272 = vunpack.c.l.b16 %v1204
        %v1273 = vunpack.c.l.b16 %v1205
        %v1274 = vunpack.c.l.b16 %v1206
        %v1275 = vunpack.c.l.b16 %v1207
        %v1276 = vunpack.c.l.b16 %v1208
        %v1277 = vunpack.c.l.b16 %v1209
        %v1278 = vunpack.c.l.b16 %v1210
        %v1279 = vunpack.c.l.b16 %v1211
        %v1280 = vunpack.c.l.b16 %v1212
        %v1281 = vunpack.c.l.b16 %v1213
        %v1282 = vunpack.c.l.b16 %v1214
        %v1283 = vunpack.c.l.b16 %v1215
        %v1284 = vunpack.c.l.b16 %v1216
        %v1285 = vunpack.c.l.b16 %v1217
        %v1286 = vunpack.c.l.b16 %v1218
        %v1287 = vunpack.c.l.b16 %v1219
        %v1288 = vunpack.c.l.b16 %v1220
        %v1289 = vunpack.c.l.b16 %v1221
        %v1290 = vunpack.c.l.b16 %v1222
        %v1291 = vunpack.c.l.b16 %v1223
        %v1292 = vunpack.c.l.b16 %v1224
        %v1293 = vunpack.c.l.b16 %v1225
        %v1294 = vunpack.c.l.b16 %v1226
        %v1295 = vunpack.c.l.b16 %v1227
        %v1296 = vunpack.c.l.b16 %v1228
        %v1297 = vunpack.c.l.b16 %v1229
        %v1298 = vunpack.c.l.b16 %v1230
        %v1299 = vunpack.c.l.b16 %v1231
        %v1300 = vunpack.c.l.b16 %v1232
        %v1301 = vunpack.c.l.b16 %v1233
        %v1302 = vunpack.c.l.b16 %v1234
        %v1303 = vunpack.c.l.b16 %v1235
        %v1304 = vpack.c.b16 %v1273, %v1272
        %v1305 = vpack.c.b16 %v1275, %v1274
        %v1306 = vpack.c.b16 %v1277, %v1276
        %v1307 = vpack.c.b16 %v1279, %v1278
        %v1308 = vpack.c.b16 %v1281, %v1280
        %v1309 = vpack.c.b16 %v1283, %v1282
        %v1310 = vpack.c.b16 %v1285, %v1284
        %v1311 = vpack.c.b16 %v1287, %v1286
        %v1312 = vpack.c.b16 %v1289, %v1288
        %v1313 = vpack.c.b16 %v1291, %v1290
        %v1314 = vpack.c.b16 %v1293, %v1292
        %v1315 = vpack.c.b16 %v1295, %v1294
        %v1316 = vpack.c.b16 %v1297, %v1296
        %v1317 = vpack.c.b16 %v1299, %v1298
        %v1318 = vpack.c.b16 %v1301, %v1300
        %v1319 = vpack.c.b16 %v1303, %v1302
        %1336 = vmatpush.bf16.msra.mxu0 %v1311
        %1337 = vmatpush.bf16.msra.mxu0 %v1310
        %1338 = vmatpush.bf16.msra.mxu0 %v1309
        %1339 = vmatpush.bf16.msra.mxu0 %v1308
        %1340 = vmatpush.bf16.msra.mxu0 %v1307
        %1341 = vmatpush.bf16.msra.mxu0 %v1306
        %1342 = vmatpush.bf16.msra.mxu0 %v1305
        %1343 = vmatpush.bf16.msra.mxu0 %v1304
        %1344 = vmatmul.bf16.gmra.mxu0 %v1202
        %v1345 = vpop.f32.mrf.mxu0
        %v1346 = vadd.f32 %v1238, %v1345
        %v1347 = vpop.f32.mrf.mxu0
        %1348 = vdwg.mxu0
        %1349 = vmatpush.bf16.msra.mxu0 %v1319
        %1350 = vmatpush.bf16.msra.mxu0 %v1318
        %1351 = vmatpush.bf16.msra.mxu0 %v1317
        %1352 = vmatpush.bf16.msra.mxu0 %v1316
        %1353 = vmatpush.bf16.msra.mxu0 %v1315
        %1354 = vmatpush.bf16.msra.mxu0 %v1314
        %1355 = vmatpush.bf16.msra.mxu0 %v1313
        %1356 = vmatpush.bf16.msra.mxu0 %v1312
        %1357 = vmatmul.bf16.gmra.mxu0 %v1203
        %v1358 = vpop.f32.mrf.mxu0
        %v1359 = vadd.f32 %v1346, %v1358
        %v1360 = vpop.f32.mrf.mxu0
        %1361 = vdwg.mxu0
        %v1362 = vadd.f32 %v1099, %v1359
        %v1363 = vld [vmem:[%s12] sm:$0x1]
        %v1364 = vld [vmem:[%s13] sm:$0x1]
        %v1365 = vsel %vm1042, %v1362, 0.0
        %1366 = vadd.xlane.f32.xlu0 %v1365
        %v1367 = vpop.xlane.xlu0 %1366
        %v1368 = vmul.f32 %v1367, %v1072
        %v1369 = vsub.f32 %v1362, %v1368
        %v1370 = vmul.f32 %v1369, %v1369
        %v1371 = vsel %vm1042, %v1370, 0.0
        %1372 = vadd.xlane.f32.xlu0 %v1371
        %v1373 = vpop.xlane.xlu0 %1372
        %v1374 = vmul.f32 %v1373, %v1072
        %v1375 = vadd.f32 %v1374, 1e-05
        %v1376 = vrsqrt.pop %v1375
        %v1377 = vmul.f32 %v1376, %v1375
        %v1378 = vmul.f32 %v1377, %v1376
        %v1379 = vmul.f32 0.5, %v1378
        %v1380 = vsub.f32 1.5, %v1379
        %v1381 = vmul.f32 %v1376, %v1380
        %vm1382 = vweird.f32 %v1375
        %vm1383 = vweird.f32 %v1376
        %vm1384 = vmor %vm1382, %vm1383
        %v1385 = vsel %vm1384, %v1376, %v1381
        %v1386 = vmul.f32 %v1369, %v1385
        %v1388 = vperm.slane %v1363, 0
        %v1390 = vmul.f32 %v1388, %v1386
        %v1392 = vperm.slane %v1364, 0
        %v1394 = vadd.f32 %v1390, %v1392
        %v1395 = vpack.c.bf16 %v1394, %v1394
        %vm1396 = vcmask 519168
        %1397 = vst.msk [vmem:[%s591] sm:$0xf] %vm1396, %v1395
        %s1398 = sand.u32 %s368, 1
        %s1399 = scalar_lea.sflag [#allocation4], %s1398
        %s1400 = sand.u32 %s368, 1
        %s1401 = smul.addr %s1400, 4
        %s1402 = scalar_lea.vmem [#allocation3], %s1401
        // Predicated region
        $region118: #{openai_gpt_encoder.7} parent=112 // pred_check
          %p1403 = pneg %p378
        $region119: #{openai_gpt_encoder.7} parent=112 // pred_check_branch
          %1405 = sbr.rel (%p1403) target = $region121
        $region120: #{openai_gpt_encoder.7} parent=112 // pred_region
          %1407 = vsyncadd %s1399, 0
          %s1408 = smul.addr %s32, 2
          %s1409 = sadd.s32 %s33, %s1408
          %s1410 = smul.addr %s1409, 4
          %s1411 = scalar_lea.hbm %s14, %s1410
          %s1413 = sshll.u32 %s1402, 4
          %s1414 = int_to_ptr.vmem [resolvable:$true] %s1413
          %s1415 = sshll.u32 %s1411, 4
          %s1416 = int_to_ptr.hbm [resolvable:$true] %s1415
          %1418 = dma.vmem_to_hbm [thread:$0]  %s1414, 64, %s1416, %s1399
        $region121: #{openai_gpt_encoder.7} parent=112 // pred_fallthru
          _
      $region113: #{openai_gpt_encoder.7} parent=5 // pred_fallthru
        _
      %p1419 = scmp.le.s32.totalorder 2, %s23
      // Predicated region
      $region122: #{openai_gpt_encoder.7} parent=5 // pred_check
        %p1420 = pneg %p1419
      $region123: #{openai_gpt_encoder.7} parent=5 // pred_check_branch
        %1422 = sbr.rel (%p1420) target = $region125
      $region124: #{openai_gpt_encoder.7} parent=5 // pred_region
        %s1423 = ssub.s32 %s23, 2
        // Predicated region
        $region126: #{openai_gpt_encoder.7} parent=124 // pred_check
          %p1424 = pneg %p384
        $region127: #{openai_gpt_encoder.7} parent=124 // pred_check_branch
          %1426 = sbr.rel (%p1424) target = $region129
        $region128: #{openai_gpt_encoder.7} parent=124 // pred_region
          %s1427 = sand.u32 %s369, 1
          %s1428 = scalar_lea.sflag [#allocation4], %s1427
          %s1429 = sand.u32 %s369, 1
          %s1430 = smul.addr %s1429, 4
          %s1431 = scalar_lea.vmem [#allocation3], %s1430
          %1433 = dma.done %s1428, 64
        $region129: #{openai_gpt_encoder.7} parent=124 // pred_fallthru
          _
      $region125: #{openai_gpt_encoder.7} parent=5 // pred_fallthru
        _
    $region6: #{openai_gpt_encoder.7} parent=1 // loop_footer
      %s27 = sadd.s32 1, %s23
    $region7: #{openai_gpt_encoder.7} parent=1 // loop_footer_branch
      %22 = sbr.rel target = $region3
    $region8: #{openai_gpt_encoder.7} parent=1 // loop_exit
      _
    %1434 = vsyncpa [#allocation4], 1
    %s1435 = scalar_lea.sflag [#allocation4], 1
    %1436 = vsyncpa %s1435, 1

// kernel: openai_gpt_encoder.5
$region0: #{openai_gpt_encoder.5}
  #allocation0 [shape = 'u32[]', space=smem, size = 0x4, offset = 0x4, fixed_abs, tag = 'smem constant byte address 0x4 - core index']
  #allocation1 [shape = 'u32[72,128]{1,0:T(1,128)}', space=vmem, size = 0x9000, scoped, tag = 'internal scratch']
  %s0 = inlined_call_operand.vmem [shape: bf16[2,16,64], index: 0, kind: input, shape index: {}]
  %s1 = inlined_call_operand.vmem [shape: bf16[2,4,16,16], index: 1, kind: input, shape index: {}]
  %s2 = inlined_call_operand.vmem [shape: bf16[2,4,16,16], index: 2, kind: input, shape index: {}]
  %s3 = inlined_call_operand.vmem [shape: bf16[2,4,16,16], index: 3, kind: input, shape index: {}]
  %s4 = inlined_call_operand.vmem [shape: bf16[64,64], index: 4, kind: input, shape index: {}]
  %s5 = inlined_call_operand.vmem [shape: f32[1,64], index: 5, kind: input, shape index: {}]
  %s6 = inlined_call_operand.vmem [shape: f32[1,64], index: 6, kind: input, shape index: {}]
  %s7 = inlined_call_operand.vmem [shape: f32[1,64], index: 7, kind: input, shape index: {}]
  %s8 = inlined_call_operand.vmem [shape: bf16[64,256], index: 8, kind: input, shape index: {}]
  %s9 = inlined_call_operand.vmem [shape: f32[1,256], index: 9, kind: input, shape index: {}]
  %s10 = inlined_call_operand.vmem [shape: bf16[256,64], index: 10, kind: input, shape index: {}]
  %s11 = inlined_call_operand.vmem [shape: f32[1,64], index: 11, kind: input, shape index: {}]
  %s12 = inlined_call_operand.vmem [shape: f32[1,64], index: 12, kind: input, shape index: {}]
  %s13 = inlined_call_operand.vmem [shape: f32[1,64], index: 13, kind: input, shape index: {}]
  %s14 = inlined_call_operand.vmem [shape: bf16[2,16,64], index: 14, kind: output, shape index: {}]
  %s15 = sld [smem:[#allocation0]]
  $region130: #{openai_gpt_encoder.5} parent=0
    _
  %s17 = ssub.s32 1, %s15
  %s18 = scalar_select 0, %s17, %s15
  $region1: #{openai_gpt_encoder.5} parent=0
    #allocation2 [shape = 'u8[16384]{0}', space=vmem, size = 0x4000, scoped, tag = 'input window, operand 1']
    loop: start=0, step=1, limit=6
    $region2: #{openai_gpt_encoder.5} parent=1 // loop_pre_header
      _
    $region3: #{openai_gpt_encoder.5} parent=1 // loop_header
      %s20 = sphi 0, %s24
      %p21 = scmp.ge.s32.totalorder %s20, 6
      %s27 = sphi 0, %s39
      %s28 = sphi 0, %s35
      %s29 = sphi 0, %s27
      %s30 = sphi 0, %s28
      %s31 = sphi 0, %s29
      %s32 = sphi 0, %s30
      %s44 = sphi 0, %s46
      %s47 = sphi 0, %s44
      %s48 = sphi 0, %s47
      %s64 = sphi 0, %s48
      %s72 = sphi 0, %s74
      %s75 = sphi 0, %s72
      %s76 = sphi 0, %s75
      %s92 = sphi 0, %s76
      %s98 = sphi 0, %s100
      %s101 = sphi 0, %s98
      %s102 = sphi 0, %s101
      %s118 = sphi 0, %s102
      %s124 = sphi 0, %s126
      %s127 = sphi 0, %s124
      %s128 = sphi 0, %s127
      %s144 = sphi 0, %s128
      %s148 = sphi 0, %s148
      %s150 = sphi 0, %s148
      %s151 = sphi 0, %s150
      %s165 = sphi 0, %s151
      %s169 = sphi 0, %s169
      %s171 = sphi 0, %s169
      %s172 = sphi 0, %s171
      %s186 = sphi 0, %s172
      %s190 = sphi 0, %s190
      %s192 = sphi 0, %s190
      %s193 = sphi 0, %s192
      %s207 = sphi 0, %s193
      %s211 = sphi 0, %s211
      %s213 = sphi 0, %s211
      %s214 = sphi 0, %s213
      %s228 = sphi 0, %s214
      %s232 = sphi 0, %s232
      %s234 = sphi 0, %s232
      %s235 = sphi 0, %s234
      %s249 = sphi 0, %s235
      %s253 = sphi 0, %s253
      %s255 = sphi 0, %s253
      %s256 = sphi 0, %s255
      %s270 = sphi 0, %s256
      %s274 = sphi 0, %s274
      %s276 = sphi 0, %s274
      %s277 = sphi 0, %s276
      %s291 = sphi 0, %s277
      %s295 = sphi 0, %s295
      %s297 = sphi 0, %s295
      %s298 = sphi 0, %s297
      %s312 = sphi 0, %s298
      %s316 = sphi 0, %s316
      %s318 = sphi 0, %s316
      %s319 = sphi 0, %s318
      %s333 = sphi 0, %s319
      %s337 = sphi 0, %s337
      %s339 = sphi 0, %s337
      %s340 = sphi 0, %s339
      %s354 = sphi 0, %s340
      %s362 = sphi 0, %s364
      %s365 = sphi 0, %s362
      %s366 = sphi 0, %s365
      %s382 = sphi 0, %s366
    $region4: #{openai_gpt_encoder.5} parent=1 // loop_header_branch
      %23 = sbr.rel (%p21) target = $region8
    $region5: #{openai_gpt_encoder.5} parent=1 // loop_body
      %s25 = ssub.s32 %s20, 1
      %s26 = ssub.s32 %s20, 2
      %s33 = sadd.s32 1, %s28
      %p34 = scmp.ge.s32.totalorder %s33, 2
      %s35 = scalar_select %p34, 0, %s33
      %s36 = sadd.s32 1, %s27
      %s37 = scalar_select %p34, %s36, %s27
      %p38 = scmp.ge.s32.totalorder %s37, 2
      %s39 = scalar_select %p38, 0, %s37
      %s40 = ssub.s32 %s27, %s39
      %s41 = ssub.s32 %s28, %s35
      %s42 = sor.u32 %s40, %s41
      %p43 = scmp.eq.s32.totalorder %s42, 0
      %s45 = sadd.s32 %s44, 1
      %s46 = scalar_select %p43, %s44, %s45
      %p49 = pneg %p43
      %p50 = scmp.eq.s32.totalorder %s20, 3
      %p51 = por %p49, %p50
      %p52 = scmp.ne.s32.totalorder %s44, %s47
      %p53 = scmp.eq.s32.totalorder %s20, 0
      %p54 = por %p52, %p53
      %p55 = scmp.ne.s32.totalorder %s44, %s47
      %p56 = scmp.eq.s32.totalorder %s25, 3
      %p57 = por %p55, %p56
      %p58 = scmp.ne.s32.totalorder %s47, %s48
      %p59 = scmp.eq.s32.totalorder %s25, 0
      %p60 = por %p58, %p59
      %p61 = scmp.ne.s32.totalorder %s47, %s48
      %p62 = scmp.eq.s32.totalorder %s26, 3
      %p63 = por %p61, %p62
      %p65 = scmp.ne.s32.totalorder %s48, %s64
      %p66 = scmp.eq.s32.totalorder %s26, 0
      %p67 = por %p65, %p66
      %s68 = ssub.s32 %s27, %s39
      %s69 = ssub.s32 %s28, %s35
      %s70 = sor.u32 %s68, %s69
      %p71 = scmp.eq.s32.totalorder %s70, 0
      %s73 = sadd.s32 %s72, 1
      %s74 = scalar_select %p71, %s72, %s73
      %p77 = pneg %p71
      %p78 = scmp.eq.s32.totalorder %s20, 3
      %p79 = por %p77, %p78
      %p80 = scmp.ne.s32.totalorder %s72, %s75
      %p81 = scmp.eq.s32.totalorder %s20, 0
      %p82 = por %p80, %p81
      %p83 = scmp.ne.s32.totalorder %s72, %s75
      %p84 = scmp.eq.s32.totalorder %s25, 3
      %p85 = por %p83, %p84
      %p86 = scmp.ne.s32.totalorder %s75, %s76
      %p87 = scmp.eq.s32.totalorder %s25, 0
      %p88 = por %p86, %p87
      %p89 = scmp.ne.s32.totalorder %s75, %s76
      %p90 = scmp.eq.s32.totalorder %s26, 3
      %p91 = por %p89, %p90
      %p93 = scmp.ne.s32.totalorder %s76, %s92
      %p94 = scmp.eq.s32.totalorder %s26, 0
      %p95 = por %p93, %p94
      %s96 = ssub.s32 %s27, %s39
      %p97 = scmp.eq.s32.totalorder %s96, 0
      %s99 = sadd.s32 %s98, 1
      %s100 = scalar_select %p97, %s98, %s99
      %p103 = pneg %p97
      %p104 = scmp.eq.s32.totalorder %s20, 3
      %p105 = por %p103, %p104
      %p106 = scmp.ne.s32.totalorder %s98, %s101
      %p107 = scmp.eq.s32.totalorder %s20, 0
      %p108 = por %p106, %p107
      %p109 = scmp.ne.s32.totalorder %s98, %s101
      %p110 = scmp.eq.s32.totalorder %s25, 3
      %p111 = por %p109, %p110
      %p112 = scmp.ne.s32.totalorder %s101, %s102
      %p113 = scmp.eq.s32.totalorder %s25, 0
      %p114 = por %p112, %p113
      %p115 = scmp.ne.s32.totalorder %s101, %s102
      %p116 = scmp.eq.s32.totalorder %s26, 3
      %p117 = por %p115, %p116
      %p119 = scmp.ne.s32.totalorder %s102, %s118
      %p120 = scmp.eq.s32.totalorder %s26, 0
      %p121 = por %p119, %p120
      %s122 = ssub.s32 %s27, %s39
      %p123 = scmp.eq.s32.totalorder %s122, 0
      %s125 = sadd.s32 %s124, 1
      %s126 = scalar_select %p123, %s124, %s125
      %p129 = pneg %p123
      %p130 = scmp.eq.s32.totalorder %s20, 3
      %p131 = por %p129, %p130
      %p132 = scmp.ne.s32.totalorder %s124, %s127
      %p133 = scmp.eq.s32.totalorder %s20, 0
      %p134 = por %p132, %p133
      %p135 = scmp.ne.s32.totalorder %s124, %s127
      %p136 = scmp.eq.s32.totalorder %s25, 3
      %p137 = por %p135, %p136
      %p138 = scmp.ne.s32.totalorder %s127, %s128
      %p139 = scmp.eq.s32.totalorder %s25, 0
      %p140 = por %p138, %p139
      %p141 = scmp.ne.s32.totalorder %s127, %s128
      %p142 = scmp.eq.s32.totalorder %s26, 3
      %p143 = por %p141, %p142
      %p145 = scmp.ne.s32.totalorder %s128, %s144
      %p146 = scmp.eq.s32.totalorder %s26, 0
      %p147 = por %p145, %p146
      %s149 = sadd.s32 %s148, 1
      %p152 = scmp.eq.s32.totalorder %s20, 3
      %p153 = scmp.ne.s32.totalorder %s148, %s150
      %p154 = scmp.eq.s32.totalorder %s20, 0
      %p155 = por %p153, %p154
      %p156 = scmp.ne.s32.totalorder %s148, %s150
      %p157 = scmp.eq.s32.totalorder %s25, 3
      %p158 = por %p156, %p157
      %p159 = scmp.ne.s32.totalorder %s150, %s151
      %p160 = scmp.eq.s32.totalorder %s25, 0
      %p161 = por %p159, %p160
      %p162 = scmp.ne.s32.totalorder %s150, %s151
      %p163 = scmp.eq.s32.totalorder %s26, 3
      %p164 = por %p162, %p163
      %p166 = scmp.ne.s32.totalorder %s151, %s165
      %p167 = scmp.eq.s32.totalorder %s26, 0
      %p168 = por %p166, %p167
      %s170 = sadd.s32 %s169, 1
      %p173 = scmp.eq.s32.totalorder %s20, 3
      %p174 = scmp.ne.s32.totalorder %s169, %s171
      %p175 = scmp.eq.s32.totalorder %s20, 0
      %p176 = por %p174, %p175
      %p177 = scmp.ne.s32.totalorder %s169, %s171
      %p178 = scmp.eq.s32.totalorder %s25, 3
      %p179 = por %p177, %p178
      %p180 = scmp.ne.s32.totalorder %s171, %s172
      %p181 = scmp.eq.s32.totalorder %s25, 0
      %p182 = por %p180, %p181
      %p183 = scmp.ne.s32.totalorder %s171, %s172
      %p184 = scmp.eq.s32.totalorder %s26, 3
      %p185 = por %p183, %p184
      %p187 = scmp.ne.s32.totalorder %s172, %s186
      %p188 = scmp.eq.s32.totalorder %s26, 0
      %p189 = por %p187, %p188
      %s191 = sadd.s32 %s190, 1
      %p194 = scmp.eq.s32.totalorder %s20, 3
      %p195 = scmp.ne.s32.totalorder %s190, %s192
      %p196 = scmp.eq.s32.totalorder %s20, 0
      %p197 = por %p195, %p196
      %p198 = scmp.ne.s32.totalorder %s190, %s192
      %p199 = scmp.eq.s32.totalorder %s25, 3
      %p200 = por %p198, %p199
      %p201 = scmp.ne.s32.totalorder %s192, %s193
      %p202 = scmp.eq.s32.totalorder %s25, 0
      %p203 = por %p201, %p202
      %p204 = scmp.ne.s32.totalorder %s192, %s193
      %p205 = scmp.eq.s32.totalorder %s26, 3
      %p206 = por %p204, %p205
      %p208 = scmp.ne.s32.totalorder %s193, %s207
      %p209 = scmp.eq.s32.totalorder %s26, 0
      %p210 = por %p208, %p209
      %s212 = sadd.s32 %s211, 1
      %p215 = scmp.eq.s32.totalorder %s20, 3
      %p216 = scmp.ne.s32.totalorder %s211, %s213
      %p217 = scmp.eq.s32.totalorder %s20, 0
      %p218 = por %p216, %p217
      %p219 = scmp.ne.s32.totalorder %s211, %s213
      %p220 = scmp.eq.s32.totalorder %s25, 3
      %p221 = por %p219, %p220
      %p222 = scmp.ne.s32.totalorder %s213, %s214
      %p223 = scmp.eq.s32.totalorder %s25, 0
      %p224 = por %p222, %p223
      %p225 = scmp.ne.s32.totalorder %s213, %s214
      %p226 = scmp.eq.s32.totalorder %s26, 3
      %p227 = por %p225, %p226
      %p229 = scmp.ne.s32.totalorder %s214, %s228
      %p230 = scmp.eq.s32.totalorder %s26, 0
      %p231 = por %p229, %p230
      %s233 = sadd.s32 %s232, 1
      %p236 = scmp.eq.s32.totalorder %s20, 3
      %p237 = scmp.ne.s32.totalorder %s232, %s234
      %p238 = scmp.eq.s32.totalorder %s20, 0
      %p239 = por %p237, %p238
      %p240 = scmp.ne.s32.totalorder %s232, %s234
      %p241 = scmp.eq.s32.totalorder %s25, 3
      %p242 = por %p240, %p241
      %p243 = scmp.ne.s32.totalorder %s234, %s235
      %p244 = scmp.eq.s32.totalorder %s25, 0
      %p245 = por %p243, %p244
      %p246 = scmp.ne.s32.totalorder %s234, %s235
      %p247 = scmp.eq.s32.totalorder %s26, 3
      %p248 = por %p246, %p247
      %p250 = scmp.ne.s32.totalorder %s235, %s249
      %p251 = scmp.eq.s32.totalorder %s26, 0
      %p252 = por %p250, %p251
      %s254 = sadd.s32 %s253, 1
      %p257 = scmp.eq.s32.totalorder %s20, 3
      %p258 = scmp.ne.s32.totalorder %s253, %s255
      %p259 = scmp.eq.s32.totalorder %s20, 0
      %p260 = por %p258, %p259
      %p261 = scmp.ne.s32.totalorder %s253, %s255
      %p262 = scmp.eq.s32.totalorder %s25, 3
      %p263 = por %p261, %p262
      %p264 = scmp.ne.s32.totalorder %s255, %s256
      %p265 = scmp.eq.s32.totalorder %s25, 0
      %p266 = por %p264, %p265
      %p267 = scmp.ne.s32.totalorder %s255, %s256
      %p268 = scmp.eq.s32.totalorder %s26, 3
      %p269 = por %p267, %p268
      %p271 = scmp.ne.s32.totalorder %s256, %s270
      %p272 = scmp.eq.s32.totalorder %s26, 0
      %p273 = por %p271, %p272
      %s275 = sadd.s32 %s274, 1
      %p278 = scmp.eq.s32.totalorder %s20, 3
      %p279 = scmp.ne.s32.totalorder %s274, %s276
      %p280 = scmp.eq.s32.totalorder %s20, 0
      %p281 = por %p279, %p280
      %p282 = scmp.ne.s32.totalorder %s274, %s276
      %p283 = scmp.eq.s32.totalorder %s25, 3
      %p284 = por %p282, %p283
      %p285 = scmp.ne.s32.totalorder %s276, %s277
      %p286 = scmp.eq.s32.totalorder %s25, 0
      %p287 = por %p285, %p286
      %p288 = scmp.ne.s32.totalorder %s276, %s277
      %p289 = scmp.eq.s32.totalorder %s26, 3
      %p290 = por %p288, %p289
      %p292 = scmp.ne.s32.totalorder %s277, %s291
      %p293 = scmp.eq.s32.totalorder %s26, 0
      %p294 = por %p292, %p293
      %s296 = sadd.s32 %s295, 1
      %p299 = scmp.eq.s32.totalorder %s20, 3
      %p300 = scmp.ne.s32.totalorder %s295, %s297
      %p301 = scmp.eq.s32.totalorder %s20, 0
      %p302 = por %p300, %p301
      %p303 = scmp.ne.s32.totalorder %s295, %s297
      %p304 = scmp.eq.s32.totalorder %s25, 3
      %p305 = por %p303, %p304
      %p306 = scmp.ne.s32.totalorder %s297, %s298
      %p307 = scmp.eq.s32.totalorder %s25, 0
      %p308 = por %p306, %p307
      %p309 = scmp.ne.s32.totalorder %s297, %s298
      %p310 = scmp.eq.s32.totalorder %s26, 3
      %p311 = por %p309, %p310
      %p313 = scmp.ne.s32.totalorder %s298, %s312
      %p314 = scmp.eq.s32.totalorder %s26, 0
      %p315 = por %p313, %p314
      %s317 = sadd.s32 %s316, 1
      %p320 = scmp.eq.s32.totalorder %s20, 3
      %p321 = scmp.ne.s32.totalorder %s316, %s318
      %p322 = scmp.eq.s32.totalorder %s20, 0
      %p323 = por %p321, %p322
      %p324 = scmp.ne.s32.totalorder %s316, %s318
      %p325 = scmp.eq.s32.totalorder %s25, 3
      %p326 = por %p324, %p325
      %p327 = scmp.ne.s32.totalorder %s318, %s319
      %p328 = scmp.eq.s32.totalorder %s25, 0
      %p329 = por %p327, %p328
      %p330 = scmp.ne.s32.totalorder %s318, %s319
      %p331 = scmp.eq.s32.totalorder %s26, 3
      %p332 = por %p330, %p331
      %p334 = scmp.ne.s32.totalorder %s319, %s333
      %p335 = scmp.eq.s32.totalorder %s26, 0
      %p336 = por %p334, %p335
      %s338 = sadd.s32 %s337, 1
      %p341 = scmp.eq.s32.totalorder %s20, 3
      %p342 = scmp.ne.s32.totalorder %s337, %s339
      %p343 = scmp.eq.s32.totalorder %s20, 0
      %p344 = por %p342, %p343
      %p345 = scmp.ne.s32.totalorder %s337, %s339
      %p346 = scmp.eq.s32.totalorder %s25, 3
      %p347 = por %p345, %p346
      %p348 = scmp.ne.s32.totalorder %s339, %s340
      %p349 = scmp.eq.s32.totalorder %s25, 0
      %p350 = por %p348, %p349
      %p351 = scmp.ne.s32.totalorder %s339, %s340
      %p352 = scmp.eq.s32.totalorder %s26, 3
      %p353 = por %p351, %p352
      %p355 = scmp.ne.s32.totalorder %s340, %s354
      %p356 = scmp.eq.s32.totalorder %s26, 0
      %p357 = por %p355, %p356
      %s358 = ssub.s32 %s27, %s39
      %s359 = ssub.s32 %s28, %s35
      %s360 = sor.u32 %s358, %s359
      %p361 = scmp.eq.s32.totalorder %s360, 0
      %s363 = sadd.s32 %s362, 1
      %s364 = scalar_select %p361, %s362, %s363
      %p367 = pneg %p361
      %p368 = scmp.eq.s32.totalorder %s20, 3
      %p369 = por %p367, %p368
      %p370 = scmp.ne.s32.totalorder %s362, %s365
      %p371 = scmp.eq.s32.totalorder %s20, 0
      %p372 = por %p370, %p371
      %p373 = scmp.ne.s32.totalorder %s362, %s365
      %p374 = scmp.eq.s32.totalorder %s25, 3
      %p375 = por %p373, %p374
      %p376 = scmp.ne.s32.totalorder %s365, %s366
      %p377 = scmp.eq.s32.totalorder %s25, 0
      %p378 = por %p376, %p377
      %p379 = scmp.ne.s32.totalorder %s365, %s366
      %p380 = scmp.eq.s32.totalorder %s26, 3
      %p381 = por %p379, %p380
      %p383 = scmp.ne.s32.totalorder %s366, %s382
      %p384 = scmp.eq.s32.totalorder %s26, 0
      %p385 = por %p383, %p384
      %p386 = scmp.le.s32.totalorder 1, %s20
      %p387 = scmp.lt.s32.totalorder %s20, 5
      %p388 = pnand %p386, %p387
      %p389 = pneg %p388
      // Predicated region
      $region9: #{openai_gpt_encoder.5} parent=5 // pred_check
        _
      $region10: #{openai_gpt_encoder.5} parent=5 // pred_check_branch
        %391 = sbr.rel (%p388) target = $region12
      $region11: #{openai_gpt_encoder.5} parent=5 // pred_region
        %s392 = ssub.s32 %s20, 1
        // Predicated region
        $region13: #{openai_gpt_encoder.5} parent=11 // pred_check
          %p393 = pneg %p161
        $region14: #{openai_gpt_encoder.5} parent=11 // pred_check_branch
          %395 = sbr.rel (%p393) target = $region16
        $region15: #{openai_gpt_encoder.5} parent=11 // pred_region
          _
        $region16: #{openai_gpt_encoder.5} parent=11 // pred_fallthru
          _
        // Predicated region
        $region17: #{openai_gpt_encoder.5} parent=11 // pred_check
          %p396 = pneg %p182
        $region18: #{openai_gpt_encoder.5} parent=11 // pred_check_branch
          %398 = sbr.rel (%p396) target = $region20
        $region19: #{openai_gpt_encoder.5} parent=11 // pred_region
          _
        $region20: #{openai_gpt_encoder.5} parent=11 // pred_fallthru
          _
        // Predicated region
        $region21: #{openai_gpt_encoder.5} parent=11 // pred_check
          %p399 = pneg %p203
        $region22: #{openai_gpt_encoder.5} parent=11 // pred_check_branch
          %401 = sbr.rel (%p399) target = $region24
        $region23: #{openai_gpt_encoder.5} parent=11 // pred_region
          _
        $region24: #{openai_gpt_encoder.5} parent=11 // pred_fallthru
          _
        // Predicated region
        $region25: #{openai_gpt_encoder.5} parent=11 // pred_check
          %p402 = pneg %p224
        $region26: #{openai_gpt_encoder.5} parent=11 // pred_check_branch
          %404 = sbr.rel (%p402) target = $region28
        $region27: #{openai_gpt_encoder.5} parent=11 // pred_region
          _
        $region28: #{openai_gpt_encoder.5} parent=11 // pred_fallthru
          _
        // Predicated region
        $region29: #{openai_gpt_encoder.5} parent=11 // pred_check
          %p405 = pneg %p245
        $region30: #{openai_gpt_encoder.5} parent=11 // pred_check_branch
          %407 = sbr.rel (%p405) target = $region32
        $region31: #{openai_gpt_encoder.5} parent=11 // pred_region
          _
        $region32: #{openai_gpt_encoder.5} parent=11 // pred_fallthru
          _
        // Predicated region
        $region33: #{openai_gpt_encoder.5} parent=11 // pred_check
          %p408 = pneg %p266
        $region34: #{openai_gpt_encoder.5} parent=11 // pred_check_branch
          %410 = sbr.rel (%p408) target = $region36
        $region35: #{openai_gpt_encoder.5} parent=11 // pred_region
          _
        $region36: #{openai_gpt_encoder.5} parent=11 // pred_fallthru
          _
        // Predicated region
        $region37: #{openai_gpt_encoder.5} parent=11 // pred_check
          %p411 = pneg %p287
        $region38: #{openai_gpt_encoder.5} parent=11 // pred_check_branch
          %413 = sbr.rel (%p411) target = $region40
        $region39: #{openai_gpt_encoder.5} parent=11 // pred_region
          _
        $region40: #{openai_gpt_encoder.5} parent=11 // pred_fallthru
          _
        // Predicated region
        $region41: #{openai_gpt_encoder.5} parent=11 // pred_check
          %p414 = pneg %p308
        $region42: #{openai_gpt_encoder.5} parent=11 // pred_check_branch
          %416 = sbr.rel (%p414) target = $region44
        $region43: #{openai_gpt_encoder.5} parent=11 // pred_region
          _
        $region44: #{openai_gpt_encoder.5} parent=11 // pred_fallthru
          _
        // Predicated region
        $region45: #{openai_gpt_encoder.5} parent=11 // pred_check
          %p417 = pneg %p329
        $region46: #{openai_gpt_encoder.5} parent=11 // pred_check_branch
          %419 = sbr.rel (%p417) target = $region48
        $region47: #{openai_gpt_encoder.5} parent=11 // pred_region
          _
        $region48: #{openai_gpt_encoder.5} parent=11 // pred_fallthru
          _
        // Predicated region
        $region49: #{openai_gpt_encoder.5} parent=11 // pred_check
          %p420 = pneg %p350
        $region50: #{openai_gpt_encoder.5} parent=11 // pred_check_branch
          %422 = sbr.rel (%p420) target = $region52
        $region51: #{openai_gpt_encoder.5} parent=11 // pred_region
          _
        $region52: #{openai_gpt_encoder.5} parent=11 // pred_fallthru
          _
      $region12: #{openai_gpt_encoder.5} parent=5 // pred_fallthru
        _
      %p423 = scmp.lt.s32.totalorder %s20, 4
      // Predicated region
      $region53: #{openai_gpt_encoder.5} parent=5 // pred_check
        %p424 = pneg %p423
      $region54: #{openai_gpt_encoder.5} parent=5 // pred_check_branch
        %426 = sbr.rel (%p424) target = $region56
      $region55: #{openai_gpt_encoder.5} parent=5 // pred_region
        // Predicated region
        $region57: #{openai_gpt_encoder.5} parent=55 // pred_check
          %p427 = pneg %p54
        $region58: #{openai_gpt_encoder.5} parent=55 // pred_check_branch
          %429 = sbr.rel (%p427) target = $region60
        $region59: #{openai_gpt_encoder.5} parent=55 // pred_region
          %p430 = scmp.lt.s32.totalorder %s27, 1
          %s431 = scalar_select %p430, %s27, 1
          %p432 = scmp.lt.s32.totalorder %s28, 1
          %s433 = scalar_select %p432, %s28, 1
          %s434 = smul.addr %s431, 2
          %s435 = sadd.s32 %s433, %s434
          %s436 = smul.addr %s435, 4
          %s437 = scalar_lea.vmem %s0, %s436
        $region60: #{openai_gpt_encoder.5} parent=55 // pred_fallthru
          _
        // Predicated region
        $region61: #{openai_gpt_encoder.5} parent=55 // pred_check
          %p438 = pneg %p82
        $region62: #{openai_gpt_encoder.5} parent=55 // pred_check_branch
          %440 = sbr.rel (%p438) target = $region64
        $region63: #{openai_gpt_encoder.5} parent=55 // pred_region
          %s441 = sand.u32 %s72, 1
          %s442 = sand.u32 %s72, 1
          %s443 = smul.addr %s442, 16
          %s444 = scalar_lea.vmem [#allocation2], %s443
          %s445 = smul.addr %s27, 8
          %s446 = sadd.s32 %s28, %s445
          %s447 = smul.addr %s446, 4
          %s448 = scalar_lea.vmem %s1, %s447
          // Predicated region
          $region65: #{openai_gpt_encoder.5} parent=63 // pred_check
            _
          $region66: #{openai_gpt_encoder.5} parent=63 // pred_check_branch
            %450 = sbr.rel (0) target = $region68
          $region67: #{openai_gpt_encoder.5} parent=63 // pred_region
            // Predicated region
            $region69: #{openai_gpt_encoder.5} parent=67 // pred_check
              _
            $region70: #{openai_gpt_encoder.5} parent=67 // pred_check_branch
              %452 = sbr.rel target = $region72
            $region71: #{openai_gpt_encoder.5} parent=67 // pred_region
              // Predicated region
              $region84: #{openai_gpt_encoder.5} parent=71 // pred_check
                _
              $region85: #{openai_gpt_encoder.5} parent=71 // pred_check_branch
                %474 = sbr.rel (0) target = $region87
              $region86: #{openai_gpt_encoder.5} parent=71 // pred_region
                loop: start=0, step=1, limit=1
                $region88: #{openai_gpt_encoder.5} parent=86 // loop_pre_header
                  _
                $region89: #{openai_gpt_encoder.5} parent=86 // loop_header
                  %s476 = sphi 0, %s480
                  %p477 = scmp.ge.s32.totalorder %s476, 1
                  %s481 = sphi %s448, %s448
                  %s482 = sphi %s444, %s444
                $region90: #{openai_gpt_encoder.5} parent=86 // loop_header_branch
                  %479 = sbr.rel (%p477) target = $region94
                $region91: #{openai_gpt_encoder.5} parent=86 // loop_body
                  _
                $region92: #{openai_gpt_encoder.5} parent=86 // loop_footer
                  %s480 = sadd.s32 1, %s476
                $region93: #{openai_gpt_encoder.5} parent=86 // loop_footer_branch
                  %475 = sbr.rel target = $region89
                $region94: #{openai_gpt_encoder.5} parent=86 // loop_exit
                  _
                %s484 = ssub.s32 16, 1
                loop: start=0, step=1, limit=1
                $region95: #{openai_gpt_encoder.5} parent=86 // loop_pre_header
                  _
                $region96: #{openai_gpt_encoder.5} parent=86 // loop_header
                  %s486 = sphi 0, %s490
                  %p487 = scmp.ge.s32.totalorder %s486, 1
                  %s491 = sphi %s448, %s448
                  %s492 = sphi %s444, %s444
                $region97: #{openai_gpt_encoder.5} parent=86 // loop_header_branch
                  %489 = sbr.rel (%p487) target = $region101
                $region98: #{openai_gpt_encoder.5} parent=86 // loop_body
                  %v493 = vld [vmem:[%s491] sm:%s484]
                  %494 = vst [vmem:[%s492] sm:%s484] %v493
                  %v495 = vld [vmem:[%s491 + $0x8] sm:%s484]
                  %496 = vst [vmem:[%s492 + $0x4] sm:%s484] %v495
                  %v497 = vld [vmem:[%s491 + $0x10] sm:%s484]
                  %498 = vst [vmem:[%s492 + $0x8] sm:%s484] %v497
                  %v499 = vld [vmem:[%s491 + $0x18] sm:%s484]
                  %500 = vst [vmem:[%s492 + $0xc] sm:%s484] %v499
                $region99: #{openai_gpt_encoder.5} parent=86 // loop_footer
                  %s490 = sadd.s32 1, %s486
                $region100: #{openai_gpt_encoder.5} parent=86 // loop_footer_branch
                  %485 = sbr.rel target = $region96
                $region101: #{openai_gpt_encoder.5} parent=86 // loop_exit
                  _
              $region87: #{openai_gpt_encoder.5} parent=71 // pred_fallthru
                _
            $region72: #{openai_gpt_encoder.5} parent=67 // pred_fallthru
              _
            // Predicated region
            $region73: #{openai_gpt_encoder.5} parent=67 // pred_check
              _
            $region74: #{openai_gpt_encoder.5} parent=67 // pred_check_branch
              %454 = sbr.rel (0) target = $region76
            $region75: #{openai_gpt_encoder.5} parent=67 // pred_region
              %s456 = ssub.s32 16, 1
              loop: start=0, step=1, limit=1
              $region77: #{openai_gpt_encoder.5} parent=75 // loop_pre_header
                _
              $region78: #{openai_gpt_encoder.5} parent=75 // loop_header
                %s458 = sphi 0, %s462
                %p459 = scmp.ge.s32.totalorder %s458, 1
                %s463 = sphi %s448, %s448
                %s464 = sphi %s444, %s444
              $region79: #{openai_gpt_encoder.5} parent=75 // loop_header_branch
                %461 = sbr.rel (%p459) target = $region83
              $region80: #{openai_gpt_encoder.5} parent=75 // loop_body
                %v465 = vld [vmem:[%s463] sm:%s456]
                %466 = vst [vmem:[%s464] sm:%s456] %v465
                %v467 = vld [vmem:[%s463 + $0x8] sm:%s456]
                %468 = vst [vmem:[%s464 + $0x4] sm:%s456] %v467
                %v469 = vld [vmem:[%s463 + $0x10] sm:%s456]
                %470 = vst [vmem:[%s464 + $0x8] sm:%s456] %v469
                %v471 = vld [vmem:[%s463 + $0x18] sm:%s456]
                %472 = vst [vmem:[%s464 + $0xc] sm:%s456] %v471
              $region81: #{openai_gpt_encoder.5} parent=75 // loop_footer
                %s462 = sadd.s32 1, %s458
              $region82: #{openai_gpt_encoder.5} parent=75 // loop_footer_branch
                %457 = sbr.rel target = $region78
              $region83: #{openai_gpt_encoder.5} parent=75 // loop_exit
                _
            $region76: #{openai_gpt_encoder.5} parent=67 // pred_fallthru
              _
          $region68: #{openai_gpt_encoder.5} parent=63 // pred_fallthru
            _
          %501 = vnop
        $region64: #{openai_gpt_encoder.5} parent=55 // pred_fallthru
          _
        // Predicated region
        $region102: #{openai_gpt_encoder.5} parent=55 // pred_check
          %p502 = pneg %p108
        $region103: #{openai_gpt_encoder.5} parent=55 // pred_check_branch
          %504 = sbr.rel (%p502) target = $region105
        $region104: #{openai_gpt_encoder.5} parent=55 // pred_region
          %p505 = scmp.lt.s32.totalorder %s27, 1
          %s506 = scalar_select %p505, %s27, 1
          %s507 = smul.addr %s506, 8
          %s508 = smul.addr %s507, 4
          %s509 = scalar_lea.vmem %s2, %s508
        $region105: #{openai_gpt_encoder.5} parent=55 // pred_fallthru
          _
        // Predicated region
        $region106: #{openai_gpt_encoder.5} parent=55 // pred_check
          %p510 = pneg %p134
        $region107: #{openai_gpt_encoder.5} parent=55 // pred_check_branch
          %512 = sbr.rel (%p510) target = $region109
        $region108: #{openai_gpt_encoder.5} parent=55 // pred_region
          %p513 = scmp.lt.s32.totalorder %s27, 1
          %s514 = scalar_select %p513, %s27, 1
          %s515 = smul.addr %s514, 8
          %s516 = smul.addr %s515, 4
          %s517 = scalar_lea.vmem %s3, %s516
        $region109: #{openai_gpt_encoder.5} parent=55 // pred_fallthru
          _
      $region56: #{openai_gpt_encoder.5} parent=5 // pred_fallthru
        _
      %p518 = scmp.le.s32.totalorder 1, %s20
      %p519 = scmp.lt.s32.totalorder %s20, 5
      %p520 = pnand %p518, %p519
      %p521 = pneg %p520
      // Predicated region
      $region110: #{openai_gpt_encoder.5} parent=5 // pred_check
        _
      $region111: #{openai_gpt_encoder.5} parent=5 // pred_check_branch
        %523 = sbr.rel (%p520) target = $region113
      $region112: #{openai_gpt_encoder.5} parent=5 // pred_region
        %s524 = ssub.s32 %s20, 1
        %s525 = sand.u32 %s75, 1
        %s526 = sand.u32 %s75, 1
        %s527 = smul.addr %s526, 16
        %s528 = scalar_lea.vmem [#allocation2], %s527
        // Predicated region
        $region114: #{openai_gpt_encoder.5} parent=112 // pred_check
          %p529 = pneg %p88
        $region115: #{openai_gpt_encoder.5} parent=112 // pred_check_branch
          %531 = sbr.rel (%p529) target = $region117
        $region116: #{openai_gpt_encoder.5} parent=112 // pred_region
          _
        $region117: #{openai_gpt_encoder.5} parent=112 // pred_fallthru
          _
        %p532 = scmp.lt.s32.totalorder %s29, 1
        %s533 = scalar_select %p532, %s29, 1
        %p534 = scmp.lt.s32.totalorder %s30, 1
        %s535 = scalar_select %p534, %s30, 1
        %s536 = smul.addr %s533, 2
        %s537 = sadd.s32 %s535, %s536
        %s538 = smul.addr %s537, 4
        %s539 = scalar_lea.vmem %s0, %s538
        %p540 = pneg %p60
        %p541 = pneg %p57
        %s542 = sand.u32 %s75, 1
        %s543 = sand.u32 %s75, 1
        %s544 = smul.addr %s543, 16
        %s545 = scalar_lea.vmem [#allocation2], %s544
        %p546 = pneg %p88
        %p547 = pneg %p85
        %p548 = scmp.lt.s32.totalorder %s29, 1
        %s549 = scalar_select %p548, %s29, 1
        %s550 = smul.addr %s549, 8
        %s551 = smul.addr %s550, 4
        %s552 = scalar_lea.vmem %s2, %s551
        %p553 = pneg %p114
        %p554 = pneg %p111
        %p555 = scmp.lt.s32.totalorder %s29, 1
        %s556 = scalar_select %p555, %s29, 1
        %s557 = smul.addr %s556, 8
        %s558 = smul.addr %s557, 4
        %s559 = scalar_lea.vmem %s3, %s558
        %p560 = pneg %p140
        %p561 = pneg %p137
        %p562 = pneg %p161
        %p563 = pneg %p158
        %p564 = pneg %p182
        %p565 = pneg %p179
        %p566 = pneg %p203
        %p567 = pneg %p200
        %p568 = pneg %p224
        %p569 = pneg %p221
        %p570 = pneg %p245
        %p571 = pneg %p242
        %p572 = pneg %p266
        %p573 = pneg %p263
        %p574 = pneg %p287
        %p575 = pneg %p284
        %p576 = pneg %p308
        %p577 = pneg %p305
        %p578 = pneg %p329
        %p579 = pneg %p326
        %p580 = pneg %p350
        %p581 = pneg %p347
        %p582 = pneg %p378
        %p583 = pneg %p375
        %p584 = scmp.lt.s32.totalorder %s29, 1
        %s585 = scalar_select %p584, %s29, 1
        %p586 = scmp.lt.s32.totalorder %s30, 1
        %s587 = scalar_select %p586, %s30, 1
        %s588 = smul.addr %s585, 2
        %s589 = sadd.s32 %s587, %s588
        %s590 = smul.addr %s589, 4
        %s591 = scalar_lea.vmem %s14, %s590
        %p592 = scmp.lt.s32.totalorder %s29, 1
        %s593 = scalar_select %p592, %s29, 1
        %p594 = scmp.lt.s32.totalorder %s30, 1
        %s595 = scalar_select %p594, %s30, 1
        %s596 = smul.addr %s593, 2
        %s597 = sadd.s32 %s595, %s596
        %s598 = smul.addr %s597, 4
        %s599 = scalar_lea.vmem %s0, %s598
        %p600 = scmp.lt.s32.totalorder %s29, 1
        %s601 = scalar_select %p600, %s29, 1
        %s602 = smul.addr %s601, 8
        %s603 = smul.addr %s602, 4
        %s604 = scalar_lea.vmem %s2, %s603
        %p605 = scmp.lt.s32.totalorder %s29, 1
        %s606 = scalar_select %p605, %s29, 1
        %s607 = smul.addr %s606, 8
        %s608 = smul.addr %s607, 4
        %s609 = scalar_lea.vmem %s3, %s608
        %p610 = scmp.lt.s32.totalorder %s29, 1
        %s611 = scalar_select %p610, %s29, 1
        %p612 = scmp.lt.s32.totalorder %s30, 1
        %s613 = scalar_select %p612, %s30, 1
        %s614 = smul.addr %s611, 2
        %s615 = sadd.s32 %s613, %s614
        %s616 = smul.addr %s615, 4
        %s617 = scalar_lea.vmem %s14, %s616
        %v619 = vld [vmem:[%s528] sm:$0xf]
        %v620 = vld [vmem:[%s528 + $0x4] sm:$0xf]
        %v621 = vld [vmem:[%s528 + $0x8] sm:$0xf]
        %v622 = vld [vmem:[%s528 + $0xc] sm:$0xf]
        %v623 = vld [vmem:[%s604] sm:$0xf]
        %v624 = vld [vmem:[%s604 + $0x4] sm:$0xf]
        %v625 = vld [vmem:[%s604 + $0x8] sm:$0xf]
        %v626 = vld [vmem:[%s604 + $0xc] sm:$0xf]
        %v627 = vld [vmem:[%s604 + $0x10] sm:$0xf]
        %v628 = vld [vmem:[%s604 + $0x14] sm:$0xf]
        %v629 = vld [vmem:[%s604 + $0x18] sm:$0xf]
        %v630 = vld [vmem:[%s604 + $0x1c] sm:$0xf]
        %v631 = vld [vmem:[%s609] sm:$0xf]
        %v632 = vld [vmem:[%s609 + $0x4] sm:$0xf]
        %v633 = vld [vmem:[%s609 + $0x8] sm:$0xf]
        %v634 = vld [vmem:[%s609 + $0xc] sm:$0xf]
        %v635 = vld [vmem:[%s609 + $0x10] sm:$0xf]
        %v636 = vld [vmem:[%s609 + $0x14] sm:$0xf]
        %v637 = vld [vmem:[%s609 + $0x18] sm:$0xf]
        %v638 = vld [vmem:[%s609 + $0x1c] sm:$0xf]
        %v639 = vld [vmem:[%s599] sm:$0xf]
        %s640 = smul.u32 %s30, 8
        %v643 = vunpack.c.l.b16 %v623
        %v644 = vunpack.c.l.b16 %v624
        %v645 = vpack.c.b16 %v644, %v643
        %vm646 = vcmask 130048
        %v648 = vsel %vm646, %v619, 0
        %v651 = vsel %vm646, %v645, 0
        %653 = vmatpush.bf16.xpose.msra.mxu0 0
        %654 = vmatpush.bf16.xpose.msra.mxu0 0
        %655 = vmatpush.bf16.xpose.msra.mxu0 0
        %656 = vmatpush.bf16.xpose.msra.mxu0 0
        %657 = vmatpush.bf16.xpose.msra.mxu0 0
        %658 = vmatpush.bf16.xpose.msra.mxu0 0
        %659 = vmatpush.bf16.xpose.msra.mxu0 0
        %660 = vmatpush.bf16.xpose.msra.mxu0 %v651
        %661 = vmatmul.bf16.gmra.mxu0 %v648
        %v662 = vpop.f32.mrf.mxu0
        %v663 = vadd.f32 0.0, %v662
        %v664 = vpop.f32.mrf.mxu0
        %665 = vdwg.mxu0
        %v668 = vunpack.c.l.b16 %v625
        %v669 = vunpack.c.l.b16 %v626
        %v670 = vpack.c.b16 %v669, %v668
        %v672 = vsel %vm646, %v620, 0
        %v675 = vsel %vm646, %v670, 0
        %677 = vmatpush.bf16.xpose.msra.mxu0 0
        %678 = vmatpush.bf16.xpose.msra.mxu0 0
        %679 = vmatpush.bf16.xpose.msra.mxu0 0
        %680 = vmatpush.bf16.xpose.msra.mxu0 0
        %681 = vmatpush.bf16.xpose.msra.mxu0 0
        %682 = vmatpush.bf16.xpose.msra.mxu0 0
        %683 = vmatpush.bf16.xpose.msra.mxu0 0
        %684 = vmatpush.bf16.xpose.msra.mxu0 %v675
        %685 = vmatmul.bf16.gmra.mxu0 %v672
        %v686 = vpop.f32.mrf.mxu0
        %v687 = vadd.f32 0.0, %v686
        %v688 = vpop.f32.mrf.mxu0
        %689 = vdwg.mxu0
        %v692 = vunpack.c.l.b16 %v627
        %v693 = vunpack.c.l.b16 %v628
        %v694 = vpack.c.b16 %v693, %v692
        %v696 = vsel %vm646, %v621, 0
        %v699 = vsel %vm646, %v694, 0
        %701 = vmatpush.bf16.xpose.msra.mxu0 0
        %702 = vmatpush.bf16.xpose.msra.mxu0 0
        %703 = vmatpush.bf16.xpose.msra.mxu0 0
        %704 = vmatpush.bf16.xpose.msra.mxu0 0
        %705 = vmatpush.bf16.xpose.msra.mxu0 0
        %706 = vmatpush.bf16.xpose.msra.mxu0 0
        %707 = vmatpush.bf16.xpose.msra.mxu0 0
        %708 = vmatpush.bf16.xpose.msra.mxu0 %v699
        %709 = vmatmul.bf16.gmra.mxu0 %v696
        %v710 = vpop.f32.mrf.mxu0
        %v711 = vadd.f32 0.0, %v710
        %v712 = vpop.f32.mrf.mxu0
        %713 = vdwg.mxu0
        %v716 = vunpack.c.l.b16 %v629
        %v717 = vunpack.c.l.b16 %v630
        %v718 = vpack.c.b16 %v717, %v716
        %v720 = vsel %vm646, %v622, 0
        %v723 = vsel %vm646, %v718, 0
        %725 = vmatpush.bf16.xpose.msra.mxu0 0
        %726 = vmatpush.bf16.xpose.msra.mxu0 0
        %727 = vmatpush.bf16.xpose.msra.mxu0 0
        %728 = vmatpush.bf16.xpose.msra.mxu0 0
        %729 = vmatpush.bf16.xpose.msra.mxu0 0
        %730 = vmatpush.bf16.xpose.msra.mxu0 0
        %731 = vmatpush.bf16.xpose.msra.mxu0 0
        %732 = vmatpush.bf16.xpose.msra.mxu0 %v723
        %733 = vmatmul.bf16.gmra.mxu0 %v720
        %v734 = vpop.f32.mrf.mxu0
        %v735 = vadd.f32 0.0, %v734
        %v736 = vpop.f32.mrf.mxu0
        %737 = vdwg.mxu0
        %v738 = vlaneseq
        %v739 = vshrl.u32 %v738, 7
        %v740 = vstv %s640
        %v741 = vadd.s32 %v739, %v740
        %v742 = vlaneseq
        %v743 = vand.u32 %v742, 127
        %vm744 = vcmp.le.s32.totalorder %v743, %v741
        %v745 = vsel %vm744, %v663, -1e+09
        %v746 = vsel %vm744, %v687, -1e+09
        %v747 = vsel %vm744, %v711, -1e+09
        %v748 = vsel %vm744, %v735, -1e+09
        %v749 = vsel %vm646, %v745, -inf
        %750 = vmax.xlane.f32.xlu0 %v749
        %v751 = vpop.xlane.xlu0 %750
        %v752 = vsel %vm646, %v746, -inf
        %753 = vmax.xlane.f32.xlu0 %v752
        %v754 = vpop.xlane.xlu0 %753
        %v755 = vsel %vm646, %v747, -inf
        %756 = vmax.xlane.f32.xlu0 %v755
        %v757 = vpop.xlane.xlu0 %756
        %v758 = vsel %vm646, %v748, -inf
        %759 = vmax.xlane.f32.xlu0 %v758
        %v760 = vpop.xlane.xlu0 %759
        %v761 = vsub.f32 %v745, %v751
        %v762 = vsub.f32 %v746, %v754
        %v763 = vsub.f32 %v747, %v757
        %v764 = vsub.f32 %v748, %v760
        %v765 = vmul.f32 %v761, 1.442695
        %v766 = vpow.pop %v765
        %v767 = vmul.f32 %v762, 1.442695
        %v768 = vpow.pop %v767
        %v769 = vmul.f32 %v763, 1.442695
        %v770 = vpow.pop %v769
        %v771 = vmul.f32 %v764, 1.442695
        %v772 = vpow.pop %v771
        %v773 = vsel %vm646, %v766, 0.0
        %774 = vadd.xlane.f32.xlu0 %v773
        %v775 = vpop.xlane.xlu0 %774
        %v776 = vsel %vm646, %v768, 0.0
        %777 = vadd.xlane.f32.xlu0 %v776
        %v778 = vpop.xlane.xlu0 %777
        %v779 = vsel %vm646, %v770, 0.0
        %780 = vadd.xlane.f32.xlu0 %v779
        %v781 = vpop.xlane.xlu0 %780
        %v782 = vsel %vm646, %v772, 0.0
        %783 = vadd.xlane.f32.xlu0 %v782
        %v784 = vpop.xlane.xlu0 %783
        %v785 = vrcp.pop %v775
        %v786 = vrcp.pop %v778
        %v787 = vrcp.pop %v781
        %v788 = vrcp.pop %v784
        %v789 = vmul.f32 %v766, %v785
        %v790 = vmul.f32 %v768, %v786
        %v791 = vmul.f32 %v770, %v787
        %v792 = vmul.f32 %v772, %v788
        %v793 = vpack.c.bf16 %v789, %v789
        %v794 = vpack.c.bf16 %v790, %v790
        %v795 = vpack.c.bf16 %v791, %v791
        %v796 = vpack.c.bf16 %v792, %v792
        %v799 = vunpack.c.l.b16 %v631
        %v800 = vunpack.c.l.b16 %v632
        %v801 = vpack.c.b16 %v800, %v799
        %v804 = vsel %vm646, %v793, 0
        %806 = vmatpush.bf16.msra.mxu0 0
        %807 = vmatpush.bf16.msra.mxu0 0
        %808 = vmatpush.bf16.msra.mxu0 0
        %809 = vmatpush.bf16.msra.mxu0 0
        %810 = vmatpush.bf16.msra.mxu0 0
        %811 = vmatpush.bf16.msra.mxu0 0
        %812 = vmatpush.bf16.msra.mxu0 0
        %813 = vmatpush.bf16.msra.mxu0 %v801
        %814 = vmatmul.bf16.gmra.mxu0 %v804
        %v815 = vpop.f32.mrf.mxu0
        %v816 = vadd.f32 0.0, %v815
        %v817 = vpop.f32.mrf.mxu0
        %818 = vdwg.mxu0
        %v821 = vunpack.c.l.b16 %v633
        %v822 = vunpack.c.l.b16 %v634
        %v823 = vpack.c.b16 %v822, %v821
        %v826 = vsel %vm646, %v794, 0
        %828 = vmatpush.bf16.msra.mxu0 0
        %829 = vmatpush.bf16.msra.mxu0 0
        %830 = vmatpush.bf16.msra.mxu0 0
        %831 = vmatpush.bf16.msra.mxu0 0
        %832 = vmatpush.bf16.msra.mxu0 0
        %833 = vmatpush.bf16.msra.mxu0 0
        %834 = vmatpush.bf16.msra.mxu0 0
        %835 = vmatpush.bf16.msra.mxu0 %v823
        %836 = vmatmul.bf16.gmra.mxu0 %v826
        %v837 = vpop.f32.mrf.mxu0
        %v838 = vadd.f32 0.0, %v837
        %v839 = vpop.f32.mrf.mxu0
        %840 = vdwg.mxu0
        %v843 = vunpack.c.l.b16 %v635
        %v844 = vunpack.c.l.b16 %v636
        %v845 = vpack.c.b16 %v844, %v843
        %v848 = vsel %vm646, %v795, 0
        %850 = vmatpush.bf16.msra.mxu0 0
        %851 = vmatpush.bf16.msra.mxu0 0
        %852 = vmatpush.bf16.msra.mxu0 0
        %853 = vmatpush.bf16.msra.mxu0 0
        %854 = vmatpush.bf16.msra.mxu0 0
        %855 = vmatpush.bf16.msra.mxu0 0
        %856 = vmatpush.bf16.msra.mxu0 0
        %857 = vmatpush.bf16.msra.mxu0 %v845
        %858 = vmatmul.bf16.gmra.mxu0 %v848
        %v859 = vpop.f32.mrf.mxu0
        %v860 = vadd.f32 0.0, %v859
        %v861 = vpop.f32.mrf.mxu0
        %862 = vdwg.mxu0
        %v865 = vunpack.c.l.b16 %v637
        %v866 = vunpack.c.l.b16 %v638
        %v867 = vpack.c.b16 %v866, %v865
        %v870 = vsel %vm646, %v796, 0
        %872 = vmatpush.bf16.msra.mxu0 0
        %873 = vmatpush.bf16.msra.mxu0 0
        %874 = vmatpush.bf16.msra.mxu0 0
        %875 = vmatpush.bf16.msra.mxu0 0
        %876 = vmatpush.bf16.msra.mxu0 0
        %877 = vmatpush.bf16.msra.mxu0 0
        %878 = vmatpush.bf16.msra.mxu0 0
        %879 = vmatpush.bf16.msra.mxu0 %v867
        %880 = vmatmul.bf16.gmra.mxu0 %v870
        %v881 = vpop.f32.mrf.mxu0
        %v882 = vadd.f32 0.0, %v881
        %v883 = vpop.f32.mrf.mxu0
        %884 = vdwg.mxu0
        %v885 = vrot.slane %v860, 4
        %vm886 = vcmask 1047556
        %v887 = vsel %vm886, %v885, %v816
        %v888 = vrot.slane %v816, 4
        %v889 = vsel %vm886, %v860, %v888
        %v891 = vunpack.c.l.s4 1983009808
        %v892 = vunpack.c.0.s8 %v891
        %v893 = vperm.slane %v887, %v892
        %v895 = vunpack.c.l.s4 1983009808
        %v896 = vunpack.c.0.s8 %v895
        %v897 = vperm.slane %v889, %v896
        %v898 = vrot.slane %v882, 4
        %v899 = vsel %vm886, %v898, %v838
        %v900 = vrot.slane %v838, 4
        %v901 = vsel %vm886, %v882, %v900
        %v903 = vunpack.c.l.s4 1983009808
        %v904 = vunpack.c.0.s8 %v903
        %v905 = vperm.slane %v899, %v904
        %v907 = vunpack.c.l.s4 1983009808
        %v908 = vunpack.c.0.s8 %v907
        %v909 = vperm.slane %v901, %v908
        %v910 = vrot.slane %v905, 4
        %v911 = vsel %vm886, %v910, %v893
        %v912 = vrot.slane %v893, 4
        %v913 = vsel %vm886, %v905, %v912
        %v915 = vunpack.c.l.s4 1934713408
        %v916 = vunpack.c.0.s8 %v915
        %v917 = vperm.slane %v911, %v916
        %v919 = vunpack.c.l.s4 1934713408
        %v920 = vunpack.c.0.s8 %v919
        %v921 = vperm.slane %v913, %v920
        %v922 = vrot.slane %v909, 4
        %v923 = vsel %vm886, %v922, %v897
        %v924 = vrot.slane %v897, 4
        %v925 = vsel %vm886, %v909, %v924
        %v927 = vunpack.c.l.s4 1934713408
        %v928 = vunpack.c.0.s8 %v927
        %v929 = vperm.slane %v923, %v928
        %v931 = vunpack.c.l.s4 1934713408
        %v932 = vunpack.c.0.s8 %v931
        %v933 = vperm.slane %v925, %v932
        %v934 = vrot.slane %v917, 4
        %v935 = vsel %vm886, 0.0, %v934
        %v936 = vrot.slane %v921, 4
        %v937 = vsel %vm886, 0.0, %v936
        %v938 = vrot.slane %v929, 4
        %v939 = vsel %vm886, 0.0, %v938
        %v940 = vrot.slane %v933, 4
        %v941 = vsel %vm886, 0.0, %v940
        %v942 = vsel %vm886, %v936, %v917
        %v944 = vunpack.c.l.s4 1983009808
        %v945 = vunpack.c.0.s8 %v944
        %v946 = vperm.slane %v942, %v945
        %v947 = vrot.slane %v937, 4
        %v948 = vsel %vm886, %v947, %v935
        %v950 = vunpack.c.l.s4 1983009808
        %v951 = vunpack.c.0.s8 %v950
        %v952 = vperm.slane %v948, %v951
        %v953 = vsel %vm886, %v940, %v929
        %v955 = vunpack.c.l.s4 1983009808
        %v956 = vunpack.c.0.s8 %v955
        %v957 = vperm.slane %v953, %v956
        %v958 = vrot.slane %v941, 4
        %v959 = vsel %vm886, %v958, %v939
        %v961 = vunpack.c.l.s4 1983009808
        %v962 = vunpack.c.0.s8 %v961
        %v963 = vperm.slane %v959, %v962
        %v964 = vrot.slane %v952, 4
        %v965 = vsel %vm886, %v964, %v946
        %v966 = vrot.slane %v946, 4
        %v967 = vsel %vm886, %v952, %v966
        %v969 = vunpack.c.l.s4 1934713408
        %v970 = vunpack.c.0.s8 %v969
        %v971 = vperm.slane %v965, %v970
        %v973 = vunpack.c.l.s4 1934713408
        %v974 = vunpack.c.0.s8 %v973
        %v975 = vperm.slane %v967, %v974
        %v976 = vrot.slane %v963, 4
        %v977 = vsel %vm886, %v976, %v957
        %v978 = vrot.slane %v957, 4
        %v979 = vsel %vm886, %v963, %v978
        %v981 = vunpack.c.l.s4 1934713408
        %v982 = vunpack.c.0.s8 %v981
        %v983 = vperm.slane %v977, %v982
        %v985 = vunpack.c.l.s4 1934713408
        %v986 = vunpack.c.0.s8 %v985
        %v987 = vperm.slane %v979, %v986
        %v988 = vrot.slane %v983, 4
        %v989 = vsel %vm886, %v988, %v971
        %v990 = vrot.slane %v971, 4
        %v991 = vsel %vm886, %v983, %v990
        %v992 = vrot.slane %v987, 4
        %v993 = vsel %vm886, %v992, %v975
        %v994 = vrot.slane %v975, 4
        %v995 = vsel %vm886, %v987, %v994
        %997 = vrot.lane.b32.xlu0 %v991, 16
        %v998 = vpop.permute.xlu0 %997
        %1001 = vrot.lane.b32.xlu0 %v993, 32
        %v1002 = vpop.permute.xlu0 %1001
        %1005 = vrot.lane.b32.xlu0 %v995, 48
        %v1006 = vpop.permute.xlu0 %1005
        %v1008 = vsel %vm646, %v989, %v998
        %vm1009 = vcmask 261120
        %v1010 = vsel %vm1009, %v1008, %v1002
        %vm1011 = vcmask 392192
        %v1012 = vsel %vm1011, %v1010, %v1006
        %v1013 = vpack.c.bf16 %v1012, %v1012
        %v1014 = vld [vmem:[%s4] sm:$0xf]
        %v1015 = vld [vmem:[%s4 + $0x4] sm:$0xf]
        %v1016 = vld [vmem:[%s4 + $0x8] sm:$0xf]
        %v1017 = vld [vmem:[%s4 + $0xc] sm:$0xf]
        %v1018 = vld [vmem:[%s4 + $0x10] sm:$0xf]
        %v1019 = vld [vmem:[%s4 + $0x14] sm:$0xf]
        %v1020 = vld [vmem:[%s4 + $0x18] sm:$0xf]
        %v1021 = vld [vmem:[%s4 + $0x1c] sm:$0xf]
        %v1022 = vld [vmem:[%s5] sm:$0x1]
        %v1024 = vperm.slane %v1022, 0
        %v1034 = vunpack.c.l.b16 %v1014
        %v1035 = vunpack.c.l.b16 %v1015
        %v1036 = vunpack.c.l.b16 %v1016
        %v1037 = vunpack.c.l.b16 %v1017
        %v1038 = vunpack.c.l.b16 %v1018
        %v1039 = vunpack.c.l.b16 %v1019
        %v1040 = vunpack.c.l.b16 %v1020
        %v1041 = vunpack.c.l.b16 %v1021
        %v1042 = vpack.c.b16 %v1035, %v1034
        %v1043 = vpack.c.b16 %v1037, %v1036
        %v1044 = vpack.c.b16 %v1039, %v1038
        %v1045 = vpack.c.b16 %v1041, %v1040
        %vm1050 = vcmask 523264
        %v1052 = vsel %vm1050, %v1013, 0
        %1054 = vmatpush.bf16.msra.mxu0 0
        %1055 = vmatpush.bf16.msra.mxu0 0
        %1056 = vmatpush.bf16.msra.mxu0 0
        %1057 = vmatpush.bf16.msra.mxu0 0
        %1058 = vmatpush.bf16.msra.mxu0 %v1045
        %1059 = vmatpush.bf16.msra.mxu0 %v1044
        %1060 = vmatpush.bf16.msra.mxu0 %v1043
        %1061 = vmatpush.bf16.msra.mxu0 %v1042
        %1062 = vmatmul.bf16.gmra.mxu0 %v1052
        %v1063 = vpop.f32.mrf.mxu0
        %v1064 = vadd.f32 %v1024, %v1063
        %v1065 = vpop.f32.mrf.mxu0
        %1066 = vdwg.mxu0
        %v1067 = vunpack.c.l.bf16 %v639
        %v1068 = vadd.f32 %v1067, %v1064
        %v1069 = vld [vmem:[%s6] sm:$0x1]
        %v1070 = vld [vmem:[%s7] sm:$0x1]
        %v1071 = vsel %vm1050, %v1068, 0.0
        %1072 = vadd.xlane.f32.xlu0 %v1071
        %v1073 = vpop.xlane.xlu0 %1072
        %v1074 = vrcp.pop 64.0
        %v1075 = vmul.f32 64.0, %v1074
        %v1076 = vsub.f32 1.0, %v1075
        %v1077 = vmul.f32 %v1074, %v1076
        %v1078 = vadd.f32 %v1074, %v1077
        %vm1079 = vweird.f32 %v1074
        %v1080 = vsel %vm1079, %v1074, %v1078
        %v1081 = vmul.f32 %v1073, %v1080
        %v1082 = vsub.f32 %v1068, %v1081
        %v1083 = vmul.f32 %v1082, %v1082
        %v1084 = vsel %vm1050, %v1083, 0.0
        %1085 = vadd.xlane.f32.xlu0 %v1084
        %v1086 = vpop.xlane.xlu0 %1085
        %v1087 = vmul.f32 %v1086, %v1080
        %v1088 = vadd.f32 %v1087, 1e-05
        %v1089 = vrsqrt.pop %v1088
        %v1090 = vmul.f32 %v1089, %v1088
        %v1091 = vmul.f32 %v1090, %v1089
        %v1092 = vmul.f32 0.5, %v1091
        %v1093 = vsub.f32 1.5, %v1092
        %v1094 = vmul.f32 %v1089, %v1093
        %vm1095 = vweird.f32 %v1088
        %vm1096 = vweird.f32 %v1089
        %vm1097 = vmor %vm1095, %vm1096
        %v1098 = vsel %vm1097, %v1089, %v1094
        %v1099 = vmul.f32 %v1082, %v1098
        %v1101 = vperm.slane %v1069, 0
        %v1103 = vmul.f32 %v1101, %v1099
        %v1105 = vperm.slane %v1070, 0
        %v1107 = vadd.f32 %v1103, %v1105
        %v1108 = vpack.c.bf16 %v1107, %v1107
        %v1109 = vld [vmem:[%s8] sm:$0xff]
        %v1110 = vld [vmem:[%s8 + $0x8] sm:$0xff]
        %v1111 = vld [vmem:[%s8 + $0x10] sm:$0xff]
        %v1112 = vld [vmem:[%s8 + $0x18] sm:$0xff]
        %v1113 = vld [vmem:[%s8 + $0x20] sm:$0xff]
        %v1114 = vld [vmem:[%s8 + $0x28] sm:$0xff]
        %v1115 = vld [vmem:[%s8 + $0x30] sm:$0xff]
        %v1116 = vld [vmem:[%s8 + $0x38] sm:$0xff]
        %v1117 = vld [vmem:[%s9] sm:$0x3]
        %v1119 = vperm.slane %v1117, 0
        %v1120 = vperm.slane %v1117, 1
        %v1131 = vunpack.c.l.b16 %v1109
        %v1132 = vunpack.c.h.b16 %v1109
        %v1133 = vunpack.c.l.b16 %v1110
        %v1134 = vunpack.c.h.b16 %v1110
        %v1135 = vunpack.c.l.b16 %v1111
        %v1136 = vunpack.c.h.b16 %v1111
        %v1137 = vunpack.c.l.b16 %v1112
        %v1138 = vunpack.c.h.b16 %v1112
        %v1139 = vunpack.c.l.b16 %v1113
        %v1140 = vunpack.c.h.b16 %v1113
        %v1141 = vunpack.c.l.b16 %v1114
        %v1142 = vunpack.c.h.b16 %v1114
        %v1143 = vunpack.c.l.b16 %v1115
        %v1144 = vunpack.c.h.b16 %v1115
        %v1145 = vunpack.c.l.b16 %v1116
        %v1146 = vunpack.c.h.b16 %v1116
        %v1147 = vpack.c.b16 %v1133, %v1131
        %v1148 = vpack.c.b16 %v1134, %v1132
        %v1149 = vpack.c.b16 %v1137, %v1135
        %v1150 = vpack.c.b16 %v1138, %v1136
        %v1151 = vpack.c.b16 %v1141, %v1139
        %v1152 = vpack.c.b16 %v1142, %v1140
        %v1153 = vpack.c.b16 %v1145, %v1143
        %v1154 = vpack.c.b16 %v1146, %v1144
        %v1164 = vsel %vm1050, %v1108, 0
        %1166 = vmatpush.bf16.msra.mxu0 0
        %1167 = vmatpush.bf16.msra.mxu0 0
        %1168 = vmatpush.bf16.msra.mxu0 0
        %1169 = vmatpush.bf16.msra.mxu0 0
        %1170 = vmatpush.bf16.msra.mxu0 %v1153
        %1171 = vmatpush.bf16.msra.mxu0 %v1151
        %1172 = vmatpush.bf16.msra.mxu0 %v1149
        %1173 = vmatpush.bf16.msra.mxu0 %v1147
        %1174 = vmatmul.bf16.gmra.mxu0 %v1164
        %v1175 = vpop.f32.mrf.mxu0
        %v1176 = vadd.f32 %v1119, %v1175
        %v1177 = vpop.f32.mrf.mxu0
        %1178 = vdwg.mxu0
        %1179 = vmatpush.bf16.msra.mxu0 0
        %1180 = vmatpush.bf16.msra.mxu0 0
        %1181 = vmatpush.bf16.msra.mxu0 0
        %1182 = vmatpush.bf16.msra.mxu0 0
        %1183 = vmatpush.bf16.msra.mxu0 %v1154
        %1184 = vmatpush.bf16.msra.mxu0 %v1152
        %1185 = vmatpush.bf16.msra.mxu0 %v1150
        %1186 = vmatpush.bf16.msra.mxu0 %v1148
        %1187 = vmatmul.bf16.gmra.mxu0 %v1164
        %v1188 = vpop.f32.mrf.mxu0
        %v1189 = vadd.f32 %v1120, %v1188
        %v1190 = vpop.f32.mrf.mxu0
        %1191 = vdwg.mxu0
        %v1192 = vmul.f32 %v1176, 0.5
        %v1193 = vmul.f32 %v1189, 0.5
        %v1194 = vmul.f32 %v1176, 0.044715
        %v1195 = vmul.f32 %v1189, 0.044715
        %v1196 = vmul.f32 %v1194, %v1176
        %v1197 = vmul.f32 %v1195, %v1189
        %v1198 = vmul.f32 %v1196, %v1176
        %v1199 = vmul.f32 %v1197, %v1189
        %v1200 = vadd.f32 %v1176, %v1198
        %v1201 = vadd.f32 %v1189, %v1199
        %v1202 = vmul.f32 %v1200, 0.7978846
        %v1203 = vmul.f32 %v1201, 0.7978846
        %v1204 = vtanh.pop %v1202
        %v1205 = vtanh.pop %v1203
        %v1206 = vadd.f32 %v1204, 1.0
        %v1207 = vadd.f32 %v1205, 1.0
        %v1208 = vmul.f32 %v1192, %v1206
        %v1209 = vmul.f32 %v1193, %v1207
        %v1210 = vpack.c.bf16 %v1208, %v1208
        %v1211 = vpack.c.bf16 %v1209, %v1209
        %v1212 = vld [vmem:[%s10] sm:$0xf]
        %v1213 = vld [vmem:[%s10 + $0x4] sm:$0xf]
        %v1214 = vld [vmem:[%s10 + $0x8] sm:$0xf]
        %v1215 = vld [vmem:[%s10 + $0xc] sm:$0xf]
        %v1216 = vld [vmem:[%s10 + $0x10] sm:$0xf]
        %v1217 = vld [vmem:[%s10 + $0x14] sm:$0xf]
        %v1218 = vld [vmem:[%s10 + $0x18] sm:$0xf]
        %v1219 = vld [vmem:[%s10 + $0x1c] sm:$0xf]
        %v1220 = vld [vmem:[%s10 + $0x20] sm:$0xf]
        %v1221 = vld [vmem:[%s10 + $0x24] sm:$0xf]
        %v1222 = vld [vmem:[%s10 + $0x28] sm:$0xf]
        %v1223 = vld [vmem:[%s10 + $0x2c] sm:$0xf]
        %v1224 = vld [vmem:[%s10 + $0x30] sm:$0xf]
        %v1225 = vld [vmem:[%s10 + $0x34] sm:$0xf]
        %v1226 = vld [vmem:[%s10 + $0x38] sm:$0xf]
        %v1227 = vld [vmem:[%s10 + $0x3c] sm:$0xf]
        %v1228 = vld [vmem:[%s10 + $0x40] sm:$0xf]
        %v1229 = vld [vmem:[%s10 + $0x44] sm:$0xf]
        %v1230 = vld [vmem:[%s10 + $0x48] sm:$0xf]
        %v1231 = vld [vmem:[%s10 + $0x4c] sm:$0xf]
        %v1232 = vld [vmem:[%s10 + $0x50] sm:$0xf]
        %v1233 = vld [vmem:[%s10 + $0x54] sm:$0xf]
        %v1234 = vld [vmem:[%s10 + $0x58] sm:$0xf]
        %v1235 = vld [vmem:[%s10 + $0x5c] sm:$0xf]
        %v1236 = vld [vmem:[%s10 + $0x60] sm:$0xf]
        %v1237 = vld [vmem:[%s10 + $0x64] sm:$0xf]
        %v1238 = vld [vmem:[%s10 + $0x68] sm:$0xf]
        %v1239 = vld [vmem:[%s10 + $0x6c] sm:$0xf]
        %v1240 = vld [vmem:[%s10 + $0x70] sm:$0xf]
        %v1241 = vld [vmem:[%s10 + $0x74] sm:$0xf]
        %v1242 = vld [vmem:[%s10 + $0x78] sm:$0xf]
        %v1243 = vld [vmem:[%s10 + $0x7c] sm:$0xf]
        %v1244 = vld [vmem:[%s11] sm:$0x1]
        %v1246 = vperm.slane %v1244, 0
        %v1280 = vunpack.c.l.b16 %v1212
        %v1281 = vunpack.c.l.b16 %v1213
        %v1282 = vunpack.c.l.b16 %v1214
        %v1283 = vunpack.c.l.b16 %v1215
        %v1284 = vunpack.c.l.b16 %v1216
        %v1285 = vunpack.c.l.b16 %v1217
        %v1286 = vunpack.c.l.b16 %v1218
        %v1287 = vunpack.c.l.b16 %v1219
        %v1288 = vunpack.c.l.b16 %v1220
        %v1289 = vunpack.c.l.b16 %v1221
        %v1290 = vunpack.c.l.b16 %v1222
        %v1291 = vunpack.c.l.b16 %v1223
        %v1292 = vunpack.c.l.b16 %v1224
        %v1293 = vunpack.c.l.b16 %v1225
        %v1294 = vunpack.c.l.b16 %v1226
        %v1295 = vunpack.c.l.b16 %v1227
        %v1296 = vunpack.c.l.b16 %v1228
        %v1297 = vunpack.c.l.b16 %v1229
        %v1298 = vunpack.c.l.b16 %v1230
        %v1299 = vunpack.c.l.b16 %v1231
        %v1300 = vunpack.c.l.b16 %v1232
        %v1301 = vunpack.c.l.b16 %v1233
        %v1302 = vunpack.c.l.b16 %v1234
        %v1303 = vunpack.c.l.b16 %v1235
        %v1304 = vunpack.c.l.b16 %v1236
        %v1305 = vunpack.c.l.b16 %v1237
        %v1306 = vunpack.c.l.b16 %v1238
        %v1307 = vunpack.c.l.b16 %v1239
        %v1308 = vunpack.c.l.b16 %v1240
        %v1309 = vunpack.c.l.b16 %v1241
        %v1310 = vunpack.c.l.b16 %v1242
        %v1311 = vunpack.c.l.b16 %v1243
        %v1312 = vpack.c.b16 %v1281, %v1280
        %v1313 = vpack.c.b16 %v1283, %v1282
        %v1314 = vpack.c.b16 %v1285, %v1284
        %v1315 = vpack.c.b16 %v1287, %v1286
        %v1316 = vpack.c.b16 %v1289, %v1288
        %v1317 = vpack.c.b16 %v1291, %v1290
        %v1318 = vpack.c.b16 %v1293, %v1292
        %v1319 = vpack.c.b16 %v1295, %v1294
        %v1320 = vpack.c.b16 %v1297, %v1296
        %v1321 = vpack.c.b16 %v1299, %v1298
        %v1322 = vpack.c.b16 %v1301, %v1300
        %v1323 = vpack.c.b16 %v1303, %v1302
        %v1324 = vpack.c.b16 %v1305, %v1304
        %v1325 = vpack.c.b16 %v1307, %v1306
        %v1326 = vpack.c.b16 %v1309, %v1308
        %v1327 = vpack.c.b16 %v1311, %v1310
        %1344 = vmatpush.bf16.msra.mxu0 %v1319
        %1345 = vmatpush.bf16.msra.mxu0 %v1318
        %1346 = vmatpush.bf16.msra.mxu0 %v1317
        %1347 = vmatpush.bf16.msra.mxu0 %v1316
        %1348 = vmatpush.bf16.msra.mxu0 %v1315
        %1349 = vmatpush.bf16.msra.mxu0 %v1314
        %1350 = vmatpush.bf16.msra.mxu0 %v1313
        %1351 = vmatpush.bf16.msra.mxu0 %v1312
        %1352 = vmatmul.bf16.gmra.mxu0 %v1210
        %v1353 = vpop.f32.mrf.mxu0
        %v1354 = vadd.f32 %v1246, %v1353
        %v1355 = vpop.f32.mrf.mxu0
        %1356 = vdwg.mxu0
        %1357 = vmatpush.bf16.msra.mxu0 %v1327
        %1358 = vmatpush.bf16.msra.mxu0 %v1326
        %1359 = vmatpush.bf16.msra.mxu0 %v1325
        %1360 = vmatpush.bf16.msra.mxu0 %v1324
        %1361 = vmatpush.bf16.msra.mxu0 %v1323
        %1362 = vmatpush.bf16.msra.mxu0 %v1322
        %1363 = vmatpush.bf16.msra.mxu0 %v1321
        %1364 = vmatpush.bf16.msra.mxu0 %v1320
        %1365 = vmatmul.bf16.gmra.mxu0 %v1211
        %v1366 = vpop.f32.mrf.mxu0
        %v1367 = vadd.f32 %v1354, %v1366
        %v1368 = vpop.f32.mrf.mxu0
        %1369 = vdwg.mxu0
        %v1370 = vadd.f32 %v1107, %v1367
        %v1371 = vld [vmem:[%s12] sm:$0x1]
        %v1372 = vld [vmem:[%s13] sm:$0x1]
        %v1373 = vsel %vm1050, %v1370, 0.0
        %1374 = vadd.xlane.f32.xlu0 %v1373
        %v1375 = vpop.xlane.xlu0 %1374
        %v1376 = vmul.f32 %v1375, %v1080
        %v1377 = vsub.f32 %v1370, %v1376
        %v1378 = vmul.f32 %v1377, %v1377
        %v1379 = vsel %vm1050, %v1378, 0.0
        %1380 = vadd.xlane.f32.xlu0 %v1379
        %v1381 = vpop.xlane.xlu0 %1380
        %v1382 = vmul.f32 %v1381, %v1080
        %v1383 = vadd.f32 %v1382, 1e-05
        %v1384 = vrsqrt.pop %v1383
        %v1385 = vmul.f32 %v1384, %v1383
        %v1386 = vmul.f32 %v1385, %v1384
        %v1387 = vmul.f32 0.5, %v1386
        %v1388 = vsub.f32 1.5, %v1387
        %v1389 = vmul.f32 %v1384, %v1388
        %vm1390 = vweird.f32 %v1383
        %vm1391 = vweird.f32 %v1384
        %vm1392 = vmor %vm1390, %vm1391
        %v1393 = vsel %vm1392, %v1384, %v1389
        %v1394 = vmul.f32 %v1377, %v1393
        %v1396 = vperm.slane %v1371, 0
        %v1398 = vmul.f32 %v1396, %v1394
        %v1400 = vperm.slane %v1372, 0
        %v1402 = vadd.f32 %v1398, %v1400
        %v1403 = vpack.c.bf16 %v1402, %v1402
        %vm1404 = vcmask 519168
        %1405 = vst.msk [vmem:[%s617] sm:$0xf] %vm1404, %v1403
        %p1406 = scmp.lt.s32.totalorder %s29, 1
        %s1407 = scalar_select %p1406, %s29, 1
        %p1408 = scmp.lt.s32.totalorder %s30, 1
        %s1409 = scalar_select %p1408, %s30, 1
        %s1410 = smul.addr %s1407, 2
        %s1411 = sadd.s32 %s1409, %s1410
        %s1412 = smul.addr %s1411, 4
        %s1413 = scalar_lea.vmem %s14, %s1412
        // Predicated region
        $region118: #{openai_gpt_encoder.5} parent=112 // pred_check
          %p1414 = pneg %p375
        $region119: #{openai_gpt_encoder.5} parent=112 // pred_check_branch
          %1416 = sbr.rel (%p1414) target = $region121
        $region120: #{openai_gpt_encoder.5} parent=112 // pred_region
          _
        $region121: #{openai_gpt_encoder.5} parent=112 // pred_fallthru
          _
      $region113: #{openai_gpt_encoder.5} parent=5 // pred_fallthru
        _
      %p1417 = scmp.le.s32.totalorder 2, %s20
      // Predicated region
      $region122: #{openai_gpt_encoder.5} parent=5 // pred_check
        %p1418 = pneg %p1417
      $region123: #{openai_gpt_encoder.5} parent=5 // pred_check_branch
        %1420 = sbr.rel (%p1418) target = $region125
      $region124: #{openai_gpt_encoder.5} parent=5 // pred_region
        %s1421 = ssub.s32 %s20, 2
        // Predicated region
        $region126: #{openai_gpt_encoder.5} parent=124 // pred_check
          %p1422 = pneg %p381
        $region127: #{openai_gpt_encoder.5} parent=124 // pred_check_branch
          %1424 = sbr.rel (%p1422) target = $region129
        $region128: #{openai_gpt_encoder.5} parent=124 // pred_region
          %p1425 = scmp.lt.s32.totalorder %s31, 1
          %s1426 = scalar_select %p1425, %s31, 1
          %p1427 = scmp.lt.s32.totalorder %s32, 1
          %s1428 = scalar_select %p1427, %s32, 1
          %s1429 = smul.addr %s1426, 2
          %s1430 = sadd.s32 %s1428, %s1429
          %s1431 = smul.addr %s1430, 4
          %s1432 = scalar_lea.vmem %s14, %s1431
        $region129: #{openai_gpt_encoder.5} parent=124 // pred_fallthru
          _
      $region125: #{openai_gpt_encoder.5} parent=5 // pred_fallthru
        _
    $region6: #{openai_gpt_encoder.5} parent=1 // loop_footer
      %s24 = sadd.s32 1, %s20
    $region7: #{openai_gpt_encoder.5} parent=1 // loop_footer_branch
      %19 = sbr.rel target = $region3
    $region8: #{openai_gpt_encoder.5} parent=1 // loop_exit
      _

</llo_original>
